<compile_context>
chip_gen: v6e
topology: v6e:2x2x1
jax: 0.10.0
libtpu: 0.0.40
codegen_flags: <defaults>
</compile_context>

<pallas_src>
import functools
import math

import jax
import jax.numpy as jnp
from jax.experimental import pallas as pl
from jax.experimental.pallas import tpu as pltpu

EPS = 1e-5                 # nn.LayerNorm default eps
_ROW_TILE_TARGET = 512     # measured sweet spot for mem-bound row-wise kernels


def _round_up(x, m):
    return (x + m - 1) // m * m


@functools.lru_cache(maxsize=1)
def _vmem_limit_bytes():
    """Per-generation VMEM budget (v5e/v6e: 128 MiB physical, v7x: 64 MiB)."""
    cap = 128 * 1024 * 1024
    try:
        info = pltpu.get_tpu_info()
        cap = int(getattr(info, "vmem_capacity_bytes", cap))
    except Exception:
        pass
    return min(cap // 2, 64 * 1024 * 1024)


def _sigmoid(x):
    return 1.0 / (1.0 + jnp.exp(-x))


def _layernorm(x, g, b):
    mu = jnp.mean(x, axis=-1, keepdims=True)
    var = jnp.mean((x - mu) ** 2, axis=-1, keepdims=True)
    return (x - mu) * jax.lax.rsqrt(var + EPS) * g + b


# ----------------------------- Pallas kernels -----------------------------

def ffn_half_kernel(x_ref, g_ref, b_ref, w1_ref, b1_ref, w2_ref, b2_ref, o_ref):
    """o = x + 0.5 * Linear2(Swish(Linear1(LayerNorm(x))))    (ffn_module, half residual)."""
    x = x_ref[...].astype(jnp.float32)
    xn = _layernorm(x, g_ref[...], b_ref[...])
    h = jnp.dot(xn.astype(w1_ref.dtype), w1_ref[...],
                preferred_element_type=jnp.float32) + b1_ref[...]
    h = h * _sigmoid(h)                                  # Swish / SiLU
    y = jnp.dot(h.astype(w2_ref.dtype), w2_ref[...],
                preferred_element_type=jnp.float32) + b2_ref[...]
    o_ref[...] = (x + 0.5 * y).astype(o_ref.dtype)


def ffn_half_ln_kernel(x_ref, g_ref, b_ref, w1_ref, b1_ref, w2_ref, b2_ref,
                       gn_ref, bn_ref, o_ref):
    """o = LayerNorm_norm2(x + 0.5 * ffn(x))    (ffn_module2 fused with norm2)."""
    x = x_ref[...].astype(jnp.float32)
    xn = _layernorm(x, g_ref[...], b_ref[...])
    h = jnp.dot(xn.astype(w1_ref.dtype), w1_ref[...],
                preferred_element_type=jnp.float32) + b1_ref[...]
    h = h * _sigmoid(h)
    y = jnp.dot(h.astype(w2_ref.dtype), w2_ref[...],
                preferred_element_type=jnp.float32) + b2_ref[...]
    o_ref[...] = _layernorm(x + 0.5 * y, gn_ref[...], bn_ref[...]).astype(o_ref.dtype)


def matmul_kernel(x_ref, w_ref, o_ref):
    """Small whole-array matmul (relative-position projection linear_pos, no bias)."""
    o_ref[...] = jnp.dot(x_ref[...].astype(w_ref.dtype), w_ref[...],
                         preferred_element_type=jnp.float32).astype(o_ref.dtype)


def attn_fused_kernel(x_ref, g_ref, b_ref, wqkv_ref, u_ref, v_ref, pt_ref, wout_ref,
                      ob_ref, *outs_and_scratch, return_attn):
    """Fused norm1 + RelPosMHAXL + out_proj + residual for one (batch, head) grid point.

    grid = (B, H); H is an 'arbitrary' reduction axis accumulating per-head out_proj
    contributions into the f32 (L, D) scratch `acc_ref`.

    x_ref    : (1, L, D)     residual stream after ffn1 (this is also the skip connection)
    wqkv_ref : (1, D, 3*dh)  this head's [Q|K|V] projection weight, softmax scale folded into Q
    u_ref/v_ref : (1, 1, dh) pos_bias_u / pos_bias_v (pre-scaled)
    pt_ref   : (1, dh, Pp)   projected relative-position embeddings (transposed).  Column 0 is
               an extra zero column, columns [1, 2L-1] hold positions +(L-1)..-(L-1),
               rest zero padding, Pp a multiple of 128.
    wout_ref : (1, dh, D)    this head's rows of the out_proj weight
    """
    if return_attn:
        o_ref, attn_ref, acc_ref = outs_and_scratch
    else:
        o_ref, acc_ref = outs_and_scratch
        attn_ref = None

    h_idx = pl.program_id(1)
    n_heads = pl.num_programs(1)
    dh = wqkv_ref.shape[2] // 3
    Pp = pt_ref.shape[2]
    cdt = wqkv_ref.dtype                                  # MXU compute dtype (bf16)

    x = x_ref[0].astype(jnp.float32)                      # (L, D)
    L = x.shape[0]

    # init the fused out_proj + residual accumulator on the first head step
    @pl.when(h_idx == 0)
    def _():
        acc_ref[...] = x + ob_ref[...]

    # norm1 + this head's QKV projection (softmax scale pre-folded into W_q and u/v)
    xn = _layernorm(x, g_ref[...], b_ref[...])
    qkv = jnp.dot(xn.astype(cdt), wqkv_ref[0], preferred_element_type=jnp.float32)   # (L, 3*dh)
    q = qkv[:, :dh]
    k = qkv[:, dh:2 * dh]
    v = qkv[:, 2 * dh:]

    qu = (q + u_ref[0]).astype(cdt)
    qv = (q + v_ref[0]).astype(cdt)

    # content term:  (q + pos_bias_u) @ k^T
    ac = jax.lax.dot_general(qu, k.astype(cdt), (((1,), (1,)), ((), ())),
                             preferred_element_type=jnp.float32)                     # (L, L)

    # position term: (q + pos_bias_v) @ p^T, then Transformer-XL relative shift.
    # desired: bd[i, j] = bd_full[i, L + j - i]  (column 0 of p is the extra zero column).
    # One strided lane-rotate shifts every row at once: row i rotates by (Pp - L) + i.
    bd_full = jnp.dot(qv, pt_ref[0], preferred_element_type=jnp.float32)             # (L, Pp)
    bd = pltpu.roll(bd_full, Pp - L, 1, stride=1, stride_axis=0)[:, :L]

    s = ac + bd
    m = jnp.max(s, axis=-1, keepdims=True)
    e = jnp.exp(s - m)
    denom = jnp.sum(e, axis=-1, keepdims=True)
    if return_attn:
        a = e / denom                                     # exact division for returned weights
        attn_ref[0, 0] = a
    else:
        a = e * pl.reciprocal(denom, approx=True)

    ctx = jnp.dot(a.astype(cdt), v.astype(cdt), preferred_element_type=jnp.float32)  # (L, dh)
    acc_ref[...] += jnp.dot(ctx.astype(cdt), wout_ref[0],
                            preferred_element_type=jnp.float32)                      # (L, D)

    @pl.when(h_idx == n_heads - 1)
    def _():
        o_ref[0] = acc_ref[...].astype(o_ref.dtype)
    # TODO(synk): for very long L (>~1024) tile the key/position axis with online softmax so only
    # an (Lq_tile, kv_tile) slab of logits / bd is live; attn_mask / key_padding_mask are not
    # implemented (both None in this forward).


def conv_module_kernel(x_ref, g1_ref, b1_ref, wb_ref, bb_ref, wdw_ref, bdw_ref,
                       g2_ref, b2_ref, wl_ref, bl_ref, o_ref, halo_ref, *, ksize, pad):
    """Conformer ConvolutionModule for one batch element, plus the layer residual add.

    LN -> pointwise conv (2D channels) -> GLU -> depthwise conv over time -> LN -> Swish ->
    Linear, then x + out.  Depthwise taps read a zero-halo VMEM scratch with static slices
    ('same' zero padding) -- no per-tap selects.
    """
    x = x_ref[0].astype(jnp.float32)                     # (L, D)
    L, D = x.shape
    h = _layernorm(x, g1_ref[...], b1_ref[...])
    z = jnp.dot(h.astype(wb_ref.dtype), wb_ref[...],
                preferred_element_type=jnp.float32) + bb_ref[...]            # (L, 2D)
    glu = z[:, :D] * _sigmoid(z[:, D:])                  # GLU over channel dim

    # zero-halo scratch: rows [0,pad) and [pad+L, L+2*pad) are zero padding
    if pad > 0:
        halo_ref[0:pad, :] = jnp.zeros((pad, D), jnp.float32)
        halo_ref[pad + L:L + 2 * pad, :] = jnp.zeros((pad, D), jnp.float32)
    halo_ref[pad:pad + L, :] = glu

    wdw = wdw_ref[...]                                   # (K, D)  [tap, channel]
    acc = jnp.zeros((L, D), jnp.float32)
    for k in range(ksize):                               # static loop over taps
        acc = acc + halo_ref[k:k + L, :] * wdw[k:k + 1, :]
    acc = acc + bdw_ref[...]

    h2 = _layernorm(acc, g2_ref[...], b2_ref[...])
    h2 = h2 * _sigmoid(h2)                               # Swish
    y = jnp.dot(h2.astype(wl_ref.dtype), wl_ref[...],
                preferred_element_type=jnp.float32) + bl_ref[...]
    o_ref[0] = (x + y).astype(o_ref.dtype)               # layer residual: x + conv_module(x)
    # TODO(synk): conv_mask (masked_fill), causal / dynchunktrain branches and time-tiling with a
    # (ksize-1) halo for very long L are not implemented (mask=None, non-causal forward).


# ----------------------------- wrappers -----------------------------

def _call_rowwise(kernel, args, tiled, out_cols, out_dtype):
    """Row-tiled pallas_call: arrays flagged in `tiled` are (nrows, cols) and tiled over rows
    (rows padded to a multiple of the tile); parameter arrays stay whole-array / VMEM-resident."""
    nrows = args[tiled.index(True)].shape[0]
    tile = min(_ROW_TILE_TARGET, _round_up(nrows, 8))
    padded = _round_up(nrows, tile)
    if padded != nrows:
        args = [jnp.pad(a, ((0, padded - nrows), (0, 0))) if t else a
                for a, t in zip(args, tiled)]
    in_specs = []
    for a, t in zip(args, tiled):
        if t:
            in_specs.append(pl.BlockSpec((tile, a.shape[1]), lambda i: (i, 0)))
        else:
            in_specs.append(pl.BlockSpec(a.shape, lambda i, nd=a.ndim: (0,) * nd))
    out = pl.pallas_call(
        kernel,
        out_shape=jax.ShapeDtypeStruct((padded, out_cols), out_dtype),
        grid=(padded // tile,),
        in_specs=in_specs,
        out_specs=pl.BlockSpec((tile, out_cols), lambda i: (i, 0)),
        compiler_params=pltpu.CompilerParams(
            dimension_semantics=("parallel",),
            vmem_limit_bytes=_vmem_limit_bytes()),
    )(*args)
    return out[:nrows] if padded != nrows else out


def run_attention_fused(x, p, p_t_h, *, return_attn, out_dtype):
    """norm1 + RelPosMHAXL + out_proj + residual, grid (B, H) with H as the reduction axis."""
    B, L, D = x.shape
    H, _, dh = p["mha_u_scaled"].shape
    Pp = p_t_h.shape[2]
    kernel = functools.partial(attn_fused_kernel, return_attn=return_attn)

    in_arrays = [x, p["norm1_g"], p["norm1_b"], p["mha_qkv_w_h"],
                 p["mha_u_scaled"], p["mha_v_scaled"], p_t_h,
                 p["mha_out_w_h"], p["mha_out_b"]]
    in_specs = [
        pl.BlockSpec((1, L, D), lambda b, h: (b, 0, 0)),
        pl.BlockSpec((1, D), lambda b, h: (0, 0)),
        pl.BlockSpec((1, D), lambda b, h: (0, 0)),
        pl.BlockSpec((1, D, 3 * dh), lambda b, h: (h, 0, 0)),
        pl.BlockSpec((1, 1, dh), lambda b, h: (h, 0, 0)),
        pl.BlockSpec((1, 1, dh), lambda b, h: (h, 0, 0)),
        pl.BlockSpec((1, dh, Pp), lambda b, h: (h, 0, 0)),
        pl.BlockSpec((1, dh, D), lambda b, h: (h, 0, 0)),
        pl.BlockSpec((1, D), lambda b, h: (0, 0)),
    ]
    out_shapes = [jax.ShapeDtypeStruct((B, L, D), out_dtype)]
    out_specs = [pl.BlockSpec((1, L, D), lambda b, h: (b, 0, 0))]
    if return_attn:
        out_shapes.append(jax.ShapeDtypeStruct((B, H, L, L), jnp.float32))
        out_specs.append(pl.BlockSpec((1, 1, L, L), lambda b, h: (b, h, 0, 0)))

    res = pl.pallas_call(
        kernel,
        out_shape=tuple(out_shapes),
        grid=(B, H),
        in_specs=in_specs,
        out_specs=tuple(out_specs),
        scratch_shapes=[pltpu.VMEM((L, D), jnp.float32)],
        compiler_params=pltpu.CompilerParams(
            dimension_semantics=("parallel", "arbitrary"),
            vmem_limit_bytes=_vmem_limit_bytes()),
    )(*in_arrays)
    if return_attn:
        return res[0], res[1]
    return res[0], None


def run_conv_module(x, p, kernel_size, out_dtype):
    B, L, D = x.shape
    assert kernel_size % 2 == 1, "ConvolutionModule assumes an odd kernel_size"
    pad = (kernel_size - 1) // 2
    kernel = functools.partial(conv_module_kernel, ksize=kernel_size, pad=pad)
    pa = [p["conv_ln_g"], p["conv_ln_b"],
          p["conv_bottleneck_wT"], p["conv_bottleneck_b"],
          p["conv_dw_w"], p["conv_dw_b"],
          p["conv_after_ln_g"], p["conv_after_ln_b"],
          p["conv_after_wT"], p["conv_after_b"]]
    in_specs = [pl.BlockSpec((1, L, D), lambda b: (b, 0, 0))]
    for arr in pa:
        in_specs.append(pl.BlockSpec(arr.shape, lambda b, nd=arr.ndim: (0,) * nd))
    return pl.pallas_call(
        kernel,
        out_shape=jax.ShapeDtypeStruct((B, L, D), out_dtype),
        grid=(B,),
        in_specs=in_specs,
        out_specs=pl.BlockSpec((1, L, D), lambda b: (b, 0, 0)),
        scratch_shapes=[pltpu.VMEM((L + 2 * pad, D), jnp.float32)],
        compiler_params=pltpu.CompilerParams(
            dimension_semantics=("parallel",),
            vmem_limit_bytes=_vmem_limit_bytes()),
    )(x, *pa)


def conformer_encoder_layer(x, pos_embs, params, *, nhead, kernel_size,
                            return_attn=False, stream_dtype=jnp.bfloat16):
    """Forward of speechbrain ConformerEncoderLayer (RelPosMHAXL); masks / dropout disabled.

    stream_dtype: dtype of the inter-kernel activations (residual stream); bf16 halves HBM
    traffic between the 4 passes, compute/LN/softmax stay f32.  Use jnp.float32 for strict
    parity tests.
    """
    B, L, D = x.shape
    dh = D // nhead
    BL = B * L
    p = params

    xf = x.reshape(BL, D)

    # x = x + 0.5 * ffn_module1(x)
    x1 = _call_rowwise(ffn_half_kernel,
                       [xf, p["ffn1_ln_g"], p["ffn1_ln_b"],
                        p["ffn1_w1"], p["ffn1_b1"], p["ffn1_w2"], p["ffn1_b2"]],
                       [True] + [False] * 6, D, stream_dtype)

    # relative-position projection (linear_pos, no bias); pad the position axis to Pp (multiple
    # of 128) with one extra leading zero row (used by the in-kernel relative shift), then lay
    # out per-head transposed: (H, dh, Pp).
    P = pos_embs.shape[1]
    assert P == 2 * L - 1, "pos_embs must have 2*L-1 positions (RelPosEncXL layout)"
    Pp = _round_up(2 * L, 128)
    pos_padded = jnp.pad(pos_embs[0].astype(jnp.float32), ((1, Pp - 2 * L), (0, 0)))
    p_proj = pl.pallas_call(
        matmul_kernel,
        out_shape=jax.ShapeDtypeStruct((Pp, D), p["mha_pos_wT"].dtype),
        in_specs=[pl.BlockSpec(memory_space=pltpu.MemorySpace.VMEM)] * 2,
        out_specs=pl.BlockSpec(memory_space=pltpu.MemorySpace.VMEM),
    )(pos_padded, p["mha_pos_wT"])
    p_t_h = p_proj.reshape(Pp, nhead, dh).transpose(1, 2, 0)   # small one-off relayout

    # skip = x;  x = norm1(x);  x = mha(x) + skip       (all fused in one kernel)
    x2, attn = run_attention_fused(x1.reshape(B, L, D), p, p_t_h,
                                   return_attn=return_attn, out_dtype=stream_dtype)

    # x = x + convolution_module(x)
    x3 = run_conv_module(x2, p, kernel_size, stream_dtype)

    # x = norm2(x + 0.5 * ffn_module2(x))   (norm2 fused into the ffn2 kernel)
    out = _call_rowwise(ffn_half_ln_kernel,
                        [x3.reshape(BL, D), p["ffn2_ln_g"], p["ffn2_ln_b"],
                         p["ffn2_w1"], p["ffn2_b1"], p["ffn2_w2"], p["ffn2_b2"],
                         p["norm2_g"], p["norm2_b"]],
                        [True] + [False] * 8, D, jnp.float32)

    return out.reshape(B, L, D), attn


# ----------------------------- parameters -----------------------------

def init_params(key, d_model, d_ffn, nhead, kernel_size):
    """Raw (PyTorch-like layout) parameters, all f32."""
    D, F, H, K = d_model, d_ffn, nhead, kernel_size
    dh = D // H
    keys = iter(jax.random.split(key, 32))

    def w(shape, fan_in):
        return jax.random.normal(next(keys), shape, jnp.float32) / jnp.sqrt(float(fan_in))

    def vec(shape, s=0.02):
        return s * jax.random.normal(next(keys), shape, jnp.float32)

    p = {}
    # ffn_module1 / ffn_module2 : LayerNorm + Linear(D,F) + Swish + Linear(F,D)
    for name in ("ffn1", "ffn2"):
        p[f"{name}_ln_g"] = jnp.ones((1, D), jnp.float32)
        p[f"{name}_ln_b"] = jnp.zeros((1, D), jnp.float32)
        p[f"{name}_w1"] = w((D, F), D)
        p[f"{name}_b1"] = vec((1, F))
        p[f"{name}_w2"] = w((F, D), F)
        p[f"{name}_b2"] = vec((1, D))
    # norm1 / norm2
    p["norm1_g"] = jnp.ones((1, D), jnp.float32)
    p["norm1_b"] = jnp.zeros((1, D), jnp.float32)
    p["norm2_g"] = jnp.ones((1, D), jnp.float32)
    p["norm2_b"] = jnp.zeros((1, D), jnp.float32)
    # RelPosMHAXL.  NOTE: in_proj columns here are laid out [Q | K | V] (head-major inside each);
    # when importing PyTorch weights, permute from the interleaved layout.  in_proj has no bias.
    p["mha_in_wT"] = w((D, 3 * D), D)
    p["mha_pos_wT"] = w((D, D), D)                        # linear_pos (no bias)
    p["mha_pos_bias_u"] = vec((H, dh), 0.1)
    p["mha_pos_bias_v"] = vec((H, dh), 0.1)
    p["mha_out_wT"] = w((D, D), D)
    p["mha_out_b"] = vec((1, D))
    # ConvolutionModule
    p["conv_ln_g"] = jnp.ones((1, D), jnp.float32)
    p["conv_ln_b"] = jnp.zeros((1, D), jnp.float32)
    p["conv_bottleneck_wT"] = w((D, 2 * D), D)            # pointwise Conv1d(D, 2D, 1) as matmul
    p["conv_bottleneck_b"] = vec((1, 2 * D))
    p["conv_dw_w"] = w((K, D), K)                          # depthwise weight, [tap, channel]
    p["conv_dw_b"] = vec((1, D))
    p["conv_after_ln_g"] = jnp.ones((1, D), jnp.float32)
    p["conv_after_ln_b"] = jnp.zeros((1, D), jnp.float32)
    p["conv_after_wT"] = w((D, D), D)
    p["conv_after_b"] = vec((1, D))
    return p


def prepare_params(raw, *, nhead, d_model, matmul_dtype=jnp.bfloat16):
    """Kernel-ready layouts: bf16 MXU weights, per-head attention weight slabs, softmax scale
    folded into W_q / pos_bias_u / pos_bias_v.  LN params, biases and depthwise taps stay f32."""
    D, H = d_model, nhead
    dh = D // H
    # TODO(synk): verify against speechbrain RelPosMHAXL whether scale uses embed_dim or head_dim.
    scale = 1.0 / math.sqrt(D)
    p = dict(raw)

    for k in ("ffn1_w1", "ffn1_w2", "ffn2_w1", "ffn2_w2",
              "conv_bottleneck_wT", "conv_after_wT", "mha_pos_wT"):
        p[k] = raw[k].astype(matmul_dtype)

    # in_proj (D, 3D) with [Q|K|V] head-major columns -> per-head (H, D, 3*dh); fold scale into Q.
    w_qkv = raw["mha_in_wT"].reshape(D, 3, H, dh).transpose(2, 0, 1, 3).reshape(H, D, 3 * dh)
    w_qkv = w_qkv.at[:, :, :dh].multiply(scale)
    p["mha_qkv_w_h"] = w_qkv.astype(matmul_dtype)

    p["mha_u_scaled"] = (raw["mha_pos_bias_u"] * scale).reshape(H, 1, dh).astype(jnp.float32)
    p["mha_v_scaled"] = (raw["mha_pos_bias_v"] * scale).reshape(H, 1, dh).astype(jnp.float32)

    # out_proj (D, D) -> per-head rows (H, dh, D)
    p["mha_out_w_h"] = raw["mha_out_wT"].reshape(H, dh, D).astype(matmul_dtype)

    for k in ("mha_in_wT", "mha_pos_bias_u", "mha_pos_bias_v", "mha_out_wT"):
        p.pop(k, None)
    return p


if __name__ == "__main__":
    B, L, D, F, H, K = 2, 8, 64, 128, 4, 7   # batch, seq, d_model, d_ffn, nhead, kernel_size
    key = jax.random.PRNGKey(0)
    k_x, k_pos, k_p = jax.random.split(key, 3)

    x = jax.random.normal(k_x, (B, L, D), jnp.float32)
    pos_embs = jax.random.normal(k_pos, (1, 2 * L - 1, D), jnp.float32)   # as in RelPosEncXL
    params = prepare_params(init_params(k_p, D, F, H, K), nhead=H, d_model=D)

    fwd = jax.jit(functools.partial(conformer_encoder_layer, nhead=H, kernel_size=K,
                                    return_attn=True))
    out, attn = fwd(x, pos_embs, params)
    jax.block_until_ready((out, attn))

    assert out.shape == (B, L, D)
    assert attn.shape == (B, H, L, L)
    assert bool(jnp.all(jnp.isfinite(out))) and bool(jnp.all(jnp.isfinite(attn)))
    print("KERNEL_OK")
</pallas_src>

<mosaic_0001>
module attributes {stable_mosaic.version = 11 : i64} {
  func.func @matmul_kernel(%arg0: memref<128x64xf32, #tpu.memory_space<vmem>>, %arg1: memref<64x64xbf16, #tpu.memory_space<vmem>>, %arg2: memref<128x64xbf16, #tpu.memory_space<vmem>>) attributes {dimension_semantics = [], scalar_prefetch = 0 : i64, scratch_operands = 0 : i64, tpu.core_type = #tpu.core_type<tc>} {
    %c0 = arith.constant 0 : index
    %c0_0 = arith.constant 0 : index
    %0 = vector.load %arg0[%c0, %c0_0] : memref<128x64xf32, #tpu.memory_space<vmem>>, vector<128x64xf32>
    %1 = arith.truncf %0 : vector<128x64xf32> to vector<128x64xbf16>
    %c0_1 = arith.constant 0 : index
    %c0_2 = arith.constant 0 : index
    %2 = vector.load %arg1[%c0_1, %c0_2] : memref<64x64xbf16, #tpu.memory_space<vmem>>, vector<64x64xbf16>
    %cst = arith.constant dense<0.000000e+00> : vector<128x64xf32>
    %3 = tpu.matmul %1, %2, %cst {dimension_numbers = #tpu.dot_dimension_numbers<[1], [0], [0], [1], [0, 0, 1, 1], [], []>} : vector<128x64xbf16>, vector<64x64xbf16>, vector<128x64xf32> -> vector<128x64xf32>
    %4 = arith.truncf %3 : vector<128x64xf32> to vector<128x64xbf16>
    %c0_3 = arith.constant 0 : index
    %c0_4 = arith.constant 0 : index
    %5 = vector.load %arg2[%c0_3, %c0_4] : memref<128x64xbf16, #tpu.memory_space<vmem>>, vector<128x64xbf16>
    tpu.vector_store %arg2[%c0_3, %c0_4], %4 {strides = array<i32>} : memref<128x64xbf16, #tpu.memory_space<vmem>>, vector<128x64xbf16>,
    return
  }
}

module attributes {stable_mosaic.version = 11 : i64} {
  func.func @ffn_half_kernel(%arg0: i32, %arg1: memref<16x64xf32, #tpu.memory_space<vmem>>, %arg2: memref<1x64xf32, #tpu.memory_space<vmem>>, %arg3: memref<1x64xf32, #tpu.memory_space<vmem>>, %arg4: memref<64x128xbf16, #tpu.memory_space<vmem>>, %arg5: memref<1x128xf32, #tpu.memory_space<vmem>>, %arg6: memref<128x64xbf16, #tpu.memory_space<vmem>>, %arg7: memref<1x64xf32, #tpu.memory_space<vmem>>, %arg8: memref<16x64xbf16, #tpu.memory_space<vmem>>) attributes {dimension_semantics = [#tpu.dimension_semantics<parallel>], iteration_bounds = array<i64: 1>, scalar_prefetch = 0 : i64, scratch_operands = 0 : i64, tpu.core_type = #tpu.core_type<tc>, window_params = [{transform_indices = @transform_0, window_bounds = array<i64: 16, 64>}, {pipeline_mode = #tpu.pipeline_mode<synchronous>, transform_indices = @transform_1, window_bounds = array<i64: 1, 64>}, {pipeline_mode = #tpu.pipeline_mode<synchronous>, transform_indices = @transform_2, window_bounds = array<i64: 1, 64>}, {pipeline_mode = #tpu.pipeline_mode<synchronous>, transform_indices = @transform_3, window_bounds = array<i64: 64, 128>}, {pipeline_mode = #tpu.pipeline_mode<synchronous>, transform_indices = @transform_4, window_bounds = array<i64: 1, 128>}, {pipeline_mode = #tpu.pipeline_mode<synchronous>, transform_indices = @transform_5, window_bounds = array<i64: 128, 64>}, {pipeline_mode = #tpu.pipeline_mode<synchronous>, transform_indices = @transform_6, window_bounds = array<i64: 1, 64>}, {transform_indices = @transform_7, window_bounds = array<i64: 16, 64>}]} {
    %c0 = arith.constant 0 : index
    %c0_0 = arith.constant 0 : index
    %0 = vector.load %arg1[%c0, %c0_0] : memref<16x64xf32, #tpu.memory_space<vmem>>, vector<16x64xf32>
    %c0_1 = arith.constant 0 : index
    %c0_2 = arith.constant 0 : index
    %1 = vector.load %arg2[%c0_1, %c0_2] : memref<1x64xf32, #tpu.memory_space<vmem>>, vector<1x64xf32>
    %c0_3 = arith.constant 0 : index
    %c0_4 = arith.constant 0 : index
    %2 = vector.load %arg3[%c0_3, %c0_4] : memref<1x64xf32, #tpu.memory_space<vmem>>, vector<1x64xf32>
    %cst = arith.constant dense<0.000000e+00> : vector<16xf32>
    %3 = vector.multi_reduction <add>, %0, %cst [1] : vector<16x64xf32> to vector<16xf32>
    %4 = vector.shape_cast %3 : vector<16xf32> to vector<16x1xf32>
    %cst_5 = arith.constant 6.400000e+01 : f32
    %5 = vector.broadcast %cst_5 : f32 to vector<16x1xf32>
    %6 = arith.divf %4, %5 : vector<16x1xf32>
    %7 = vector.broadcast %6 : vector<16x1xf32> to vector<16x64xf32>
    %8 = arith.subf %0, %7 : vector<16x64xf32>
    %9 = arith.mulf %8, %8 : vector<16x64xf32>
    %cst_6 = arith.constant dense<0.000000e+00> : vector<16xf32>
    %10 = vector.multi_reduction <add>, %9, %cst_6 [1] : vector<16x64xf32> to vector<16xf32>
    %11 = vector.shape_cast %10 : vector<16xf32> to vector<16x1xf32>
    %cst_7 = arith.constant 6.400000e+01 : f32
    %12 = vector.broadcast %cst_7 : f32 to vector<16x1xf32>
    %13 = arith.divf %11, %12 : vector<16x1xf32>
    %14 = vector.broadcast %6 : vector<16x1xf32> to vector<16x64xf32>
    %15 = arith.subf %0, %14 : vector<16x64xf32>
    %cst_8 = arith.constant 9.99999974E-6 : f32
    %16 = vector.broadcast %cst_8 : f32 to vector<16x1xf32>
    %17 = arith.addf %13, %16 : vector<16x1xf32>
    %18 = math.rsqrt %17 : vector<16x1xf32>
    %19 = vector.broadcast %18 : vector<16x1xf32> to vector<16x64xf32>
    %20 = arith.mulf %15, %19 : vector<16x64xf32>
    %21 = vector.broadcast %1 : vector<1x64xf32> to vector<16x64xf32>
    %22 = arith.mulf %20, %21 : vector<16x64xf32>
    %23 = vector.broadcast %2 : vector<1x64xf32> to vector<16x64xf32>
    %24 = arith.addf %22, %23 : vector<16x64xf32>
    %25 = arith.truncf %24 : vector<16x64xf32> to vector<16x64xbf16>
    %c0_9 = arith.constant 0 : index
    %c0_10 = arith.constant 0 : index
    %26 = vector.load %arg4[%c0_9, %c0_10] : memref<64x128xbf16, #tpu.memory_space<vmem>>, vector<64x128xbf16>
    %cst_11 = arith.constant dense<0.000000e+00> : vector<16x128xf32>
    %27 = tpu.matmul %25, %26, %cst_11 {dimension_numbers = #tpu.dot_dimension_numbers<[1], [0], [0], [1], [0, 0, 1, 1], [], []>} : vector<16x64xbf16>, vector<64x128xbf16>, vector<16x128xf32> -> vector<16x128xf32>
    %c0_12 = arith.constant 0 : index
    %c0_13 = arith.constant 0 : index
    %28 = vector.load %arg5[%c0_12, %c0_13] : memref<1x128xf32, #tpu.memory_space<vmem>>, vector<1x128xf32>
    %29 = vector.broadcast %28 : vector<1x128xf32> to vector<16x128xf32>
    %30 = arith.addf %27, %29 : vector<16x128xf32>
    %cst_14 = arith.constant 0.000000e+00 : f32
    %31 = vector.broadcast %cst_14 : f32 to vector<16x128xf32>
    %32 = arith.subf %31, %30 : vector<16x128xf32>
    %33 = math.exp %32 : vector<16x128xf32>
    %cst_15 = arith.constant 1.000000e+00 : f32
    %34 = vector.broadcast %cst_15 : f32 to vector<16x128xf32>
    %35 = arith.addf %34, %33 : vector<16x128xf32>
    %cst_16 = arith.constant 1.000000e+00 : f32
    %36 = vector.broadcast %cst_16 : f32 to vector<16x128xf32>
    %37 = arith.divf %36, %35 : vector<16x128xf32>
    %38 = arith.mulf %30, %37 : vector<16x128xf32>
    %39 = arith.truncf %38 : vector<16x128xf32> to vector<16x128xbf16>
    %c0_17 = arith.constant 0 : index
    %c0_18 = arith.constant 0 : index
    %40 = vector.load %arg6[%c0_17, %c0_18] : memref<128x64xbf16, #tpu.memory_space<vmem>>, vector<128x64xbf16>
    %cst_19 = arith.constant dense<0.000000e+00> : vector<16x64xf32>
    %41 = tpu.matmul %39, %40, %cst_19 {dimension_numbers = #tpu.dot_dimension_numbers<[1], [0], [0], [1], [0, 0, 1, 1], [], []>} : vector<16x128xbf16>, vector<128x64xbf16>, vector<16x64xf32> -> vector<16x64xf32>
    %c0_20 = arith.constant 0 : index
    %c0_21 = arith.constant 0 : index
    %42 = vector.load %arg7[%c0_20, %c0_21] : memref<1x64xf32, #tpu.memory_space<vmem>>, vector<1x64xf32>
    %43 = vector.broadcast %42 : vector<1x64xf32> to vector<16x64xf32>
    %44 = arith.addf %41, %43 : vector<16x64xf32>
    %cst_22 = arith.constant 5.000000e-01 : f32
    %45 = vector.broadcast %cst_22 : f32 to vector<16x64xf32>
    %46 = arith.mulf %45, %44 : vector<16x64xf32>
    %47 = arith.addf %0, %46 : vector<16x64xf32>
    %48 = arith.truncf %47 : vector<16x64xf32> to vector<16x64xbf16>
    %c0_23 = arith.constant 0 : index
    %c0_24 = arith.constant 0 : index
    %49 = vector.load %arg8[%c0_23, %c0_24] : memref<16x64xbf16, #tpu.memory_space<vmem>>, vector<16x64xbf16>
    tpu.vector_store %arg8[%c0_23, %c0_24], %48 {strides = array<i32>} : memref<16x64xbf16, #tpu.memory_space<vmem>>, vector<16x64xbf16>,
    return
  }
  func.func @transform_0(%arg0: i32) -> (i32, i32) {
    %c0_i32 = arith.constant 0 : i32
    %c0_i32_0 = arith.constant 0 : i32
    return %arg0, %c0_i32 : i32, i32
  }
  func.func @transform_1(%arg0: i32) -> (i32, i32) {
    %c0_i32 = arith.constant 0 : i32
    %c0_i32_0 = arith.constant 0 : i32
    %c0_i32_1 = arith.constant 0 : i32
    return %c0_i32, %c0_i32_0 : i32, i32
  }
  func.func @transform_2(%arg0: i32) -> (i32, i32) {
    %c0_i32 = arith.constant 0 : i32
    %c0_i32_0 = arith.constant 0 : i32
    %c0_i32_1 = arith.constant 0 : i32
    return %c0_i32, %c0_i32_0 : i32, i32
  }
  func.func @transform_3(%arg0: i32) -> (i32, i32) {
    %c0_i32 = arith.constant 0 : i32
    %c0_i32_0 = arith.constant 0 : i32
    %c0_i32_1 = arith.constant 0 : i32
    return %c0_i32, %c0_i32_0 : i32, i32
  }
  func.func @transform_4(%arg0: i32) -> (i32, i32) {
    %c0_i32 = arith.constant 0 : i32
    %c0_i32_0 = arith.constant 0 : i32
    %c0_i32_1 = arith.constant 0 : i32
    return %c0_i32, %c0_i32_0 : i32, i32
  }
  func.func @transform_5(%arg0: i32) -> (i32, i32) {
    %c0_i32 = arith.constant 0 : i32
    %c0_i32_0 = arith.constant 0 : i32
    %c0_i32_1 = arith.constant 0 : i32
    return %c0_i32, %c0_i32_0 : i32, i32
  }
  func.func @transform_6(%arg0: i32) -> (i32, i32) {
    %c0_i32 = arith.constant 0 : i32
    %c0_i32_0 = arith.constant 0 : i32
    %c0_i32_1 = arith.constant 0 : i32
    return %c0_i32, %c0_i32_0 : i32, i32
  }
  func.func @transform_7(%arg0: i32) -> (i32, i32) {
    %c0_i32 = arith.constant 0 : i32
    %c0_i32_0 = arith.constant 0 : i32
    return %arg0, %c0_i32 : i32, i32
  }
}

module attributes {stable_mosaic.version = 11 : i64} {
  func.func @attn_fused_kernel(%arg0: i32, %arg1: i32, %arg2: memref<1x8x64xbf16, #tpu.memory_space<vmem>>, %arg3: memref<1x64xf32, #tpu.memory_space<vmem>>, %arg4: memref<1x64xf32, #tpu.memory_space<vmem>>, %arg5: memref<1x64x48xbf16, #tpu.memory_space<vmem>>, %arg6: memref<1x1x16xf32, #tpu.memory_space<vmem>>, %arg7: memref<1x1x16xf32, #tpu.memory_space<vmem>>, %arg8: memref<1x16x128xbf16, #tpu.memory_space<vmem>>, %arg9: memref<1x16x64xbf16, #tpu.memory_space<vmem>>, %arg10: memref<1x64xf32, #tpu.memory_space<vmem>>, %arg11: memref<1x8x64xbf16, #tpu.memory_space<vmem>>, %arg12: memref<1x1x8x8xf32, #tpu.memory_space<vmem>>, %arg13: memref<8x64xf32, #tpu.memory_space<vmem>>) attributes {dimension_semantics = [#tpu.dimension_semantics<parallel>, #tpu.dimension_semantics<arbitrary>], iteration_bounds = array<i64: 2, 4>, scalar_prefetch = 0 : i64, scratch_operands = 1 : i64, tpu.core_type = #tpu.core_type<tc>, window_params = [{transform_indices = @transform_0, window_bounds = array<i64: 1, 8, 64>}, {pipeline_mode = #tpu.pipeline_mode<synchronous>, transform_indices = @transform_1, window_bounds = array<i64: 1, 64>}, {pipeline_mode = #tpu.pipeline_mode<synchronous>, transform_indices = @transform_2, window_bounds = array<i64: 1, 64>}, {transform_indices = @transform_3, window_bounds = array<i64: 1, 64, 48>}, {transform_indices = @transform_4, window_bounds = array<i64: 1, 1, 16>}, {transform_indices = @transform_5, window_bounds = array<i64: 1, 1, 16>}, {transform_indices = @transform_6, window_bounds = array<i64: 1, 16, 128>}, {transform_indices = @transform_7, window_bounds = array<i64: 1, 16, 64>}, {pipeline_mode = #tpu.pipeline_mode<synchronous>, transform_indices = @transform_8, window_bounds = array<i64: 1, 64>}, {transform_indices = @transform_9, window_bounds = array<i64: 1, 8, 64>}, {transform_indices = @transform_10, window_bounds = array<i64: 1, 1, 8, 8>}]} {
    %c0 = arith.constant 0 : index
    %c0_0 = arith.constant 0 : index
    %c0_1 = arith.constant 0 : index
    %0 = vector.load %arg2[%c0, %c0_0, %c0_1] : memref<1x8x64xbf16, #tpu.memory_space<vmem>>, vector<1x8x64xbf16>
    %1 = vector.shape_cast %0 : vector<1x8x64xbf16> to vector<8x64xbf16>
    %2 = arith.extf %1 : vector<8x64xbf16> to vector<8x64xf32>
    %c0_i32 = arith.constant 0 : i32
    %3 = arith.cmpi eq, %arg1, %c0_i32 : i32
    %4 = arith.extui %3 : i1 to i32
    %c0_i32_2 = arith.constant 0 : i32
    %5 = arith.cmpi ne, %4, %c0_i32_2 : i32
    scf.if %5 {
      %c0_42 = arith.constant 0 : index
      %c0_43 = arith.constant 0 : index
      %80 = vector.load %arg10[%c0_42, %c0_43] : memref<1x64xf32, #tpu.memory_space<vmem>>, vector<1x64xf32>
      %81 = vector.broadcast %80 : vector<1x64xf32> to vector<8x64xf32>
      %82 = arith.addf %2, %81 : vector<8x64xf32>
      %c0_44 = arith.constant 0 : index
      %c0_45 = arith.constant 0 : index
      %83 = vector.load %arg13[%c0_44, %c0_45] : memref<8x64xf32, #tpu.memory_space<vmem>>, vector<8x64xf32>
      tpu.vector_store %arg13[%c0_44, %c0_45], %82 {strides = array<i32>} : memref<8x64xf32, #tpu.memory_space<vmem>>, vector<8x64xf32>,
    } else {
    }
    %c0_3 = arith.constant 0 : index
    %c0_4 = arith.constant 0 : index
    %6 = vector.load %arg3[%c0_3, %c0_4] : memref<1x64xf32, #tpu.memory_space<vmem>>, vector<1x64xf32>
    %c0_5 = arith.constant 0 : index
    %c0_6 = arith.constant 0 : index
    %7 = vector.load %arg4[%c0_5, %c0_6] : memref<1x64xf32, #tpu.memory_space<vmem>>, vector<1x64xf32>
    %cst = arith.constant dense<0.000000e+00> : vector<8xf32>
    %8 = vector.multi_reduction <add>, %2, %cst [1] : vector<8x64xf32> to vector<8xf32>
    %9 = vector.shape_cast %8 : vector<8xf32> to vector<8x1xf32>
    %cst_7 = arith.constant 6.400000e+01 : f32
    %10 = vector.broadcast %cst_7 : f32 to vector<8x1xf32>
    %11 = arith.divf %9, %10 : vector<8x1xf32>
    %12 = vector.broadcast %11 : vector<8x1xf32> to vector<8x64xf32>
    %13 = arith.subf %2, %12 : vector<8x64xf32>
    %14 = arith.mulf %13, %13 : vector<8x64xf32>
    %cst_8 = arith.constant dense<0.000000e+00> : vector<8xf32>
    %15 = vector.multi_reduction <add>, %14, %cst_8 [1] : vector<8x64xf32> to vector<8xf32>
    %16 = vector.shape_cast %15 : vector<8xf32> to vector<8x1xf32>
    %cst_9 = arith.constant 6.400000e+01 : f32
    %17 = vector.broadcast %cst_9 : f32 to vector<8x1xf32>
    %18 = arith.divf %16, %17 : vector<8x1xf32>
    %19 = vector.broadcast %11 : vector<8x1xf32> to vector<8x64xf32>
    %20 = arith.subf %2, %19 : vector<8x64xf32>
    %cst_10 = arith.constant 9.99999974E-6 : f32
    %21 = vector.broadcast %cst_10 : f32 to vector<8x1xf32>
    %22 = arith.addf %18, %21 : vector<8x1xf32>
    %23 = math.rsqrt %22 : vector<8x1xf32>
    %24 = vector.broadcast %23 : vector<8x1xf32> to vector<8x64xf32>
    %25 = arith.mulf %20, %24 : vector<8x64xf32>
    %26 = vector.broadcast %6 : vector<1x64xf32> to vector<8x64xf32>
    %27 = arith.mulf %25, %26 : vector<8x64xf32>
    %28 = vector.broadcast %7 : vector<1x64xf32> to vector<8x64xf32>
    %29 = arith.addf %27, %28 : vector<8x64xf32>
    %30 = arith.truncf %29 : vector<8x64xf32> to vector<8x64xbf16>
    %c0_11 = arith.constant 0 : index
    %c0_12 = arith.constant 0 : index
    %c0_13 = arith.constant 0 : index
    %31 = vector.load %arg5[%c0_11, %c0_12, %c0_13] : memref<1x64x48xbf16, #tpu.memory_space<vmem>>, vector<1x64x48xbf16>
    %32 = vector.shape_cast %31 : vector<1x64x48xbf16> to vector<64x48xbf16>
    %cst_14 = arith.constant dense<0.000000e+00> : vector<8x48xf32>
    %33 = tpu.matmul %30, %32, %cst_14 {dimension_numbers = #tpu.dot_dimension_numbers<[1], [0], [0], [1], [0, 0, 1, 1], [], []>} : vector<8x64xbf16>, vector<64x48xbf16>, vector<8x48xf32> -> vector<8x48xf32>
    %34 = vector.extract_strided_slice %33 {offsets = [0, 0], sizes = [8, 16], strides = [1, 1]} : vector<8x48xf32> to vector<8x16xf32>
    %35 = vector.extract_strided_slice %33 {offsets = [0, 16], sizes = [8, 16], strides = [1, 1]} : vector<8x48xf32> to vector<8x16xf32>
    %36 = vector.extract_strided_slice %33 {offsets = [0, 32], sizes = [8, 16], strides = [1, 1]} : vector<8x48xf32> to vector<8x16xf32>
    %c0_15 = arith.constant 0 : index
    %c0_16 = arith.constant 0 : index
    %c0_17 = arith.constant 0 : index
    %37 = vector.load %arg6[%c0_15, %c0_16, %c0_17] : memref<1x1x16xf32, #tpu.memory_space<vmem>>, vector<1x1x16xf32>
    %38 = vector.shape_cast %37 : vector<1x1x16xf32> to vector<1x16xf32>
    %39 = vector.broadcast %38 : vector<1x16xf32> to vector<8x16xf32>
    %40 = arith.addf %34, %39 : vector<8x16xf32>
    %41 = arith.truncf %40 : vector<8x16xf32> to vector<8x16xbf16>
    %c0_18 = arith.constant 0 : index
    %c0_19 = arith.constant 0 : index
    %c0_20 = arith.constant 0 : index
    %42 = vector.load %arg7[%c0_18, %c0_19, %c0_20] : memref<1x1x16xf32, #tpu.memory_space<vmem>>, vector<1x1x16xf32>
    %43 = vector.shape_cast %42 : vector<1x1x16xf32> to vector<1x16xf32>
    %44 = vector.broadcast %43 : vector<1x16xf32> to vector<8x16xf32>
    %45 = arith.addf %34, %44 : vector<8x16xf32>
    %46 = arith.truncf %45 : vector<8x16xf32> to vector<8x16xbf16>
    %47 = arith.truncf %35 : vector<8x16xf32> to vector<8x16xbf16>
    %cst_21 = arith.constant dense<0.000000e+00> : vector<8x8xf32>
    %48 = tpu.matmul %41, %47, %cst_21 {dimension_numbers = #tpu.dot_dimension_numbers<[1], [1], [0], [0], [0, 0, 1, 0], [], []>} : vector<8x16xbf16>, vector<8x16xbf16>, vector<8x8xf32> -> vector<8x8xf32>
    %c0_22 = arith.constant 0 : index
    %c0_23 = arith.constant 0 : index
    %c0_24 = arith.constant 0 : index
    %49 = vector.load %arg8[%c0_22, %c0_23, %c0_24] : memref<1x16x128xbf16, #tpu.memory_space<vmem>>, vector<1x16x128xbf16>
    %50 = vector.shape_cast %49 : vector<1x16x128xbf16> to vector<16x128xbf16>
    %cst_25 = arith.constant dense<0.000000e+00> : vector<8x128xf32>
    %51 = tpu.matmul %46, %50, %cst_25 {dimension_numbers = #tpu.dot_dimension_numbers<[1], [0], [0], [1], [0, 0, 1, 1], [], []>} : vector<8x16xbf16>, vector<16x128xbf16>, vector<8x128xf32> -> vector<8x128xf32>
    %c120_i32 = arith.constant 120 : i32
    %52 = tpu.dynamic_rotate %51 by %c120_i32 dim 1 {stride = 1 : si32, stride_dimension = 0 : si32} : vector<8x128xf32>, i32 -> vector<8x128xf32>
    %53 = vector.extract_strided_slice %52 {offsets = [0, 0], sizes = [8, 8], strides = [1, 1]} : vector<8x128xf32> to vector<8x8xf32>
    %54 = arith.addf %48, %53 : vector<8x8xf32>
    %cst_26 = arith.constant dense<0xFF800000> : vector<8xf32>
    %55 = vector.multi_reduction <maximumf>, %54, %cst_26 [1] : vector<8x8xf32> to vector<8xf32>
    %56 = vector.shape_cast %55 : vector<8xf32> to vector<8x1xf32>
    %57 = vector.broadcast %56 : vector<8x1xf32> to vector<8x8xf32>
    %58 = arith.subf %54, %57 : vector<8x8xf32>
    %59 = math.exp %58 : vector<8x8xf32>
    %cst_27 = arith.constant dense<0.000000e+00> : vector<8xf32>
    %60 = vector.multi_reduction <add>, %59, %cst_27 [1] : vector<8x8xf32> to vector<8xf32>
    %61 = vector.shape_cast %60 : vector<8xf32> to vector<8x1xf32>
    %62 = vector.broadcast %61 : vector<8x1xf32> to vector<8x8xf32>
    %63 = arith.divf %59, %62 : vector<8x8xf32>
    %c0_28 = arith.constant 0 : index
    %c0_29 = arith.constant 0 : index
    %c0_30 = arith.constant 0 : index
    %c0_31 = arith.constant 0 : index
    %64 = vector.load %arg12[%c0_28, %c0_29, %c0_30, %c0_31] : memref<1x1x8x8xf32, #tpu.memory_space<vmem>>, vector<1x1x8x8xf32>
    %65 = vector.shape_cast %64 : vector<1x1x8x8xf32> to vector<8x8xf32>
    %66 = vector.shape_cast %63 : vector<8x8xf32> to vector<1x1x8x8xf32>
    tpu.vector_store %arg12[%c0_28, %c0_29, %c0_30, %c0_31], %66 {strides = array<i32>} : memref<1x1x8x8xf32, #tpu.memory_space<vmem>>, vector<1x1x8x8xf32>,
    %67 = arith.truncf %63 : vector<8x8xf32> to vector<8x8xbf16>
    %68 = arith.truncf %36 : vector<8x16xf32> to vector<8x16xbf16>
    %cst_32 = arith.constant dense<0.000000e+00> : vector<8x16xf32>
    %69 = tpu.matmul %67, %68, %cst_32 {dimension_numbers = #tpu.dot_dimension_numbers<[1], [0], [0], [1], [0, 0, 1, 1], [], []>} : vector<8x8xbf16>, vector<8x16xbf16>, vector<8x16xf32> -> vector<8x16xf32>
    %c0_33 = arith.constant 0 : index
    %c0_34 = arith.constant 0 : index
    %70 = vector.load %arg13[%c0_33, %c0_34] : memref<8x64xf32, #tpu.memory_space<vmem>>, vector<8x64xf32>
    %71 = arith.truncf %69 : vector<8x16xf32> to vector<8x16xbf16>
    %c0_35 = arith.constant 0 : index
    %c0_36 = arith.constant 0 : index
    %c0_37 = arith.constant 0 : index
    %72 = vector.load %arg9[%c0_35, %c0_36, %c0_37] : memref<1x16x64xbf16, #tpu.memory_space<vmem>>, vector<1x16x64xbf16>
    %73 = vector.shape_cast %72 : vector<1x16x64xbf16> to vector<16x64xbf16>
    %cst_38 = arith.constant dense<0.000000e+00> : vector<8x64xf32>
    %74 = tpu.matmul %71, %73, %cst_38 {dimension_numbers = #tpu.dot_dimension_numbers<[1], [0], [0], [1], [0, 0, 1, 1], [], []>} : vector<8x16xbf16>, vector<16x64xbf16>, vector<8x64xf32> -> vector<8x64xf32>
    %75 = arith.addf %70, %74 : vector<8x64xf32>
    %c0_39 = arith.constant 0 : index
    %c0_40 = arith.constant 0 : index
    %76 = vector.load %arg13[%c0_39, %c0_40] : memref<8x64xf32, #tpu.memory_space<vmem>>, vector<8x64xf32>
    tpu.vector_store %arg13[%c0_39, %c0_40], %75 {strides = array<i32>} : memref<8x64xf32, #tpu.memory_space<vmem>>, vector<8x64xf32>,
    %c3_i32 = arith.constant 3 : i32
    %77 = arith.cmpi eq, %arg1, %c3_i32 : i32
    %78 = arith.extui %77 : i1 to i32
    %c0_i32_41 = arith.constant 0 : i32
    %79 = arith.cmpi ne, %78, %c0_i32_41 : i32
    scf.if %79 {
      %c0_42 = arith.constant 0 : index
      %c0_43 = arith.constant 0 : index
      %80 = vector.load %arg13[%c0_42, %c0_43] : memref<8x64xf32, #tpu.memory_space<vmem>>, vector<8x64xf32>
      %81 = arith.truncf %80 : vector<8x64xf32> to vector<8x64xbf16>
      %c0_44 = arith.constant 0 : index
      %c0_45 = arith.constant 0 : index
      %c0_46 = arith.constant 0 : index
      %82 = vector.load %arg11[%c0_44, %c0_45, %c0_46] : memref<1x8x64xbf16, #tpu.memory_space<vmem>>, vector<1x8x64xbf16>
      %83 = vector.shape_cast %82 : vector<1x8x64xbf16> to vector<8x64xbf16>
      %84 = vector.shape_cast %81 : vector<8x64xbf16> to vector<1x8x64xbf16>
      tpu.vector_store %arg11[%c0_44, %c0_45, %c0_46], %84 {strides = array<i32>} : memref<1x8x64xbf16, #tpu.memory_space<vmem>>, vector<1x8x64xbf16>,
    } else {
    }
    return
  }
  func.func @transform_0(%arg0: i32, %arg1: i32) -> (i32, i32, i32) {
    %c0_i32 = arith.constant 0 : i32
    %c0_i32_0 = arith.constant 0 : i32
    %c0_i32_1 = arith.constant 0 : i32
    return %arg0, %c0_i32, %c0_i32_0 : i32, i32, i32
  }
  func.func @transform_1(%arg0: i32, %arg1: i32) -> (i32, i32) {
    %c0_i32 = arith.constant 0 : i32
    %c0_i32_0 = arith.constant 0 : i32
    %c0_i32_1 = arith.constant 0 : i32
    return %c0_i32, %c0_i32_0 : i32, i32
  }
  func.func @transform_2(%arg0: i32, %arg1: i32) -> (i32, i32) {
    %c0_i32 = arith.constant 0 : i32
    %c0_i32_0 = arith.constant 0 : i32
    %c0_i32_1 = arith.constant 0 : i32
    return %c0_i32, %c0_i32_0 : i32, i32
  }
  func.func @transform_3(%arg0: i32, %arg1: i32) -> (i32, i32, i32) {
    %c0_i32 = arith.constant 0 : i32
    %c0_i32_0 = arith.constant 0 : i32
    %c0_i32_1 = arith.constant 0 : i32
    return %arg1, %c0_i32, %c0_i32_0 : i32, i32, i32
  }
  func.func @transform_4(%arg0: i32, %arg1: i32) -> (i32, i32, i32) {
    %c0_i32 = arith.constant 0 : i32
    %c0_i32_0 = arith.constant 0 : i32
    %c0_i32_1 = arith.constant 0 : i32
    return %arg1, %c0_i32, %c0_i32_0 : i32, i32, i32
  }
  func.func @transform_5(%arg0: i32, %arg1: i32) -> (i32, i32, i32) {
    %c0_i32 = arith.constant 0 : i32
    %c0_i32_0 = arith.constant 0 : i32
    %c0_i32_1 = arith.constant 0 : i32
    return %arg1, %c0_i32, %c0_i32_0 : i32, i32, i32
  }
  func.func @transform_6(%arg0: i32, %arg1: i32) -> (i32, i32, i32) {
    %c0_i32 = arith.constant 0 : i32
    %c0_i32_0 = arith.constant 0 : i32
    %c0_i32_1 = arith.constant 0 : i32
    return %arg1, %c0_i32, %c0_i32_0 : i32, i32, i32
  }
  func.func @transform_7(%arg0: i32, %arg1: i32) -> (i32, i32, i32) {
    %c0_i32 = arith.constant 0 : i32
    %c0_i32_0 = arith.constant 0 : i32
    %c0_i32_1 = arith.constant 0 : i32
    return %arg1, %c0_i32, %c0_i32_0 : i32, i32, i32
  }
  func.func @transform_8(%arg0: i32, %arg1: i32) -> (i32, i32) {
    %c0_i32 = arith.constant 0 : i32
    %c0_i32_0 = arith.constant 0 : i32
    %c0_i32_1 = arith.constant 0 : i32
    return %c0_i32, %c0_i32_0 : i32, i32
  }
  func.func @transform_9(%arg0: i32, %arg1: i32) -> (i32, i32, i32) {
    %c0_i32 = arith.constant 0 : i32
    %c0_i32_0 = arith.constant 0 : i32
    %c0_i32_1 = arith.constant 0 : i32
    return %arg0, %c0_i32, %c0_i32_0 : i32, i32, i32
  }
  func.func @transform_10(%arg0: i32, %arg1: i32) -> (i32, i32, i32, i32) {
    %c0_i32 = arith.constant 0 : i32
    %c0_i32_0 = arith.constant 0 : i32
    %c0_i32_1 = arith.constant 0 : i32
    return %arg0, %arg1, %c0_i32, %c0_i32_0 : i32, i32, i32, i32
  }
}

module attributes {stable_mosaic.version = 11 : i64} {
  func.func @conv_module_kernel(%arg0: i32, %arg1: memref<1x8x64xbf16, #tpu.memory_space<vmem>>, %arg2: memref<1x64xf32, #tpu.memory_space<vmem>>, %arg3: memref<1x64xf32, #tpu.memory_space<vmem>>, %arg4: memref<64x128xbf16, #tpu.memory_space<vmem>>, %arg5: memref<1x128xf32, #tpu.memory_space<vmem>>, %arg6: memref<7x64xf32, #tpu.memory_space<vmem>>, %arg7: memref<1x64xf32, #tpu.memory_space<vmem>>, %arg8: memref<1x64xf32, #tpu.memory_space<vmem>>, %arg9: memref<1x64xf32, #tpu.memory_space<vmem>>, %arg10: memref<64x64xbf16, #tpu.memory_space<vmem>>, %arg11: memref<1x64xf32, #tpu.memory_space<vmem>>, %arg12: memref<1x8x64xbf16, #tpu.memory_space<vmem>>, %arg13: memref<14x64xf32, #tpu.memory_space<vmem>>) attributes {dimension_semantics = [#tpu.dimension_semantics<parallel>], iteration_bounds = array<i64: 2>, scalar_prefetch = 0 : i64, scratch_operands = 1 : i64, tpu.core_type = #tpu.core_type<tc>, window_params = [{transform_indices = @transform_0, window_bounds = array<i64: 1, 8, 64>}, {pipeline_mode = #tpu.pipeline_mode<synchronous>, transform_indices = @transform_1, window_bounds = array<i64: 1, 64>}, {pipeline_mode = #tpu.pipeline_mode<synchronous>, transform_indices = @transform_2, window_bounds = array<i64: 1, 64>}, {pipeline_mode = #tpu.pipeline_mode<synchronous>, transform_indices = @transform_3, window_bounds = array<i64: 64, 128>}, {pipeline_mode = #tpu.pipeline_mode<synchronous>, transform_indices = @transform_4, window_bounds = array<i64: 1, 128>}, {pipeline_mode = #tpu.pipeline_mode<synchronous>, transform_indices = @transform_5, window_bounds = array<i64: 7, 64>}, {pipeline_mode = #tpu.pipeline_mode<synchronous>, transform_indices = @transform_6, window_bounds = array<i64: 1, 64>}, {pipeline_mode = #tpu.pipeline_mode<synchronous>, transform_indices = @transform_7, window_bounds = array<i64: 1, 64>}, {pipeline_mode = #tpu.pipeline_mode<synchronous>, transform_indices = @transform_8, window_bounds = array<i64: 1, 64>}, {pipeline_mode = #tpu.pipeline_mode<synchronous>, transform_indices = @transform_9, window_bounds = array<i64: 64, 64>}, {pipeline_mode = #tpu.pipeline_mode<synchronous>, transform_indices = @transform_10, window_bounds = array<i64: 1, 64>}, {transform_indices = @transform_11, window_bounds = array<i64: 1, 8, 64>}]} {
    %c0 = arith.constant 0 : index
    %c0_0 = arith.constant 0 : index
    %c0_1 = arith.constant 0 : index
    %0 = vector.load %arg1[%c0, %c0_0, %c0_1] : memref<1x8x64xbf16, #tpu.memory_space<vmem>>, vector<1x8x64xbf16>
    %1 = vector.shape_cast %0 : vector<1x8x64xbf16> to vector<8x64xbf16>
    %2 = arith.extf %1 : vector<8x64xbf16> to vector<8x64xf32>
    %c0_2 = arith.constant 0 : index
    %c0_3 = arith.constant 0 : index
    %3 = vector.load %arg2[%c0_2, %c0_3] : memref<1x64xf32, #tpu.memory_space<vmem>>, vector<1x64xf32>
    %c0_4 = arith.constant 0 : index
    %c0_5 = arith.constant 0 : index
    %4 = vector.load %arg3[%c0_4, %c0_5] : memref<1x64xf32, #tpu.memory_space<vmem>>, vector<1x64xf32>
    %cst = arith.constant dense<0.000000e+00> : vector<8xf32>
    %5 = vector.multi_reduction <add>, %2, %cst [1] : vector<8x64xf32> to vector<8xf32>
    %6 = vector.shape_cast %5 : vector<8xf32> to vector<8x1xf32>
    %cst_6 = arith.constant 6.400000e+01 : f32
    %7 = vector.broadcast %cst_6 : f32 to vector<8x1xf32>
    %8 = arith.divf %6, %7 : vector<8x1xf32>
    %9 = vector.broadcast %8 : vector<8x1xf32> to vector<8x64xf32>
    %10 = arith.subf %2, %9 : vector<8x64xf32>
    %11 = arith.mulf %10, %10 : vector<8x64xf32>
    %cst_7 = arith.constant dense<0.000000e+00> : vector<8xf32>
    %12 = vector.multi_reduction <add>, %11, %cst_7 [1] : vector<8x64xf32> to vector<8xf32>
    %13 = vector.shape_cast %12 : vector<8xf32> to vector<8x1xf32>
    %cst_8 = arith.constant 6.400000e+01 : f32
    %14 = vector.broadcast %cst_8 : f32 to vector<8x1xf32>
    %15 = arith.divf %13, %14 : vector<8x1xf32>
    %16 = vector.broadcast %8 : vector<8x1xf32> to vector<8x64xf32>
    %17 = arith.subf %2, %16 : vector<8x64xf32>
    %cst_9 = arith.constant 9.99999974E-6 : f32
    %18 = vector.broadcast %cst_9 : f32 to vector<8x1xf32>
    %19 = arith.addf %15, %18 : vector<8x1xf32>
    %20 = math.rsqrt %19 : vector<8x1xf32>
    %21 = vector.broadcast %20 : vector<8x1xf32> to vector<8x64xf32>
    %22 = arith.mulf %17, %21 : vector<8x64xf32>
    %23 = vector.broadcast %3 : vector<1x64xf32> to vector<8x64xf32>
    %24 = arith.mulf %22, %23 : vector<8x64xf32>
    %25 = vector.broadcast %4 : vector<1x64xf32> to vector<8x64xf32>
    %26 = arith.addf %24, %25 : vector<8x64xf32>
    %27 = arith.truncf %26 : vector<8x64xf32> to vector<8x64xbf16>
    %c0_10 = arith.constant 0 : index
    %c0_11 = arith.constant 0 : index
    %28 = vector.load %arg4[%c0_10, %c0_11] : memref<64x128xbf16, #tpu.memory_space<vmem>>, vector<64x128xbf16>
    %cst_12 = arith.constant dense<0.000000e+00> : vector<8x128xf32>
    %29 = tpu.matmul %27, %28, %cst_12 {dimension_numbers = #tpu.dot_dimension_numbers<[1], [0], [0], [1], [0, 0, 1, 1], [], []>} : vector<8x64xbf16>, vector<64x128xbf16>, vector<8x128xf32> -> vector<8x128xf32>
    %c0_13 = arith.constant 0 : index
    %c0_14 = arith.constant 0 : index
    %30 = vector.load %arg5[%c0_13, %c0_14] : memref<1x128xf32, #tpu.memory_space<vmem>>, vector<1x128xf32>
    %31 = vector.broadcast %30 : vector<1x128xf32> to vector<8x128xf32>
    %32 = arith.addf %29, %31 : vector<8x128xf32>
    %33 = vector.extract_strided_slice %32 {offsets = [0, 0], sizes = [8, 64], strides = [1, 1]} : vector<8x128xf32> to vector<8x64xf32>
    %34 = vector.extract_strided_slice %32 {offsets = [0, 64], sizes = [8, 64], strides = [1, 1]} : vector<8x128xf32> to vector<8x64xf32>
    %cst_15 = arith.constant 0.000000e+00 : f32
    %35 = vector.broadcast %cst_15 : f32 to vector<8x64xf32>
    %36 = arith.subf %35, %34 : vector<8x64xf32>
    %37 = math.exp %36 : vector<8x64xf32>
    %cst_16 = arith.constant 1.000000e+00 : f32
    %38 = vector.broadcast %cst_16 : f32 to vector<8x64xf32>
    %39 = arith.addf %38, %37 : vector<8x64xf32>
    %cst_17 = arith.constant 1.000000e+00 : f32
    %40 = vector.broadcast %cst_17 : f32 to vector<8x64xf32>
    %41 = arith.divf %40, %39 : vector<8x64xf32>
    %42 = arith.mulf %33, %41 : vector<8x64xf32>
    %cst_18 = arith.constant 0.000000e+00 : f32
    %43 = vector.broadcast %cst_18 : f32 to vector<3x64xf32>
    %c0_19 = arith.constant 0 : index
    %c0_20 = arith.constant 0 : index
    %44 = vector.load %arg13[%c0_19, %c0_20] : memref<14x64xf32, #tpu.memory_space<vmem>>, vector<3x64xf32>
    tpu.vector_store %arg13[%c0_19, %c0_20], %43 {strides = array<i32>} : memref<14x64xf32, #tpu.memory_space<vmem>>, vector<3x64xf32>,
    %cst_21 = arith.constant 0.000000e+00 : f32
    %45 = vector.broadcast %cst_21 : f32 to vector<3x64xf32>
    %c11 = arith.constant 11 : index
    %c0_22 = arith.constant 0 : index
    %46 = vector.load %arg13[%c11, %c0_22] : memref<14x64xf32, #tpu.memory_space<vmem>>, vector<3x64xf32>
    tpu.vector_store %arg13[%c11, %c0_22], %45 {strides = array<i32>} : memref<14x64xf32, #tpu.memory_space<vmem>>, vector<3x64xf32>,
    %c3 = arith.constant 3 : index
    %c0_23 = arith.constant 0 : index
    %47 = vector.load %arg13[%c3, %c0_23] : memref<14x64xf32, #tpu.memory_space<vmem>>, vector<8x64xf32>
    tpu.vector_store %arg13[%c3, %c0_23], %42 {strides = array<i32>} : memref<14x64xf32, #tpu.memory_space<vmem>>, vector<8x64xf32>,
    %c0_24 = arith.constant 0 : index
    %c0_25 = arith.constant 0 : index
    %48 = vector.load %arg6[%c0_24, %c0_25] : memref<7x64xf32, #tpu.memory_space<vmem>>, vector<7x64xf32>
    %cst_26 = arith.constant 0.000000e+00 : f32
    %49 = vector.broadcast %cst_26 : f32 to vector<8x64xf32>
    %c0_27 = arith.constant 0 : index
    %c0_28 = arith.constant 0 : index
    %50 = vector.load %arg13[%c0_27, %c0_28] : memref<14x64xf32, #tpu.memory_space<vmem>>, vector<8x64xf32>
    %51 = vector.extract_strided_slice %48 {offsets = [0, 0], sizes = [1, 64], strides = [1, 1]} : vector<7x64xf32> to vector<1x64xf32>
    %52 = vector.broadcast %51 : vector<1x64xf32> to vector<8x64xf32>
    %53 = arith.mulf %50, %52 : vector<8x64xf32>
    %54 = arith.addf %49, %53 : vector<8x64xf32>
    %c1 = arith.constant 1 : index
    %c0_29 = arith.constant 0 : index
    %55 = vector.load %arg13[%c1, %c0_29] : memref<14x64xf32, #tpu.memory_space<vmem>>, vector<8x64xf32>
    %56 = vector.extract_strided_slice %48 {offsets = [1, 0], sizes = [1, 64], strides = [1, 1]} : vector<7x64xf32> to vector<1x64xf32>
    %57 = vector.broadcast %56 : vector<1x64xf32> to vector<8x64xf32>
    %58 = arith.mulf %55, %57 : vector<8x64xf32>
    %59 = arith.addf %54, %58 : vector<8x64xf32>
    %c2 = arith.constant 2 : index
    %c0_30 = arith.constant 0 : index
    %60 = vector.load %arg13[%c2, %c0_30] : memref<14x64xf32, #tpu.memory_space<vmem>>, vector<8x64xf32>
    %61 = vector.extract_strided_slice %48 {offsets = [2, 0], sizes = [1, 64], strides = [1, 1]} : vector<7x64xf32> to vector<1x64xf32>
    %62 = vector.broadcast %61 : vector<1x64xf32> to vector<8x64xf32>
    %63 = arith.mulf %60, %62 : vector<8x64xf32>
    %64 = arith.addf %59, %63 : vector<8x64xf32>
    %c3_31 = arith.constant 3 : index
    %c0_32 = arith.constant 0 : index
    %65 = vector.load %arg13[%c3_31, %c0_32] : memref<14x64xf32, #tpu.memory_space<vmem>>, vector<8x64xf32>
    %66 = vector.extract_strided_slice %48 {offsets = [3, 0], sizes = [1, 64], strides = [1, 1]} : vector<7x64xf32> to vector<1x64xf32>
    %67 = vector.broadcast %66 : vector<1x64xf32> to vector<8x64xf32>
    %68 = arith.mulf %65, %67 : vector<8x64xf32>
    %69 = arith.addf %64, %68 : vector<8x64xf32>
    %c4 = arith.constant 4 : index
    %c0_33 = arith.constant 0 : index
    %70 = vector.load %arg13[%c4, %c0_33] : memref<14x64xf32, #tpu.memory_space<vmem>>, vector<8x64xf32>
    %71 = vector.extract_strided_slice %48 {offsets = [4, 0], sizes = [1, 64], strides = [1, 1]} : vector<7x64xf32> to vector<1x64xf32>
    %72 = vector.broadcast %71 : vector<1x64xf32> to vector<8x64xf32>
    %73 = arith.mulf %70, %72 : vector<8x64xf32>
    %74 = arith.addf %69, %73 : vector<8x64xf32>
    %c5 = arith.constant 5 : index
    %c0_34 = arith.constant 0 : index
    %75 = vector.load %arg13[%c5, %c0_34] : memref<14x64xf32, #tpu.memory_space<vmem>>, vector<8x64xf32>
    %76 = vector.extract_strided_slice %48 {offsets = [5, 0], sizes = [1, 64], strides = [1, 1]} : vector<7x64xf32> to vector<1x64xf32>
    %77 = vector.broadcast %76 : vector<1x64xf32> to vector<8x64xf32>
    %78 = arith.mulf %75, %77 : vector<8x64xf32>
    %79 = arith.addf %74, %78 : vector<8x64xf32>
    %c6 = arith.constant 6 : index
    %c0_35 = arith.constant 0 : index
    %80 = vector.load %arg13[%c6, %c0_35] : memref<14x64xf32, #tpu.memory_space<vmem>>, vector<8x64xf32>
    %81 = vector.extract_strided_slice %48 {offsets = [6, 0], sizes = [1, 64], strides = [1, 1]} : vector<7x64xf32> to vector<1x64xf32>
    %82 = vector.broadcast %81 : vector<1x64xf32> to vector<8x64xf32>
    %83 = arith.mulf %80, %82 : vector<8x64xf32>
    %84 = arith.addf %79, %83 : vector<8x64xf32>
    %c0_36 = arith.constant 0 : index
    %c0_37 = arith.constant 0 : index
    %85 = vector.load %arg7[%c0_36, %c0_37] : memref<1x64xf32, #tpu.memory_space<vmem>>, vector<1x64xf32>
    %86 = vector.broadcast %85 : vector<1x64xf32> to vector<8x64xf32>
    %87 = arith.addf %84, %86 : vector<8x64xf32>
    %c0_38 = arith.constant 0 : index
    %c0_39 = arith.constant 0 : index
    %88 = vector.load %arg8[%c0_38, %c0_39] : memref<1x64xf32, #tpu.memory_space<vmem>>, vector<1x64xf32>
    %c0_40 = arith.constant 0 : index
    %c0_41 = arith.constant 0 : index
    %89 = vector.load %arg9[%c0_40, %c0_41] : memref<1x64xf32, #tpu.memory_space<vmem>>, vector<1x64xf32>
    %cst_42 = arith.constant dense<0.000000e+00> : vector<8xf32>
    %90 = vector.multi_reduction <add>, %87, %cst_42 [1] : vector<8x64xf32> to vector<8xf32>
    %91 = vector.shape_cast %90 : vector<8xf32> to vector<8x1xf32>
    %cst_43 = arith.constant 6.400000e+01 : f32
    %92 = vector.broadcast %cst_43 : f32 to vector<8x1xf32>
    %93 = arith.divf %91, %92 : vector<8x1xf32>
    %94 = vector.broadcast %93 : vector<8x1xf32> to vector<8x64xf32>
    %95 = arith.subf %87, %94 : vector<8x64xf32>
    %96 = arith.mulf %95, %95 : vector<8x64xf32>
    %cst_44 = arith.constant dense<0.000000e+00> : vector<8xf32>
    %97 = vector.multi_reduction <add>, %96, %cst_44 [1] : vector<8x64xf32> to vector<8xf32>
    %98 = vector.shape_cast %97 : vector<8xf32> to vector<8x1xf32>
    %cst_45 = arith.constant 6.400000e+01 : f32
    %99 = vector.broadcast %cst_45 : f32 to vector<8x1xf32>
    %100 = arith.divf %98, %99 : vector<8x1xf32>
    %101 = vector.broadcast %93 : vector<8x1xf32> to vector<8x64xf32>
    %102 = arith.subf %87, %101 : vector<8x64xf32>
    %cst_46 = arith.constant 9.99999974E-6 : f32
    %103 = vector.broadcast %cst_46 : f32 to vector<8x1xf32>
    %104 = arith.addf %100, %103 : vector<8x1xf32>
    %105 = math.rsqrt %104 : vector<8x1xf32>
    %106 = vector.broadcast %105 : vector<8x1xf32> to vector<8x64xf32>
    %107 = arith.mulf %102, %106 : vector<8x64xf32>
    %108 = vector.broadcast %88 : vector<1x64xf32> to vector<8x64xf32>
    %109 = arith.mulf %107, %108 : vector<8x64xf32>
    %110 = vector.broadcast %89 : vector<1x64xf32> to vector<8x64xf32>
    %111 = arith.addf %109, %110 : vector<8x64xf32>
    %cst_47 = arith.constant 0.000000e+00 : f32
    %112 = vector.broadcast %cst_47 : f32 to vector<8x64xf32>
    %113 = arith.subf %112, %111 : vector<8x64xf32>
    %114 = math.exp %113 : vector<8x64xf32>
    %cst_48 = arith.constant 1.000000e+00 : f32
    %115 = vector.broadcast %cst_48 : f32 to vector<8x64xf32>
    %116 = arith.addf %115, %114 : vector<8x64xf32>
    %cst_49 = arith.constant 1.000000e+00 : f32
    %117 = vector.broadcast %cst_49 : f32 to vector<8x64xf32>
    %118 = arith.divf %117, %116 : vector<8x64xf32>
    %119 = arith.mulf %111, %118 : vector<8x64xf32>
    %120 = arith.truncf %119 : vector<8x64xf32> to vector<8x64xbf16>
    %c0_50 = arith.constant 0 : index
    %c0_51 = arith.constant 0 : index
    %121 = vector.load %arg10[%c0_50, %c0_51] : memref<64x64xbf16, #tpu.memory_space<vmem>>, vector<64x64xbf16>
    %cst_52 = arith.constant dense<0.000000e+00> : vector<8x64xf32>
    %122 = tpu.matmul %120, %121, %cst_52 {dimension_numbers = #tpu.dot_dimension_numbers<[1], [0], [0], [1], [0, 0, 1, 1], [], []>} : vector<8x64xbf16>, vector<64x64xbf16>, vector<8x64xf32> -> vector<8x64xf32>
    %c0_53 = arith.constant 0 : index
    %c0_54 = arith.constant 0 : index
    %123 = vector.load %arg11[%c0_53, %c0_54] : memref<1x64xf32, #tpu.memory_space<vmem>>, vector<1x64xf32>
    %124 = vector.broadcast %123 : vector<1x64xf32> to vector<8x64xf32>
    %125 = arith.addf %122, %124 : vector<8x64xf32>
    %126 = arith.addf %2, %125 : vector<8x64xf32>
    %127 = arith.truncf %126 : vector<8x64xf32> to vector<8x64xbf16>
    %c0_55 = arith.constant 0 : index
    %c0_56 = arith.constant 0 : index
    %c0_57 = arith.constant 0 : index
    %128 = vector.load %arg12[%c0_55, %c0_56, %c0_57] : memref<1x8x64xbf16, #tpu.memory_space<vmem>>, vector<1x8x64xbf16>
    %129 = vector.shape_cast %128 : vector<1x8x64xbf16> to vector<8x64xbf16>
    %130 = vector.shape_cast %127 : vector<8x64xbf16> to vector<1x8x64xbf16>
    tpu.vector_store %arg12[%c0_55, %c0_56, %c0_57], %130 {strides = array<i32>} : memref<1x8x64xbf16, #tpu.memory_space<vmem>>, vector<1x8x64xbf16>,
    return
  }
  func.func @transform_0(%arg0: i32) -> (i32, i32, i32) {
    %c0_i32 = arith.constant 0 : i32
    %c0_i32_0 = arith.constant 0 : i32
    %c0_i32_1 = arith.constant 0 : i32
    return %arg0, %c0_i32, %c0_i32_0 : i32, i32, i32
  }
  func.func @transform_1(%arg0: i32) -> (i32, i32) {
    %c0_i32 = arith.constant 0 : i32
    %c0_i32_0 = arith.constant 0 : i32
    %c0_i32_1 = arith.constant 0 : i32
    return %c0_i32, %c0_i32_0 : i32, i32
  }
  func.func @transform_2(%arg0: i32) -> (i32, i32) {
    %c0_i32 = arith.constant 0 : i32
    %c0_i32_0 = arith.constant 0 : i32
    %c0_i32_1 = arith.constant 0 : i32
    return %c0_i32, %c0_i32_0 : i32, i32
  }
  func.func @transform_3(%arg0: i32) -> (i32, i32) {
    %c0_i32 = arith.constant 0 : i32
    %c0_i32_0 = arith.constant 0 : i32
    %c0_i32_1 = arith.constant 0 : i32
    return %c0_i32, %c0_i32_0 : i32, i32
  }
  func.func @transform_4(%arg0: i32) -> (i32, i32) {
    %c0_i32 = arith.constant 0 : i32
    %c0_i32_0 = arith.constant 0 : i32
    %c0_i32_1 = arith.constant 0 : i32
    return %c0_i32, %c0_i32_0 : i32, i32
  }
  func.func @transform_5(%arg0: i32) -> (i32, i32) {
    %c0_i32 = arith.constant 0 : i32
    %c0_i32_0 = arith.constant 0 : i32
    %c0_i32_1 = arith.constant 0 : i32
    return %c0_i32, %c0_i32_0 : i32, i32
  }
  func.func @transform_6(%arg0: i32) -> (i32, i32) {
    %c0_i32 = arith.constant 0 : i32
    %c0_i32_0 = arith.constant 0 : i32
    %c0_i32_1 = arith.constant 0 : i32
    return %c0_i32, %c0_i32_0 : i32, i32
  }
  func.func @transform_7(%arg0: i32) -> (i32, i32) {
    %c0_i32 = arith.constant 0 : i32
    %c0_i32_0 = arith.constant 0 : i32
    %c0_i32_1 = arith.constant 0 : i32
    return %c0_i32, %c0_i32_0 : i32, i32
  }
  func.func @transform_8(%arg0: i32) -> (i32, i32) {
    %c0_i32 = arith.constant 0 : i32
    %c0_i32_0 = arith.constant 0 : i32
    %c0_i32_1 = arith.constant 0 : i32
    return %c0_i32, %c0_i32_0 : i32, i32
  }
  func.func @transform_9(%arg0: i32) -> (i32, i32) {
    %c0_i32 = arith.constant 0 : i32
    %c0_i32_0 = arith.constant 0 : i32
    %c0_i32_1 = arith.constant 0 : i32
    return %c0_i32, %c0_i32_0 : i32, i32
  }
  func.func @transform_10(%arg0: i32) -> (i32, i32) {
    %c0_i32 = arith.constant 0 : i32
    %c0_i32_0 = arith.constant 0 : i32
    %c0_i32_1 = arith.constant 0 : i32
    return %c0_i32, %c0_i32_0 : i32, i32
  }
  func.func @transform_11(%arg0: i32) -> (i32, i32, i32) {
    %c0_i32 = arith.constant 0 : i32
    %c0_i32_0 = arith.constant 0 : i32
    %c0_i32_1 = arith.constant 0 : i32
    return %arg0, %c0_i32, %c0_i32_0 : i32, i32, i32
  }
}

module attributes {stable_mosaic.version = 11 : i64} {
  func.func @ffn_half_ln_kernel(%arg0: i32, %arg1: memref<16x64xbf16, #tpu.memory_space<vmem>>, %arg2: memref<1x64xf32, #tpu.memory_space<vmem>>, %arg3: memref<1x64xf32, #tpu.memory_space<vmem>>, %arg4: memref<64x128xbf16, #tpu.memory_space<vmem>>, %arg5: memref<1x128xf32, #tpu.memory_space<vmem>>, %arg6: memref<128x64xbf16, #tpu.memory_space<vmem>>, %arg7: memref<1x64xf32, #tpu.memory_space<vmem>>, %arg8: memref<1x64xf32, #tpu.memory_space<vmem>>, %arg9: memref<1x64xf32, #tpu.memory_space<vmem>>, %arg10: memref<16x64xf32, #tpu.memory_space<vmem>>) attributes {dimension_semantics = [#tpu.dimension_semantics<parallel>], iteration_bounds = array<i64: 1>, scalar_prefetch = 0 : i64, scratch_operands = 0 : i64, tpu.core_type = #tpu.core_type<tc>, window_params = [{transform_indices = @transform_0, window_bounds = array<i64: 16, 64>}, {pipeline_mode = #tpu.pipeline_mode<synchronous>, transform_indices = @transform_1, window_bounds = array<i64: 1, 64>}, {pipeline_mode = #tpu.pipeline_mode<synchronous>, transform_indices = @transform_2, window_bounds = array<i64: 1, 64>}, {pipeline_mode = #tpu.pipeline_mode<synchronous>, transform_indices = @transform_3, window_bounds = array<i64: 64, 128>}, {pipeline_mode = #tpu.pipeline_mode<synchronous>, transform_indices = @transform_4, window_bounds = array<i64: 1, 128>}, {pipeline_mode = #tpu.pipeline_mode<synchronous>, transform_indices = @transform_5, window_bounds = array<i64: 128, 64>}, {pipeline_mode = #tpu.pipeline_mode<synchronous>, transform_indices = @transform_6, window_bounds = array<i64: 1, 64>}, {pipeline_mode = #tpu.pipeline_mode<synchronous>, transform_indices = @transform_7, window_bounds = array<i64: 1, 64>}, {pipeline_mode = #tpu.pipeline_mode<synchronous>, transform_indices = @transform_8, window_bounds = array<i64: 1, 64>}, {transform_indices = @transform_9, window_bounds = array<i64: 16, 64>}]} {
    %c0 = arith.constant 0 : index
    %c0_0 = arith.constant 0 : index
    %0 = vector.load %arg1[%c0, %c0_0] : memref<16x64xbf16, #tpu.memory_space<vmem>>, vector<16x64xbf16>
    %1 = arith.extf %0 : vector<16x64xbf16> to vector<16x64xf32>
    %c0_1 = arith.constant 0 : index
    %c0_2 = arith.constant 0 : index
    %2 = vector.load %arg2[%c0_1, %c0_2] : memref<1x64xf32, #tpu.memory_space<vmem>>, vector<1x64xf32>
    %c0_3 = arith.constant 0 : index
    %c0_4 = arith.constant 0 : index
    %3 = vector.load %arg3[%c0_3, %c0_4] : memref<1x64xf32, #tpu.memory_space<vmem>>, vector<1x64xf32>
    %cst = arith.constant dense<0.000000e+00> : vector<16xf32>
    %4 = vector.multi_reduction <add>, %1, %cst [1] : vector<16x64xf32> to vector<16xf32>
    %5 = vector.shape_cast %4 : vector<16xf32> to vector<16x1xf32>
    %cst_5 = arith.constant 6.400000e+01 : f32
    %6 = vector.broadcast %cst_5 : f32 to vector<16x1xf32>
    %7 = arith.divf %5, %6 : vector<16x1xf32>
    %8 = vector.broadcast %7 : vector<16x1xf32> to vector<16x64xf32>
    %9 = arith.subf %1, %8 : vector<16x64xf32>
    %10 = arith.mulf %9, %9 : vector<16x64xf32>
    %cst_6 = arith.constant dense<0.000000e+00> : vector<16xf32>
    %11 = vector.multi_reduction <add>, %10, %cst_6 [1] : vector<16x64xf32> to vector<16xf32>
    %12 = vector.shape_cast %11 : vector<16xf32> to vector<16x1xf32>
    %cst_7 = arith.constant 6.400000e+01 : f32
    %13 = vector.broadcast %cst_7 : f32 to vector<16x1xf32>
    %14 = arith.divf %12, %13 : vector<16x1xf32>
    %15 = vector.broadcast %7 : vector<16x1xf32> to vector<16x64xf32>
    %16 = arith.subf %1, %15 : vector<16x64xf32>
    %cst_8 = arith.constant 9.99999974E-6 : f32
    %17 = vector.broadcast %cst_8 : f32 to vector<16x1xf32>
    %18 = arith.addf %14, %17 : vector<16x1xf32>
    %19 = math.rsqrt %18 : vector<16x1xf32>
    %20 = vector.broadcast %19 : vector<16x1xf32> to vector<16x64xf32>
    %21 = arith.mulf %16, %20 : vector<16x64xf32>
    %22 = vector.broadcast %2 : vector<1x64xf32> to vector<16x64xf32>
    %23 = arith.mulf %21, %22 : vector<16x64xf32>
    %24 = vector.broadcast %3 : vector<1x64xf32> to vector<16x64xf32>
    %25 = arith.addf %23, %24 : vector<16x64xf32>
    %26 = arith.truncf %25 : vector<16x64xf32> to vector<16x64xbf16>
    %c0_9 = arith.constant 0 : index
    %c0_10 = arith.constant 0 : index
    %27 = vector.load %arg4[%c0_9, %c0_10] : memref<64x128xbf16, #tpu.memory_space<vmem>>, vector<64x128xbf16>
    %cst_11 = arith.constant dense<0.000000e+00> : vector<16x128xf32>
    %28 = tpu.matmul %26, %27, %cst_11 {dimension_numbers = #tpu.dot_dimension_numbers<[1], [0], [0], [1], [0, 0, 1, 1], [], []>} : vector<16x64xbf16>, vector<64x128xbf16>, vector<16x128xf32> -> vector<16x128xf32>
    %c0_12 = arith.constant 0 : index
    %c0_13 = arith.constant 0 : index
    %29 = vector.load %arg5[%c0_12, %c0_13] : memref<1x128xf32, #tpu.memory_space<vmem>>, vector<1x128xf32>
    %30 = vector.broadcast %29 : vector<1x128xf32> to vector<16x128xf32>
    %31 = arith.addf %28, %30 : vector<16x128xf32>
    %cst_14 = arith.constant 0.000000e+00 : f32
    %32 = vector.broadcast %cst_14 : f32 to vector<16x128xf32>
    %33 = arith.subf %32, %31 : vector<16x128xf32>
    %34 = math.exp %33 : vector<16x128xf32>
    %cst_15 = arith.constant 1.000000e+00 : f32
    %35 = vector.broadcast %cst_15 : f32 to vector<16x128xf32>
    %36 = arith.addf %35, %34 : vector<16x128xf32>
    %cst_16 = arith.constant 1.000000e+00 : f32
    %37 = vector.broadcast %cst_16 : f32 to vector<16x128xf32>
    %38 = arith.divf %37, %36 : vector<16x128xf32>
    %39 = arith.mulf %31, %38 : vector<16x128xf32>
    %40 = arith.truncf %39 : vector<16x128xf32> to vector<16x128xbf16>
    %c0_17 = arith.constant 0 : index
    %c0_18 = arith.constant 0 : index
    %41 = vector.load %arg6[%c0_17, %c0_18] : memref<128x64xbf16, #tpu.memory_space<vmem>>, vector<128x64xbf16>
    %cst_19 = arith.constant dense<0.000000e+00> : vector<16x64xf32>
    %42 = tpu.matmul %40, %41, %cst_19 {dimension_numbers = #tpu.dot_dimension_numbers<[1], [0], [0], [1], [0, 0, 1, 1], [], []>} : vector<16x128xbf16>, vector<128x64xbf16>, vector<16x64xf32> -> vector<16x64xf32>
    %c0_20 = arith.constant 0 : index
    %c0_21 = arith.constant 0 : index
    %43 = vector.load %arg7[%c0_20, %c0_21] : memref<1x64xf32, #tpu.memory_space<vmem>>, vector<1x64xf32>
    %44 = vector.broadcast %43 : vector<1x64xf32> to vector<16x64xf32>
    %45 = arith.addf %42, %44 : vector<16x64xf32>
    %cst_22 = arith.constant 5.000000e-01 : f32
    %46 = vector.broadcast %cst_22 : f32 to vector<16x64xf32>
    %47 = arith.mulf %46, %45 : vector<16x64xf32>
    %48 = arith.addf %1, %47 : vector<16x64xf32>
    %c0_23 = arith.constant 0 : index
    %c0_24 = arith.constant 0 : index
    %49 = vector.load %arg8[%c0_23, %c0_24] : memref<1x64xf32, #tpu.memory_space<vmem>>, vector<1x64xf32>
    %c0_25 = arith.constant 0 : index
    %c0_26 = arith.constant 0 : index
    %50 = vector.load %arg9[%c0_25, %c0_26] : memref<1x64xf32, #tpu.memory_space<vmem>>, vector<1x64xf32>
    %cst_27 = arith.constant dense<0.000000e+00> : vector<16xf32>
    %51 = vector.multi_reduction <add>, %48, %cst_27 [1] : vector<16x64xf32> to vector<16xf32>
    %52 = vector.shape_cast %51 : vector<16xf32> to vector<16x1xf32>
    %cst_28 = arith.constant 6.400000e+01 : f32
    %53 = vector.broadcast %cst_28 : f32 to vector<16x1xf32>
    %54 = arith.divf %52, %53 : vector<16x1xf32>
    %55 = vector.broadcast %54 : vector<16x1xf32> to vector<16x64xf32>
    %56 = arith.subf %48, %55 : vector<16x64xf32>
    %57 = arith.mulf %56, %56 : vector<16x64xf32>
    %cst_29 = arith.constant dense<0.000000e+00> : vector<16xf32>
    %58 = vector.multi_reduction <add>, %57, %cst_29 [1] : vector<16x64xf32> to vector<16xf32>
    %59 = vector.shape_cast %58 : vector<16xf32> to vector<16x1xf32>
    %cst_30 = arith.constant 6.400000e+01 : f32
    %60 = vector.broadcast %cst_30 : f32 to vector<16x1xf32>
    %61 = arith.divf %59, %60 : vector<16x1xf32>
    %62 = vector.broadcast %54 : vector<16x1xf32> to vector<16x64xf32>
    %63 = arith.subf %48, %62 : vector<16x64xf32>
    %cst_31 = arith.constant 9.99999974E-6 : f32
    %64 = vector.broadcast %cst_31 : f32 to vector<16x1xf32>
    %65 = arith.addf %61, %64 : vector<16x1xf32>
    %66 = math.rsqrt %65 : vector<16x1xf32>
    %67 = vector.broadcast %66 : vector<16x1xf32> to vector<16x64xf32>
    %68 = arith.mulf %63, %67 : vector<16x64xf32>
    %69 = vector.broadcast %49 : vector<1x64xf32> to vector<16x64xf32>
    %70 = arith.mulf %68, %69 : vector<16x64xf32>
    %71 = vector.broadcast %50 : vector<1x64xf32> to vector<16x64xf32>
    %72 = arith.addf %70, %71 : vector<16x64xf32>
    %c0_32 = arith.constant 0 : index
    %c0_33 = arith.constant 0 : index
    %73 = vector.load %arg10[%c0_32, %c0_33] : memref<16x64xf32, #tpu.memory_space<vmem>>, vector<16x64xf32>
    tpu.vector_store %arg10[%c0_32, %c0_33], %72 {strides = array<i32>} : memref<16x64xf32, #tpu.memory_space<vmem>>, vector<16x64xf32>,
    return
  }
  func.func @transform_0(%arg0: i32) -> (i32, i32) {
    %c0_i32 = arith.constant 0 : i32
    %c0_i32_0 = arith.constant 0 : i32
    return %arg0, %c0_i32 : i32, i32
  }
  func.func @transform_1(%arg0: i32) -> (i32, i32) {
    %c0_i32 = arith.constant 0 : i32
    %c0_i32_0 = arith.constant 0 : i32
    %c0_i32_1 = arith.constant 0 : i32
    return %c0_i32, %c0_i32_0 : i32, i32
  }
  func.func @transform_2(%arg0: i32) -> (i32, i32) {
    %c0_i32 = arith.constant 0 : i32
    %c0_i32_0 = arith.constant 0 : i32
    %c0_i32_1 = arith.constant 0 : i32
    return %c0_i32, %c0_i32_0 : i32, i32
  }
  func.func @transform_3(%arg0: i32) -> (i32, i32) {
    %c0_i32 = arith.constant 0 : i32
    %c0_i32_0 = arith.constant 0 : i32
    %c0_i32_1 = arith.constant 0 : i32
    return %c0_i32, %c0_i32_0 : i32, i32
  }
  func.func @transform_4(%arg0: i32) -> (i32, i32) {
    %c0_i32 = arith.constant 0 : i32
    %c0_i32_0 = arith.constant 0 : i32
    %c0_i32_1 = arith.constant 0 : i32
    return %c0_i32, %c0_i32_0 : i32, i32
  }
  func.func @transform_5(%arg0: i32) -> (i32, i32) {
    %c0_i32 = arith.constant 0 : i32
    %c0_i32_0 = arith.constant 0 : i32
    %c0_i32_1 = arith.constant 0 : i32
    return %c0_i32, %c0_i32_0 : i32, i32
  }
  func.func @transform_6(%arg0: i32) -> (i32, i32) {
    %c0_i32 = arith.constant 0 : i32
    %c0_i32_0 = arith.constant 0 : i32
    %c0_i32_1 = arith.constant 0 : i32
    return %c0_i32, %c0_i32_0 : i32, i32
  }
  func.func @transform_7(%arg0: i32) -> (i32, i32) {
    %c0_i32 = arith.constant 0 : i32
    %c0_i32_0 = arith.constant 0 : i32
    %c0_i32_1 = arith.constant 0 : i32
    return %c0_i32, %c0_i32_0 : i32, i32
  }
  func.func @transform_8(%arg0: i32) -> (i32, i32) {
    %c0_i32 = arith.constant 0 : i32
    %c0_i32_0 = arith.constant 0 : i32
    %c0_i32_1 = arith.constant 0 : i32
    return %c0_i32, %c0_i32_0 : i32, i32
  }
  func.func @transform_9(%arg0: i32) -> (i32, i32) {
    %c0_i32 = arith.constant 0 : i32
    %c0_i32_0 = arith.constant 0 : i32
    return %arg0, %c0_i32 : i32, i32
  }
}

</mosaic_0001>

<llo_original>
// kernel: conformer_encoder_layer.5
$region0: #{conformer_encoder_layer.5}
  #allocation0 [shape = 'u32[]', space=smem, size = 0x4, offset = 0x4, fixed_abs, tag = 'smem constant byte address 0x4 - core index']
  #allocation1 [shape = 'u32[144,128]{1,0:T(1,128)}', space=vmem, size = 0x12000, scoped, tag = 'internal scratch']
  %s0 = inlined_call_operand.vmem [shape: f32[16,64], index: 0, kind: input, shape index: {}]
  %s1 = inlined_call_operand.vmem [shape: f32[1,64], index: 1, kind: input, shape index: {}]
  %s2 = inlined_call_operand.vmem [shape: f32[1,64], index: 2, kind: input, shape index: {}]
  %s3 = inlined_call_operand.vmem [shape: bf16[64,128], index: 3, kind: input, shape index: {}]
  %s4 = inlined_call_operand.vmem [shape: f32[1,128], index: 4, kind: input, shape index: {}]
  %s5 = inlined_call_operand.vmem [shape: bf16[128,64], index: 5, kind: input, shape index: {}]
  %s6 = inlined_call_operand.vmem [shape: f32[1,64], index: 6, kind: input, shape index: {}]
  %s7 = inlined_call_operand.vmem [shape: bf16[16,64], index: 7, kind: output, shape index: {}]
  %s8 = sld [smem:[#allocation0]]
  $region38: #{conformer_encoder_layer.5} parent=0
    _
  %s10 = ssub.s32 1, %s8
  %s11 = scalar_select 0, %s10, %s8
  // Predicated region
  $region2: #{conformer_encoder_layer.5} parent=0 // pred_check
    _
  $region3: #{conformer_encoder_layer.5} parent=0 // pred_check_branch
    %13 = sbr.rel (0) target = $region5
  $region4: #{conformer_encoder_layer.5} parent=0 // pred_region
    _
  $region5: #{conformer_encoder_layer.5} parent=0 // pred_fallthru
    _
  // Predicated region
  $region6: #{conformer_encoder_layer.5} parent=0 // pred_check
    _
  $region7: #{conformer_encoder_layer.5} parent=0 // pred_check_branch
    %15 = sbr.rel (0) target = $region9
  $region8: #{conformer_encoder_layer.5} parent=0 // pred_region
    _
  $region9: #{conformer_encoder_layer.5} parent=0 // pred_fallthru
    _
  // Predicated region
  $region10: #{conformer_encoder_layer.5} parent=0 // pred_check
    _
  $region11: #{conformer_encoder_layer.5} parent=0 // pred_check_branch
    %17 = sbr.rel (0) target = $region13
  $region12: #{conformer_encoder_layer.5} parent=0 // pred_region
    _
  $region13: #{conformer_encoder_layer.5} parent=0 // pred_fallthru
    _
  // Predicated region
  $region14: #{conformer_encoder_layer.5} parent=0 // pred_check
    _
  $region15: #{conformer_encoder_layer.5} parent=0 // pred_check_branch
    %19 = sbr.rel (0) target = $region17
  $region16: #{conformer_encoder_layer.5} parent=0 // pred_region
    _
  $region17: #{conformer_encoder_layer.5} parent=0 // pred_fallthru
    _
  // Predicated region
  $region18: #{conformer_encoder_layer.5} parent=0 // pred_check
    _
  $region19: #{conformer_encoder_layer.5} parent=0 // pred_check_branch
    %21 = sbr.rel (0) target = $region21
  $region20: #{conformer_encoder_layer.5} parent=0 // pred_region
    _
  $region21: #{conformer_encoder_layer.5} parent=0 // pred_fallthru
    _
  // Predicated region
  $region22: #{conformer_encoder_layer.5} parent=0 // pred_check
    _
  $region23: #{conformer_encoder_layer.5} parent=0 // pred_check_branch
    %23 = sbr.rel (0) target = $region25
  $region24: #{conformer_encoder_layer.5} parent=0 // pred_region
    _
  $region25: #{conformer_encoder_layer.5} parent=0 // pred_fallthru
    _
  // Predicated region
  $region26: #{conformer_encoder_layer.5} parent=0 // pred_check
    _
  $region27: #{conformer_encoder_layer.5} parent=0 // pred_check_branch
    %25 = sbr.rel (0) target = $region29
  $region28: #{conformer_encoder_layer.5} parent=0 // pred_region
    _
  $region29: #{conformer_encoder_layer.5} parent=0 // pred_fallthru
    _
  %v27 = vld [vmem:[%s0] sm:$0xff]
  %v28 = vld [vmem:[%s0 + $0x8] sm:$0xff]
  %v29 = vld [vmem:[%s1] sm:$0x1]
  %v30 = vld [vmem:[%s2] sm:$0x1]
  %vm31 = vcmask 523264
  %v32 = vsel %vm31, %v27, 0.0
  %33 = vadd.xlane.f32.xlu0 %v32
  %v34 = vpop.xlane.xlu0 %33
  %v35 = vsel %vm31, %v28, 0.0
  %36 = vadd.xlane.f32.xlu0 %v35
  %v37 = vpop.xlane.xlu0 %36
  %v38 = vrcp.pop 64.0
  %v39 = vmul.f32 %v34, %v38
  %v40 = vmul.f32 %v37, %v38
  %v41 = vsub.f32 %v27, %v39
  %v42 = vsub.f32 %v28, %v40
  %v43 = vmul.f32 %v41, %v41
  %v44 = vmul.f32 %v42, %v42
  %v45 = vsel %vm31, %v43, 0.0
  %46 = vadd.xlane.f32.xlu0 %v45
  %v47 = vpop.xlane.xlu0 %46
  %v48 = vsel %vm31, %v44, 0.0
  %49 = vadd.xlane.f32.xlu0 %v48
  %v50 = vpop.xlane.xlu0 %49
  %v51 = vmul.f32 %v47, %v38
  %v52 = vmul.f32 %v50, %v38
  %v53 = vadd.f32 %v51, 1e-05
  %v54 = vadd.f32 %v52, 1e-05
  %v55 = vrsqrt.pop %v53
  %v56 = vrsqrt.pop %v54
  %v57 = vmul.f32 %v41, %v55
  %v58 = vmul.f32 %v42, %v56
  %v60 = vlaneseq
  %v61 = vshrl.u32 %v60, 7
  %v62 = vsub.s32 0, %v61
  %v63 = vrot.slane %v29, %v62
  %v65 = vmul.f32 %v57, %v63
  %v66 = vmul.f32 %v58, %v63
  %v68 = vlaneseq
  %v69 = vshrl.u32 %v68, 7
  %v70 = vsub.s32 0, %v69
  %v71 = vrot.slane %v30, %v70
  %v73 = vadd.f32 %v65, %v71
  %v74 = vadd.f32 %v66, %v71
  %v75 = vpack.c.bf16 %v74, %v73
  %v76 = vld [vmem:[%s3] sm:$0xf]
  %v77 = vld [vmem:[%s3 + $0x4] sm:$0xf]
  %v78 = vld [vmem:[%s3 + $0x8] sm:$0xf]
  %v79 = vld [vmem:[%s3 + $0xc] sm:$0xf]
  %v80 = vld [vmem:[%s3 + $0x10] sm:$0xf]
  %v81 = vld [vmem:[%s3 + $0x14] sm:$0xf]
  %v82 = vld [vmem:[%s3 + $0x18] sm:$0xf]
  %v83 = vld [vmem:[%s3 + $0x1c] sm:$0xf]
  %v84 = vld [vmem:[%s4] sm:$0x1]
  %v86 = vlaneseq
  %v87 = vshrl.u32 %v86, 7
  %v88 = vsub.s32 0, %v87
  %v89 = vrot.slane %v84, %v88
  %v99 = vunpack.c.l.b16 %v76
  %v100 = vunpack.c.l.b16 %v77
  %v101 = vunpack.c.l.b16 %v78
  %v102 = vunpack.c.l.b16 %v79
  %v103 = vunpack.c.l.b16 %v80
  %v104 = vunpack.c.l.b16 %v81
  %v105 = vunpack.c.l.b16 %v82
  %v106 = vunpack.c.l.b16 %v83
  %v107 = vpack.c.b16 %v100, %v99
  %v108 = vpack.c.b16 %v102, %v101
  %v109 = vpack.c.b16 %v104, %v103
  %v110 = vpack.c.b16 %v106, %v105
  %v116 = vsel %vm31, %v75, 0
  %118 = vmatprep.subr.bf16.mxu0 0
  %119 = vmatpush1.bf16.msra.mxu0 0
  %120 = vmatprep.subr.bf16.mxu0 0
  %121 = vmatpush1.bf16.msra.mxu0 0
  %122 = vmatprep.subr.bf16.mxu0 0
  %123 = vmatpush1.bf16.msra.mxu0 0
  %124 = vmatprep.subr.bf16.mxu0 0
  %125 = vmatpush1.bf16.msra.mxu0 0
  %126 = vmatprep.subr.bf16.mxu0 0
  %127 = vmatpush1.bf16.msra.mxu0 %v110
  %128 = vmatprep.subr.bf16.mxu0 0
  %129 = vmatpush1.bf16.msra.mxu0 %v109
  %130 = vmatprep.subr.bf16.mxu0 0
  %131 = vmatpush1.bf16.msra.mxu0 %v108
  %132 = vmatprep.subr.bf16.mxu0 0
  %133 = vmatpush1.bf16.msra.mxu0 %v107
  %134 = vmatprep.subr.bf16.mxu0 0
  %135 = vmatpush2.bf16.msra.mxu0 0
  %136 = vmatprep.subr.bf16.mxu0 0
  %137 = vmatpush2.bf16.msra.mxu0 0
  %138 = vmatprep.subr.bf16.mxu0 0
  %139 = vmatpush2.bf16.msra.mxu0 0
  %140 = vmatprep.subr.bf16.mxu0 0
  %141 = vmatpush2.bf16.msra.mxu0 0
  %142 = vmatprep.subr.bf16.mxu0 0
  %143 = vmatpush2.bf16.msra.mxu0 0
  %144 = vmatprep.subr.bf16.mxu0 0
  %145 = vmatpush2.bf16.msra.mxu0 0
  %146 = vmatprep.subr.bf16.mxu0 0
  %147 = vmatpush2.bf16.msra.mxu0 0
  %148 = vmatprep.subr.bf16.mxu0 0
  %149 = vmatpush2.bf16.msra.mxu0 0
  %150 = vmatprep.mubr.bf16.mxu0 0
  %151 = vmatmul.mubr.bf16.gmra.mxu0 %v116
  %v152 = vpop.f32.mrf.mxu0
  %v153 = vadd.f32 %v89, %v152
  %v154 = vpop.f32.mrf.mxu0
  %v155 = vpop.f32.mrf.mxu0
  %v156 = vadd.f32 %v89, %v155
  %v157 = vpop.f32.mrf.mxu0
  %158 = vdwg.mxu0
  %v159 = vsub.f32 0.0, %v153
  %v160 = vsub.f32 0.0, %v156
  %v161 = vmul.f32 %v159, 1.442695
  %v162 = vpow.pop %v161
  %v163 = vmul.f32 %v160, 1.442695
  %v164 = vpow.pop %v163
  %v165 = vadd.f32 %v162, 1.0
  %v166 = vadd.f32 %v164, 1.0
  %v167 = vrcp.pop %v165
  %v168 = vmul.f32 1.0, %v167
  %v169 = vrcp.pop %v166
  %v170 = vmul.f32 1.0, %v169
  %v171 = vmul.f32 %v153, %v168
  %v172 = vmul.f32 %v156, %v170
  %v173 = vpack.c.bf16 %v172, %v171
  %v174 = vld [vmem:[%s5] sm:$0xf]
  %v175 = vld [vmem:[%s5 + $0x4] sm:$0xf]
  %v176 = vld [vmem:[%s5 + $0x8] sm:$0xf]
  %v177 = vld [vmem:[%s5 + $0xc] sm:$0xf]
  %v178 = vld [vmem:[%s5 + $0x10] sm:$0xf]
  %v179 = vld [vmem:[%s5 + $0x14] sm:$0xf]
  %v180 = vld [vmem:[%s5 + $0x18] sm:$0xf]
  %v181 = vld [vmem:[%s5 + $0x1c] sm:$0xf]
  %v182 = vld [vmem:[%s5 + $0x20] sm:$0xf]
  %v183 = vld [vmem:[%s5 + $0x24] sm:$0xf]
  %v184 = vld [vmem:[%s5 + $0x28] sm:$0xf]
  %v185 = vld [vmem:[%s5 + $0x2c] sm:$0xf]
  %v186 = vld [vmem:[%s5 + $0x30] sm:$0xf]
  %v187 = vld [vmem:[%s5 + $0x34] sm:$0xf]
  %v188 = vld [vmem:[%s5 + $0x38] sm:$0xf]
  %v189 = vld [vmem:[%s5 + $0x3c] sm:$0xf]
  %v190 = vld [vmem:[%s6] sm:$0x1]
  %v192 = vlaneseq
  %v193 = vshrl.u32 %v192, 7
  %v194 = vsub.s32 0, %v193
  %v195 = vrot.slane %v190, %v194
  %v213 = vunpack.c.l.b16 %v174
  %v214 = vunpack.c.l.b16 %v175
  %v215 = vunpack.c.l.b16 %v176
  %v216 = vunpack.c.l.b16 %v177
  %v217 = vunpack.c.l.b16 %v178
  %v218 = vunpack.c.l.b16 %v179
  %v219 = vunpack.c.l.b16 %v180
  %v220 = vunpack.c.l.b16 %v181
  %v221 = vunpack.c.l.b16 %v182
  %v222 = vunpack.c.l.b16 %v183
  %v223 = vunpack.c.l.b16 %v184
  %v224 = vunpack.c.l.b16 %v185
  %v225 = vunpack.c.l.b16 %v186
  %v226 = vunpack.c.l.b16 %v187
  %v227 = vunpack.c.l.b16 %v188
  %v228 = vunpack.c.l.b16 %v189
  %v229 = vpack.c.b16 %v214, %v213
  %v230 = vpack.c.b16 %v216, %v215
  %v231 = vpack.c.b16 %v218, %v217
  %v232 = vpack.c.b16 %v220, %v219
  %v233 = vpack.c.b16 %v222, %v221
  %v234 = vpack.c.b16 %v224, %v223
  %v235 = vpack.c.b16 %v226, %v225
  %v236 = vpack.c.b16 %v228, %v227
  %245 = vmatprep.subr.bf16.mxu0 0
  %246 = vmatpush1.bf16.msra.mxu0 %v236
  %247 = vmatprep.subr.bf16.mxu0 0
  %248 = vmatpush1.bf16.msra.mxu0 %v235
  %249 = vmatprep.subr.bf16.mxu0 0
  %250 = vmatpush1.bf16.msra.mxu0 %v234
  %251 = vmatprep.subr.bf16.mxu0 0
  %252 = vmatpush1.bf16.msra.mxu0 %v233
  %253 = vmatprep.subr.bf16.mxu0 0
  %254 = vmatpush1.bf16.msra.mxu0 %v232
  %255 = vmatprep.subr.bf16.mxu0 0
  %256 = vmatpush1.bf16.msra.mxu0 %v231
  %257 = vmatprep.subr.bf16.mxu0 0
  %258 = vmatpush1.bf16.msra.mxu0 %v230
  %259 = vmatprep.subr.bf16.mxu0 0
  %260 = vmatpush1.bf16.msra.mxu0 %v229
  %261 = vmatprep.subr.bf16.mxu0 0
  %262 = vmatpush2.bf16.msra.mxu0 0
  %263 = vmatprep.subr.bf16.mxu0 0
  %264 = vmatpush2.bf16.msra.mxu0 0
  %265 = vmatprep.subr.bf16.mxu0 0
  %266 = vmatpush2.bf16.msra.mxu0 0
  %267 = vmatprep.subr.bf16.mxu0 0
  %268 = vmatpush2.bf16.msra.mxu0 0
  %269 = vmatprep.subr.bf16.mxu0 0
  %270 = vmatpush2.bf16.msra.mxu0 0
  %271 = vmatprep.subr.bf16.mxu0 0
  %272 = vmatpush2.bf16.msra.mxu0 0
  %273 = vmatprep.subr.bf16.mxu0 0
  %274 = vmatpush2.bf16.msra.mxu0 0
  %275 = vmatprep.subr.bf16.mxu0 0
  %276 = vmatpush2.bf16.msra.mxu0 0
  %277 = vmatprep.mubr.bf16.mxu0 0
  %278 = vmatmul.mubr.bf16.gmra.mxu0 %v173
  %v279 = vpop.f32.mrf.mxu0
  %v280 = vadd.f32 %v195, %v279
  %v281 = vpop.f32.mrf.mxu0
  %v282 = vpop.f32.mrf.mxu0
  %v283 = vadd.f32 %v195, %v282
  %v284 = vpop.f32.mrf.mxu0
  %285 = vdwg.mxu0
  %v286 = vmul.f32 %v280, 0.5
  %v287 = vmul.f32 %v283, 0.5
  %v288 = vadd.f32 %v27, %v286
  %v289 = vadd.f32 %v28, %v287
  %v290 = vpack.c.bf16 %v289, %v288
  %v292 = vunpack.c.l.b16 %v290
  %v293 = vunpack.c.h.b16 %v290
  %v294 = vpack.c.b16 %v292, %v292
  %v295 = vpack.c.b16 %v293, %v293
  %vm298 = vcmask 519168
  %299 = vst.msk [vmem:[%s7] sm:$0xf] %vm298, %v294
  %300 = vst.msk [vmem:[%s7 + $0x4] sm:$0xf] %vm298, %v295
  // Predicated region
  $region30: #{conformer_encoder_layer.5} parent=0 // pred_check
    _
  $region31: #{conformer_encoder_layer.5} parent=0 // pred_check_branch
    %302 = sbr.rel (0) target = $region33
  $region32: #{conformer_encoder_layer.5} parent=0 // pred_region
    _
  $region33: #{conformer_encoder_layer.5} parent=0 // pred_fallthru
    _
  // Predicated region
  $region34: #{conformer_encoder_layer.5} parent=0 // pred_check
    _
  $region35: #{conformer_encoder_layer.5} parent=0 // pred_check_branch
    %304 = sbr.rel (0) target = $region37
  $region36: #{conformer_encoder_layer.5} parent=0 // pred_region
    _
  $region37: #{conformer_encoder_layer.5} parent=0 // pred_fallthru
    _

// kernel: conformer_encoder_layer.6
$region0: #{conformer_encoder_layer.6}
  #allocation0 [shape = 'u32[]', space=smem, size = 0x4, offset = 0x4, fixed_abs, tag = 'smem constant byte address 0x4 - core index']
  #allocation1 [shape = 'u32[144,128]{1,0:T(1,128)}', space=vmem, size = 0x12000, scoped, tag = 'internal scratch']
  %s0 = inlined_call_operand.vmem [shape: f32[128,64], index: 0, kind: input, shape index: {}]
  %s1 = inlined_call_operand.vmem [shape: bf16[64,64], index: 1, kind: input, shape index: {}]
  %s2 = inlined_call_operand.vmem [shape: bf16[128,64], index: 2, kind: output, shape index: {}]
  %s3 = sld [smem:[#allocation0]]
  $region18: #{conformer_encoder_layer.6} parent=0
    _
  %s5 = ssub.s32 1, %s3
  %s6 = scalar_select 0, %s5, %s3
  // Predicated region
  $region2: #{conformer_encoder_layer.6} parent=0 // pred_check
    _
  $region3: #{conformer_encoder_layer.6} parent=0 // pred_check_branch
    %8 = sbr.rel (0) target = $region5
  $region4: #{conformer_encoder_layer.6} parent=0 // pred_region
    _
  $region5: #{conformer_encoder_layer.6} parent=0 // pred_fallthru
    _
  // Predicated region
  $region6: #{conformer_encoder_layer.6} parent=0 // pred_check
    _
  $region7: #{conformer_encoder_layer.6} parent=0 // pred_check_branch
    %10 = sbr.rel (0) target = $region9
  $region8: #{conformer_encoder_layer.6} parent=0 // pred_region
    _
  $region9: #{conformer_encoder_layer.6} parent=0 // pred_fallthru
    _
  %v12 = vld [vmem:[%s0] sm:$0xff]
  %v13 = vld [vmem:[%s0 + $0x8] sm:$0xff]
  %v14 = vld [vmem:[%s0 + $0x10] sm:$0xff]
  %v15 = vld [vmem:[%s0 + $0x18] sm:$0xff]
  %v16 = vld [vmem:[%s0 + $0x20] sm:$0xff]
  %v17 = vld [vmem:[%s0 + $0x28] sm:$0xff]
  %v18 = vld [vmem:[%s0 + $0x30] sm:$0xff]
  %v19 = vld [vmem:[%s0 + $0x38] sm:$0xff]
  %v20 = vld [vmem:[%s0 + $0x40] sm:$0xff]
  %v21 = vld [vmem:[%s0 + $0x48] sm:$0xff]
  %v22 = vld [vmem:[%s0 + $0x50] sm:$0xff]
  %v23 = vld [vmem:[%s0 + $0x58] sm:$0xff]
  %v24 = vld [vmem:[%s0 + $0x60] sm:$0xff]
  %v25 = vld [vmem:[%s0 + $0x68] sm:$0xff]
  %v26 = vld [vmem:[%s0 + $0x70] sm:$0xff]
  %v27 = vld [vmem:[%s0 + $0x78] sm:$0xff]
  %v28 = vpack.c.bf16 %v13, %v12
  %v29 = vpack.c.bf16 %v15, %v14
  %v30 = vpack.c.bf16 %v17, %v16
  %v31 = vpack.c.bf16 %v19, %v18
  %v32 = vpack.c.bf16 %v21, %v20
  %v33 = vpack.c.bf16 %v23, %v22
  %v34 = vpack.c.bf16 %v25, %v24
  %v35 = vpack.c.bf16 %v27, %v26
  %v36 = vld [vmem:[%s1] sm:$0xf]
  %v37 = vld [vmem:[%s1 + $0x4] sm:$0xf]
  %v38 = vld [vmem:[%s1 + $0x8] sm:$0xf]
  %v39 = vld [vmem:[%s1 + $0xc] sm:$0xf]
  %v40 = vld [vmem:[%s1 + $0x10] sm:$0xf]
  %v41 = vld [vmem:[%s1 + $0x14] sm:$0xf]
  %v42 = vld [vmem:[%s1 + $0x18] sm:$0xf]
  %v43 = vld [vmem:[%s1 + $0x1c] sm:$0xf]
  %v52 = vunpack.c.l.b16 %v36
  %v53 = vunpack.c.l.b16 %v37
  %v54 = vunpack.c.l.b16 %v38
  %v55 = vunpack.c.l.b16 %v39
  %v56 = vunpack.c.l.b16 %v40
  %v57 = vunpack.c.l.b16 %v41
  %v58 = vunpack.c.l.b16 %v42
  %v59 = vunpack.c.l.b16 %v43
  %v60 = vpack.c.b16 %v53, %v52
  %v61 = vpack.c.b16 %v55, %v54
  %v62 = vpack.c.b16 %v57, %v56
  %v63 = vpack.c.b16 %v59, %v58
  %vm68 = vcmask 523264
  %v70 = vsel %vm68, %v28, 0
  %v73 = vsel %vm68, %v29, 0
  %v76 = vsel %vm68, %v30, 0
  %v79 = vsel %vm68, %v31, 0
  %v82 = vsel %vm68, %v32, 0
  %v85 = vsel %vm68, %v33, 0
  %v88 = vsel %vm68, %v34, 0
  %v91 = vsel %vm68, %v35, 0
  %93 = vmatprep.subr.bf16.mxu0 0
  %94 = vmatpush1.bf16.msra.mxu0 0
  %95 = vmatprep.subr.bf16.mxu0 0
  %96 = vmatpush1.bf16.msra.mxu0 0
  %97 = vmatprep.subr.bf16.mxu0 0
  %98 = vmatpush1.bf16.msra.mxu0 0
  %99 = vmatprep.subr.bf16.mxu0 0
  %100 = vmatpush1.bf16.msra.mxu0 0
  %101 = vmatprep.subr.bf16.mxu0 0
  %102 = vmatpush1.bf16.msra.mxu0 %v63
  %103 = vmatprep.subr.bf16.mxu0 0
  %104 = vmatpush1.bf16.msra.mxu0 %v62
  %105 = vmatprep.subr.bf16.mxu0 0
  %106 = vmatpush1.bf16.msra.mxu0 %v61
  %107 = vmatprep.subr.bf16.mxu0 0
  %108 = vmatpush1.bf16.msra.mxu0 %v60
  %109 = vmatprep.subr.bf16.mxu0 0
  %110 = vmatpush2.bf16.msra.mxu0 0
  %111 = vmatprep.subr.bf16.mxu0 0
  %112 = vmatpush2.bf16.msra.mxu0 0
  %113 = vmatprep.subr.bf16.mxu0 0
  %114 = vmatpush2.bf16.msra.mxu0 0
  %115 = vmatprep.subr.bf16.mxu0 0
  %116 = vmatpush2.bf16.msra.mxu0 0
  %117 = vmatprep.subr.bf16.mxu0 0
  %118 = vmatpush2.bf16.msra.mxu0 0
  %119 = vmatprep.subr.bf16.mxu0 0
  %120 = vmatpush2.bf16.msra.mxu0 0
  %121 = vmatprep.subr.bf16.mxu0 0
  %122 = vmatpush2.bf16.msra.mxu0 0
  %123 = vmatprep.subr.bf16.mxu0 0
  %124 = vmatpush2.bf16.msra.mxu0 0
  %125 = vmatprep.mubr.bf16.mxu0 0
  %126 = vmatmul.mubr.bf16.gmra.mxu0 %v70
  %v127 = vpop.f32.mrf.mxu0
  %v128 = vadd.f32 0.0, %v127
  %v129 = vpop.f32.mrf.mxu0
  %v130 = vpop.f32.mrf.mxu0
  %v131 = vadd.f32 0.0, %v130
  %v132 = vpop.f32.mrf.mxu0
  %133 = vmatprep.mubr.bf16.mxu0 0
  %134 = vmatmul.mubr.bf16.gmra.mxu0 %v73
  %v135 = vpop.f32.mrf.mxu0
  %v136 = vadd.f32 0.0, %v135
  %v137 = vpop.f32.mrf.mxu0
  %v138 = vpop.f32.mrf.mxu0
  %v139 = vadd.f32 0.0, %v138
  %v140 = vpop.f32.mrf.mxu0
  %141 = vmatprep.mubr.bf16.mxu0 0
  %142 = vmatmul.mubr.bf16.gmra.mxu0 %v76
  %v143 = vpop.f32.mrf.mxu0
  %v144 = vadd.f32 0.0, %v143
  %v145 = vpop.f32.mrf.mxu0
  %v146 = vpop.f32.mrf.mxu0
  %v147 = vadd.f32 0.0, %v146
  %v148 = vpop.f32.mrf.mxu0
  %149 = vmatprep.mubr.bf16.mxu0 0
  %150 = vmatmul.mubr.bf16.gmra.mxu0 %v79
  %v151 = vpop.f32.mrf.mxu0
  %v152 = vadd.f32 0.0, %v151
  %v153 = vpop.f32.mrf.mxu0
  %v154 = vpop.f32.mrf.mxu0
  %v155 = vadd.f32 0.0, %v154
  %v156 = vpop.f32.mrf.mxu0
  %157 = vmatprep.mubr.bf16.mxu0 0
  %158 = vmatmul.mubr.bf16.gmra.mxu0 %v82
  %v159 = vpop.f32.mrf.mxu0
  %v160 = vadd.f32 0.0, %v159
  %v161 = vpop.f32.mrf.mxu0
  %v162 = vpop.f32.mrf.mxu0
  %v163 = vadd.f32 0.0, %v162
  %v164 = vpop.f32.mrf.mxu0
  %165 = vmatprep.mubr.bf16.mxu0 0
  %166 = vmatmul.mubr.bf16.gmra.mxu0 %v85
  %v167 = vpop.f32.mrf.mxu0
  %v168 = vadd.f32 0.0, %v167
  %v169 = vpop.f32.mrf.mxu0
  %v170 = vpop.f32.mrf.mxu0
  %v171 = vadd.f32 0.0, %v170
  %v172 = vpop.f32.mrf.mxu0
  %173 = vmatprep.mubr.bf16.mxu0 0
  %174 = vmatmul.mubr.bf16.gmra.mxu0 %v88
  %v175 = vpop.f32.mrf.mxu0
  %v176 = vadd.f32 0.0, %v175
  %v177 = vpop.f32.mrf.mxu0
  %v178 = vpop.f32.mrf.mxu0
  %v179 = vadd.f32 0.0, %v178
  %v180 = vpop.f32.mrf.mxu0
  %181 = vmatprep.mubr.bf16.mxu0 0
  %182 = vmatmul.mubr.bf16.gmra.mxu0 %v91
  %v183 = vpop.f32.mrf.mxu0
  %v184 = vadd.f32 0.0, %v183
  %v185 = vpop.f32.mrf.mxu0
  %v186 = vpop.f32.mrf.mxu0
  %v187 = vadd.f32 0.0, %v186
  %v188 = vpop.f32.mrf.mxu0
  %189 = vdwg.mxu0
  %v190 = vpack.c.bf16 %v131, %v128
  %v191 = vpack.c.bf16 %v139, %v136
  %v192 = vpack.c.bf16 %v147, %v144
  %v193 = vpack.c.bf16 %v155, %v152
  %v194 = vpack.c.bf16 %v163, %v160
  %v195 = vpack.c.bf16 %v171, %v168
  %v196 = vpack.c.bf16 %v179, %v176
  %v197 = vpack.c.bf16 %v187, %v184
  %v206 = vunpack.c.l.b16 %v190
  %v207 = vunpack.c.h.b16 %v190
  %v208 = vunpack.c.l.b16 %v191
  %v209 = vunpack.c.h.b16 %v191
  %v210 = vunpack.c.l.b16 %v192
  %v211 = vunpack.c.h.b16 %v192
  %v212 = vunpack.c.l.b16 %v193
  %v213 = vunpack.c.h.b16 %v193
  %v214 = vunpack.c.l.b16 %v194
  %v215 = vunpack.c.h.b16 %v194
  %v216 = vunpack.c.l.b16 %v195
  %v217 = vunpack.c.h.b16 %v195
  %v218 = vunpack.c.l.b16 %v196
  %v219 = vunpack.c.h.b16 %v196
  %v220 = vunpack.c.l.b16 %v197
  %v221 = vunpack.c.h.b16 %v197
  %v222 = vpack.c.b16 %v206, %v206
  %v223 = vpack.c.b16 %v207, %v207
  %v224 = vpack.c.b16 %v208, %v208
  %v225 = vpack.c.b16 %v209, %v209
  %v226 = vpack.c.b16 %v210, %v210
  %v227 = vpack.c.b16 %v211, %v211
  %v228 = vpack.c.b16 %v212, %v212
  %v229 = vpack.c.b16 %v213, %v213
  %v230 = vpack.c.b16 %v214, %v214
  %v231 = vpack.c.b16 %v215, %v215
  %v232 = vpack.c.b16 %v216, %v216
  %v233 = vpack.c.b16 %v217, %v217
  %v234 = vpack.c.b16 %v218, %v218
  %v235 = vpack.c.b16 %v219, %v219
  %v236 = vpack.c.b16 %v220, %v220
  %v237 = vpack.c.b16 %v221, %v221
  %vm254 = vcmask 519168
  %255 = vst.msk [vmem:[%s2] sm:$0xf] %vm254, %v222
  %256 = vst.msk [vmem:[%s2 + $0x4] sm:$0xf] %vm254, %v223
  %257 = vst.msk [vmem:[%s2 + $0x8] sm:$0xf] %vm254, %v224
  %258 = vst.msk [vmem:[%s2 + $0xc] sm:$0xf] %vm254, %v225
  %259 = vst.msk [vmem:[%s2 + $0x10] sm:$0xf] %vm254, %v226
  %260 = vst.msk [vmem:[%s2 + $0x14] sm:$0xf] %vm254, %v227
  %261 = vst.msk [vmem:[%s2 + $0x18] sm:$0xf] %vm254, %v228
  %262 = vst.msk [vmem:[%s2 + $0x1c] sm:$0xf] %vm254, %v229
  %263 = vst.msk [vmem:[%s2 + $0x20] sm:$0xf] %vm254, %v230
  %264 = vst.msk [vmem:[%s2 + $0x24] sm:$0xf] %vm254, %v231
  %265 = vst.msk [vmem:[%s2 + $0x28] sm:$0xf] %vm254, %v232
  %266 = vst.msk [vmem:[%s2 + $0x2c] sm:$0xf] %vm254, %v233
  %267 = vst.msk [vmem:[%s2 + $0x30] sm:$0xf] %vm254, %v234
  %268 = vst.msk [vmem:[%s2 + $0x34] sm:$0xf] %vm254, %v235
  %269 = vst.msk [vmem:[%s2 + $0x38] sm:$0xf] %vm254, %v236
  %270 = vst.msk [vmem:[%s2 + $0x3c] sm:$0xf] %vm254, %v237
  // Predicated region
  $region10: #{conformer_encoder_layer.6} parent=0 // pred_check
    _
  $region11: #{conformer_encoder_layer.6} parent=0 // pred_check_branch
    %272 = sbr.rel (0) target = $region13
  $region12: #{conformer_encoder_layer.6} parent=0 // pred_region
    _
  $region13: #{conformer_encoder_layer.6} parent=0 // pred_fallthru
    _
  // Predicated region
  $region14: #{conformer_encoder_layer.6} parent=0 // pred_check
    _
  $region15: #{conformer_encoder_layer.6} parent=0 // pred_check_branch
    %274 = sbr.rel (0) target = $region17
  $region16: #{conformer_encoder_layer.6} parent=0 // pred_region
    _
  $region17: #{conformer_encoder_layer.6} parent=0 // pred_fallthru
    _

// kernel: conformer_encoder_layer.7
$region0: #{conformer_encoder_layer.7}
  #allocation0 [shape = 'u32[]', space=smem, size = 0x4, offset = 0x4, fixed_abs, tag = 'smem constant byte address 0x4 - core index']
  #allocation1 [shape = 'u32[144,128]{1,0:T(1,128)}', space=vmem, size = 0x12000, scoped, tag = 'internal scratch']
  #allocation2 [shape = 'f32[8,64]{1,0:T(8,128)}', space=vmem, size = 0x1000, scoped, tag = 'scratch operand']
  %s0 = inlined_call_operand.vmem [shape: bf16[2,8,64], index: 0, kind: input, shape index: {}]
  %s1 = inlined_call_operand.vmem [shape: f32[1,64], index: 1, kind: input, shape index: {}]
  %s2 = inlined_call_operand.vmem [shape: f32[1,64], index: 2, kind: input, shape index: {}]
  %s3 = inlined_call_operand.vmem [shape: bf16[4,64,48], index: 3, kind: input, shape index: {}]
  %s4 = inlined_call_operand.vmem [shape: f32[4,1,16], index: 4, kind: input, shape index: {}]
  %s5 = inlined_call_operand.vmem [shape: f32[4,1,16], index: 5, kind: input, shape index: {}]
  %s6 = inlined_call_operand.vmem [shape: bf16[4,16,128], index: 6, kind: input, shape index: {}]
  %s7 = inlined_call_operand.vmem [shape: bf16[4,16,64], index: 7, kind: input, shape index: {}]
  %s8 = inlined_call_operand.vmem [shape: f32[1,64], index: 8, kind: input, shape index: {}]
  %s9 = inlined_call_operand.vmem [shape: bf16[2,8,64], index: 9, kind: output, shape index: {0}]
  %s10 = inlined_call_operand.hbm [shape: f32[2,4,8,8], index: 10, kind: output, shape index: {1}]
  %11 = xla_tuple %s9, %s10
  %s12 = sld [smem:[#allocation0]]
  $region85: #{conformer_encoder_layer.7} parent=0
    _
  %s14 = ssub.s32 1, %s12
  %s15 = scalar_select 0, %s14, %s12
  $region1: #{conformer_encoder_layer.7} parent=0
    #allocation3 [shape = 'u8[8192]{0}', space=vmem, size = 0x2000, scoped, tag = 'output window, operand 1']
    #allocation4 [shape = 's32[2]{0}', space=sflag, size = 0x8, scoped, tag = 'scoped memory for conformer_encoder_layer.7']
    %16 = vsyncpa [#allocation4], 0
    %s17 = scalar_lea.sflag [#allocation4], 1
    %18 = vsyncpa %s17, 0
    loop: start=0, step=1, limit=10
    $region2: #{conformer_encoder_layer.7} parent=1 // loop_pre_header
      _
    $region3: #{conformer_encoder_layer.7} parent=1 // loop_header
      %s20 = sphi 0, %s24
      %p21 = scmp.ge.s32.totalorder %s20, 10
      %s27 = sphi 0, %s39
      %s28 = sphi 0, %s35
      %s29 = sphi 0, %s27
      %s30 = sphi 0, %s28
      %s31 = sphi 0, %s29
      %s32 = sphi 0, %s30
      %s42 = sphi 0, %s44
      %s45 = sphi 0, %s42
      %s46 = sphi 0, %s45
      %s62 = sphi 0, %s46
      %s66 = sphi 0, %s66
      %s68 = sphi 0, %s66
      %s69 = sphi 0, %s68
      %s83 = sphi 0, %s69
      %s87 = sphi 0, %s87
      %s89 = sphi 0, %s87
      %s90 = sphi 0, %s89
      %s104 = sphi 0, %s90
      %s110 = sphi 0, %s112
      %s113 = sphi 0, %s110
      %s114 = sphi 0, %s113
      %s130 = sphi 0, %s114
      %s136 = sphi 0, %s138
      %s139 = sphi 0, %s136
      %s140 = sphi 0, %s139
      %s156 = sphi 0, %s140
      %s162 = sphi 0, %s164
      %s165 = sphi 0, %s162
      %s166 = sphi 0, %s165
      %s182 = sphi 0, %s166
      %s188 = sphi 0, %s190
      %s191 = sphi 0, %s188
      %s192 = sphi 0, %s191
      %s208 = sphi 0, %s192
      %s214 = sphi 0, %s216
      %s217 = sphi 0, %s214
      %s218 = sphi 0, %s217
      %s234 = sphi 0, %s218
      %s238 = sphi 0, %s238
      %s240 = sphi 0, %s238
      %s241 = sphi 0, %s240
      %s255 = sphi 0, %s241
      %s261 = sphi 0, %s263
      %s264 = sphi 0, %s261
      %s265 = sphi 0, %s264
      %s281 = sphi 0, %s265
      %s289 = sphi 0, %s291
      %s292 = sphi 0, %s289
      %s293 = sphi 0, %s292
      %s309 = sphi 0, %s293
    $region4: #{conformer_encoder_layer.7} parent=1 // loop_header_branch
      %23 = sbr.rel (%p21) target = $region8
    $region5: #{conformer_encoder_layer.7} parent=1 // loop_body
      %s25 = ssub.s32 %s20, 1
      %s26 = ssub.s32 %s20, 2
      %s33 = sadd.s32 1, %s28
      %p34 = scmp.ge.s32.totalorder %s33, 4
      %s35 = scalar_select %p34, 0, %s33
      %s36 = sadd.s32 1, %s27
      %s37 = scalar_select %p34, %s36, %s27
      %p38 = scmp.ge.s32.totalorder %s37, 2
      %s39 = scalar_select %p38, 0, %s37
      %s40 = ssub.s32 %s27, %s39
      %p41 = scmp.eq.s32.totalorder %s40, 0
      %s43 = sadd.s32 %s42, 1
      %s44 = scalar_select %p41, %s42, %s43
      %p47 = pneg %p41
      %p48 = scmp.eq.s32.totalorder %s20, 7
      %p49 = por %p47, %p48
      %p50 = scmp.ne.s32.totalorder %s42, %s45
      %p51 = scmp.eq.s32.totalorder %s20, 0
      %p52 = por %p50, %p51
      %p53 = scmp.ne.s32.totalorder %s42, %s45
      %p54 = scmp.eq.s32.totalorder %s25, 7
      %p55 = por %p53, %p54
      %p56 = scmp.ne.s32.totalorder %s45, %s46
      %p57 = scmp.eq.s32.totalorder %s25, 0
      %p58 = por %p56, %p57
      %p59 = scmp.ne.s32.totalorder %s45, %s46
      %p60 = scmp.eq.s32.totalorder %s26, 7
      %p61 = por %p59, %p60
      %p63 = scmp.ne.s32.totalorder %s46, %s62
      %p64 = scmp.eq.s32.totalorder %s26, 0
      %p65 = por %p63, %p64
      %s67 = sadd.s32 %s66, 1
      %p70 = scmp.eq.s32.totalorder %s20, 7
      %p71 = scmp.ne.s32.totalorder %s66, %s68
      %p72 = scmp.eq.s32.totalorder %s20, 0
      %p73 = por %p71, %p72
      %p74 = scmp.ne.s32.totalorder %s66, %s68
      %p75 = scmp.eq.s32.totalorder %s25, 7
      %p76 = por %p74, %p75
      %p77 = scmp.ne.s32.totalorder %s68, %s69
      %p78 = scmp.eq.s32.totalorder %s25, 0
      %p79 = por %p77, %p78
      %p80 = scmp.ne.s32.totalorder %s68, %s69
      %p81 = scmp.eq.s32.totalorder %s26, 7
      %p82 = por %p80, %p81
      %p84 = scmp.ne.s32.totalorder %s69, %s83
      %p85 = scmp.eq.s32.totalorder %s26, 0
      %p86 = por %p84, %p85
      %s88 = sadd.s32 %s87, 1
      %p91 = scmp.eq.s32.totalorder %s20, 7
      %p92 = scmp.ne.s32.totalorder %s87, %s89
      %p93 = scmp.eq.s32.totalorder %s20, 0
      %p94 = por %p92, %p93
      %p95 = scmp.ne.s32.totalorder %s87, %s89
      %p96 = scmp.eq.s32.totalorder %s25, 7
      %p97 = por %p95, %p96
      %p98 = scmp.ne.s32.totalorder %s89, %s90
      %p99 = scmp.eq.s32.totalorder %s25, 0
      %p100 = por %p98, %p99
      %p101 = scmp.ne.s32.totalorder %s89, %s90
      %p102 = scmp.eq.s32.totalorder %s26, 7
      %p103 = por %p101, %p102
      %p105 = scmp.ne.s32.totalorder %s90, %s104
      %p106 = scmp.eq.s32.totalorder %s26, 0
      %p107 = por %p105, %p106
      %s108 = ssub.s32 %s28, %s35
      %p109 = scmp.eq.s32.totalorder %s108, 0
      %s111 = sadd.s32 %s110, 1
      %s112 = scalar_select %p109, %s110, %s111
      %p115 = pneg %p109
      %p116 = scmp.eq.s32.totalorder %s20, 7
      %p117 = por %p115, %p116
      %p118 = scmp.ne.s32.totalorder %s110, %s113
      %p119 = scmp.eq.s32.totalorder %s20, 0
      %p120 = por %p118, %p119
      %p121 = scmp.ne.s32.totalorder %s110, %s113
      %p122 = scmp.eq.s32.totalorder %s25, 7
      %p123 = por %p121, %p122
      %p124 = scmp.ne.s32.totalorder %s113, %s114
      %p125 = scmp.eq.s32.totalorder %s25, 0
      %p126 = por %p124, %p125
      %p127 = scmp.ne.s32.totalorder %s113, %s114
      %p128 = scmp.eq.s32.totalorder %s26, 7
      %p129 = por %p127, %p128
      %p131 = scmp.ne.s32.totalorder %s114, %s130
      %p132 = scmp.eq.s32.totalorder %s26, 0
      %p133 = por %p131, %p132
      %s134 = ssub.s32 %s28, %s35
      %p135 = scmp.eq.s32.totalorder %s134, 0
      %s137 = sadd.s32 %s136, 1
      %s138 = scalar_select %p135, %s136, %s137
      %p141 = pneg %p135
      %p142 = scmp.eq.s32.totalorder %s20, 7
      %p143 = por %p141, %p142
      %p144 = scmp.ne.s32.totalorder %s136, %s139
      %p145 = scmp.eq.s32.totalorder %s20, 0
      %p146 = por %p144, %p145
      %p147 = scmp.ne.s32.totalorder %s136, %s139
      %p148 = scmp.eq.s32.totalorder %s25, 7
      %p149 = por %p147, %p148
      %p150 = scmp.ne.s32.totalorder %s139, %s140
      %p151 = scmp.eq.s32.totalorder %s25, 0
      %p152 = por %p150, %p151
      %p153 = scmp.ne.s32.totalorder %s139, %s140
      %p154 = scmp.eq.s32.totalorder %s26, 7
      %p155 = por %p153, %p154
      %p157 = scmp.ne.s32.totalorder %s140, %s156
      %p158 = scmp.eq.s32.totalorder %s26, 0
      %p159 = por %p157, %p158
      %s160 = ssub.s32 %s28, %s35
      %p161 = scmp.eq.s32.totalorder %s160, 0
      %s163 = sadd.s32 %s162, 1
      %s164 = scalar_select %p161, %s162, %s163
      %p167 = pneg %p161
      %p168 = scmp.eq.s32.totalorder %s20, 7
      %p169 = por %p167, %p168
      %p170 = scmp.ne.s32.totalorder %s162, %s165
      %p171 = scmp.eq.s32.totalorder %s20, 0
      %p172 = por %p170, %p171
      %p173 = scmp.ne.s32.totalorder %s162, %s165
      %p174 = scmp.eq.s32.totalorder %s25, 7
      %p175 = por %p173, %p174
      %p176 = scmp.ne.s32.totalorder %s165, %s166
      %p177 = scmp.eq.s32.totalorder %s25, 0
      %p178 = por %p176, %p177
      %p179 = scmp.ne.s32.totalorder %s165, %s166
      %p180 = scmp.eq.s32.totalorder %s26, 7
      %p181 = por %p179, %p180
      %p183 = scmp.ne.s32.totalorder %s166, %s182
      %p184 = scmp.eq.s32.totalorder %s26, 0
      %p185 = por %p183, %p184
      %s186 = ssub.s32 %s28, %s35
      %p187 = scmp.eq.s32.totalorder %s186, 0
      %s189 = sadd.s32 %s188, 1
      %s190 = scalar_select %p187, %s188, %s189
      %p193 = pneg %p187
      %p194 = scmp.eq.s32.totalorder %s20, 7
      %p195 = por %p193, %p194
      %p196 = scmp.ne.s32.totalorder %s188, %s191
      %p197 = scmp.eq.s32.totalorder %s20, 0
      %p198 = por %p196, %p197
      %p199 = scmp.ne.s32.totalorder %s188, %s191
      %p200 = scmp.eq.s32.totalorder %s25, 7
      %p201 = por %p199, %p200
      %p202 = scmp.ne.s32.totalorder %s191, %s192
      %p203 = scmp.eq.s32.totalorder %s25, 0
      %p204 = por %p202, %p203
      %p205 = scmp.ne.s32.totalorder %s191, %s192
      %p206 = scmp.eq.s32.totalorder %s26, 7
      %p207 = por %p205, %p206
      %p209 = scmp.ne.s32.totalorder %s192, %s208
      %p210 = scmp.eq.s32.totalorder %s26, 0
      %p211 = por %p209, %p210
      %s212 = ssub.s32 %s28, %s35
      %p213 = scmp.eq.s32.totalorder %s212, 0
      %s215 = sadd.s32 %s214, 1
      %s216 = scalar_select %p213, %s214, %s215
      %p219 = pneg %p213
      %p220 = scmp.eq.s32.totalorder %s20, 7
      %p221 = por %p219, %p220
      %p222 = scmp.ne.s32.totalorder %s214, %s217
      %p223 = scmp.eq.s32.totalorder %s20, 0
      %p224 = por %p222, %p223
      %p225 = scmp.ne.s32.totalorder %s214, %s217
      %p226 = scmp.eq.s32.totalorder %s25, 7
      %p227 = por %p225, %p226
      %p228 = scmp.ne.s32.totalorder %s217, %s218
      %p229 = scmp.eq.s32.totalorder %s25, 0
      %p230 = por %p228, %p229
      %p231 = scmp.ne.s32.totalorder %s217, %s218
      %p232 = scmp.eq.s32.totalorder %s26, 7
      %p233 = por %p231, %p232
      %p235 = scmp.ne.s32.totalorder %s218, %s234
      %p236 = scmp.eq.s32.totalorder %s26, 0
      %p237 = por %p235, %p236
      %s239 = sadd.s32 %s238, 1
      %p242 = scmp.eq.s32.totalorder %s20, 7
      %p243 = scmp.ne.s32.totalorder %s238, %s240
      %p244 = scmp.eq.s32.totalorder %s20, 0
      %p245 = por %p243, %p244
      %p246 = scmp.ne.s32.totalorder %s238, %s240
      %p247 = scmp.eq.s32.totalorder %s25, 7
      %p248 = por %p246, %p247
      %p249 = scmp.ne.s32.totalorder %s240, %s241
      %p250 = scmp.eq.s32.totalorder %s25, 0
      %p251 = por %p249, %p250
      %p252 = scmp.ne.s32.totalorder %s240, %s241
      %p253 = scmp.eq.s32.totalorder %s26, 7
      %p254 = por %p252, %p253
      %p256 = scmp.ne.s32.totalorder %s241, %s255
      %p257 = scmp.eq.s32.totalorder %s26, 0
      %p258 = por %p256, %p257
      %s259 = ssub.s32 %s27, %s39
      %p260 = scmp.eq.s32.totalorder %s259, 0
      %s262 = sadd.s32 %s261, 1
      %s263 = scalar_select %p260, %s261, %s262
      %p266 = pneg %p260
      %p267 = scmp.eq.s32.totalorder %s20, 7
      %p268 = por %p266, %p267
      %p269 = scmp.ne.s32.totalorder %s261, %s264
      %p270 = scmp.eq.s32.totalorder %s20, 0
      %p271 = por %p269, %p270
      %p272 = scmp.ne.s32.totalorder %s261, %s264
      %p273 = scmp.eq.s32.totalorder %s25, 7
      %p274 = por %p272, %p273
      %p275 = scmp.ne.s32.totalorder %s264, %s265
      %p276 = scmp.eq.s32.totalorder %s25, 0
      %p277 = por %p275, %p276
      %p278 = scmp.ne.s32.totalorder %s264, %s265
      %p279 = scmp.eq.s32.totalorder %s26, 7
      %p280 = por %p278, %p279
      %p282 = scmp.ne.s32.totalorder %s265, %s281
      %p283 = scmp.eq.s32.totalorder %s26, 0
      %p284 = por %p282, %p283
      %s285 = ssub.s32 %s27, %s39
      %s286 = ssub.s32 %s28, %s35
      %s287 = sor.u32 %s285, %s286
      %p288 = scmp.eq.s32.totalorder %s287, 0
      %s290 = sadd.s32 %s289, 1
      %s291 = scalar_select %p288, %s289, %s290
      %p294 = pneg %p288
      %p295 = scmp.eq.s32.totalorder %s20, 7
      %p296 = por %p294, %p295
      %p297 = scmp.ne.s32.totalorder %s289, %s292
      %p298 = scmp.eq.s32.totalorder %s20, 0
      %p299 = por %p297, %p298
      %p300 = scmp.ne.s32.totalorder %s289, %s292
      %p301 = scmp.eq.s32.totalorder %s25, 7
      %p302 = por %p300, %p301
      %p303 = scmp.ne.s32.totalorder %s292, %s293
      %p304 = scmp.eq.s32.totalorder %s25, 0
      %p305 = por %p303, %p304
      %p306 = scmp.ne.s32.totalorder %s292, %s293
      %p307 = scmp.eq.s32.totalorder %s26, 7
      %p308 = por %p306, %p307
      %p310 = scmp.ne.s32.totalorder %s293, %s309
      %p311 = scmp.eq.s32.totalorder %s26, 0
      %p312 = por %p310, %p311
      %p313 = scmp.le.s32.totalorder 1, %s20
      %p314 = scmp.lt.s32.totalorder %s20, 9
      %p315 = pnand %p313, %p314
      %p316 = pneg %p315
      // Predicated region
      $region9: #{conformer_encoder_layer.7} parent=5 // pred_check
        _
      $region10: #{conformer_encoder_layer.7} parent=5 // pred_check_branch
        %318 = sbr.rel (%p315) target = $region12
      $region11: #{conformer_encoder_layer.7} parent=5 // pred_region
        %s319 = ssub.s32 %s20, 1
        // Predicated region
        $region13: #{conformer_encoder_layer.7} parent=11 // pred_check
          %p320 = pneg %p79
        $region14: #{conformer_encoder_layer.7} parent=11 // pred_check_branch
          %322 = sbr.rel (%p320) target = $region16
        $region15: #{conformer_encoder_layer.7} parent=11 // pred_region
          _
        $region16: #{conformer_encoder_layer.7} parent=11 // pred_fallthru
          _
        // Predicated region
        $region17: #{conformer_encoder_layer.7} parent=11 // pred_check
          %p323 = pneg %p100
        $region18: #{conformer_encoder_layer.7} parent=11 // pred_check_branch
          %325 = sbr.rel (%p323) target = $region20
        $region19: #{conformer_encoder_layer.7} parent=11 // pred_region
          _
        $region20: #{conformer_encoder_layer.7} parent=11 // pred_fallthru
          _
        // Predicated region
        $region21: #{conformer_encoder_layer.7} parent=11 // pred_check
          %p326 = pneg %p251
        $region22: #{conformer_encoder_layer.7} parent=11 // pred_check_branch
          %328 = sbr.rel (%p326) target = $region24
        $region23: #{conformer_encoder_layer.7} parent=11 // pred_region
          _
        $region24: #{conformer_encoder_layer.7} parent=11 // pred_fallthru
          _
      $region12: #{conformer_encoder_layer.7} parent=5 // pred_fallthru
        _
      %p329 = scmp.lt.s32.totalorder %s20, 8
      // Predicated region
      $region25: #{conformer_encoder_layer.7} parent=5 // pred_check
        %p330 = pneg %p329
      $region26: #{conformer_encoder_layer.7} parent=5 // pred_check_branch
        %332 = sbr.rel (%p330) target = $region28
      $region27: #{conformer_encoder_layer.7} parent=5 // pred_region
        // Predicated region
        $region29: #{conformer_encoder_layer.7} parent=27 // pred_check
          %p333 = pneg %p52
        $region30: #{conformer_encoder_layer.7} parent=27 // pred_check_branch
          %335 = sbr.rel (%p333) target = $region32
        $region31: #{conformer_encoder_layer.7} parent=27 // pred_region
          %p336 = scmp.lt.s32.totalorder %s27, 1
          %s337 = scalar_select %p336, %s27, 1
          %s338 = smul.addr %s337, 4
          %s339 = scalar_lea.vmem %s0, %s338
        $region32: #{conformer_encoder_layer.7} parent=27 // pred_fallthru
          _
        // Predicated region
        $region33: #{conformer_encoder_layer.7} parent=27 // pred_check
          %p340 = pneg %p120
        $region34: #{conformer_encoder_layer.7} parent=27 // pred_check_branch
          %342 = sbr.rel (%p340) target = $region36
        $region35: #{conformer_encoder_layer.7} parent=27 // pred_region
          %p343 = scmp.lt.s32.totalorder %s28, 3
          %s344 = scalar_select %p343, %s28, 3
          %s345 = smul.addr %s344, 8
          %s346 = smul.addr %s345, 4
          %s347 = scalar_lea.vmem %s3, %s346
        $region36: #{conformer_encoder_layer.7} parent=27 // pred_fallthru
          _
        // Predicated region
        $region37: #{conformer_encoder_layer.7} parent=27 // pred_check
          %p348 = pneg %p146
        $region38: #{conformer_encoder_layer.7} parent=27 // pred_check_branch
          %350 = sbr.rel (%p348) target = $region40
        $region39: #{conformer_encoder_layer.7} parent=27 // pred_region
          %p351 = scmp.lt.s32.totalorder %s28, 3
          %s352 = scalar_select %p351, %s28, 3
          %s353 = scalar_lea.vmem %s4, %s352
        $region40: #{conformer_encoder_layer.7} parent=27 // pred_fallthru
          _
        // Predicated region
        $region41: #{conformer_encoder_layer.7} parent=27 // pred_check
          %p354 = pneg %p172
        $region42: #{conformer_encoder_layer.7} parent=27 // pred_check_branch
          %356 = sbr.rel (%p354) target = $region44
        $region43: #{conformer_encoder_layer.7} parent=27 // pred_region
          %p357 = scmp.lt.s32.totalorder %s28, 3
          %s358 = scalar_select %p357, %s28, 3
          %s359 = scalar_lea.vmem %s5, %s358
        $region44: #{conformer_encoder_layer.7} parent=27 // pred_fallthru
          _
        // Predicated region
        $region45: #{conformer_encoder_layer.7} parent=27 // pred_check
          %p360 = pneg %p198
        $region46: #{conformer_encoder_layer.7} parent=27 // pred_check_branch
          %362 = sbr.rel (%p360) target = $region48
        $region47: #{conformer_encoder_layer.7} parent=27 // pred_region
          %p363 = scmp.lt.s32.totalorder %s28, 3
          %s364 = scalar_select %p363, %s28, 3
          %s365 = smul.addr %s364, 2
          %s366 = smul.addr %s365, 4
          %s367 = scalar_lea.vmem %s6, %s366
        $region48: #{conformer_encoder_layer.7} parent=27 // pred_fallthru
          _
        // Predicated region
        $region49: #{conformer_encoder_layer.7} parent=27 // pred_check
          %p368 = pneg %p224
        $region50: #{conformer_encoder_layer.7} parent=27 // pred_check_branch
          %370 = sbr.rel (%p368) target = $region52
        $region51: #{conformer_encoder_layer.7} parent=27 // pred_region
          %p371 = scmp.lt.s32.totalorder %s28, 3
          %s372 = scalar_select %p371, %s28, 3
          %s373 = smul.addr %s372, 2
          %s374 = smul.addr %s373, 4
          %s375 = scalar_lea.vmem %s7, %s374
        $region52: #{conformer_encoder_layer.7} parent=27 // pred_fallthru
          _
      $region28: #{conformer_encoder_layer.7} parent=5 // pred_fallthru
        _
      %p376 = scmp.le.s32.totalorder 1, %s20
      %p377 = scmp.lt.s32.totalorder %s20, 9
      %p378 = pnand %p376, %p377
      %p379 = pneg %p378
      // Predicated region
      $region53: #{conformer_encoder_layer.7} parent=5 // pred_check
        _
      $region54: #{conformer_encoder_layer.7} parent=5 // pred_check_branch
        %381 = sbr.rel (%p378) target = $region56
      $region55: #{conformer_encoder_layer.7} parent=5 // pred_region
        %s382 = ssub.s32 %s20, 1
        %p383 = scmp.lt.s32.totalorder %s29, 1
        %s384 = scalar_select %p383, %s29, 1
        %s385 = smul.addr %s384, 4
        %s386 = scalar_lea.vmem %s0, %s385
        %p387 = pneg %p58
        %p388 = pneg %p55
        %p389 = pneg %p79
        %p390 = pneg %p76
        %p391 = pneg %p100
        %p392 = pneg %p97
        %p393 = scmp.lt.s32.totalorder %s30, 3
        %s394 = scalar_select %p393, %s30, 3
        %s395 = smul.addr %s394, 8
        %s396 = smul.addr %s395, 4
        %s397 = scalar_lea.vmem %s3, %s396
        %p398 = pneg %p126
        %p399 = pneg %p123
        %p400 = scmp.lt.s32.totalorder %s30, 3
        %s401 = scalar_select %p400, %s30, 3
        %s402 = scalar_lea.vmem %s4, %s401
        %p403 = pneg %p152
        %p404 = pneg %p149
        %p405 = scmp.lt.s32.totalorder %s30, 3
        %s406 = scalar_select %p405, %s30, 3
        %s407 = scalar_lea.vmem %s5, %s406
        %p408 = pneg %p178
        %p409 = pneg %p175
        %p410 = scmp.lt.s32.totalorder %s30, 3
        %s411 = scalar_select %p410, %s30, 3
        %s412 = smul.addr %s411, 2
        %s413 = smul.addr %s412, 4
        %s414 = scalar_lea.vmem %s6, %s413
        %p415 = pneg %p204
        %p416 = pneg %p201
        %p417 = scmp.lt.s32.totalorder %s30, 3
        %s418 = scalar_select %p417, %s30, 3
        %s419 = smul.addr %s418, 2
        %s420 = smul.addr %s419, 4
        %s421 = scalar_lea.vmem %s7, %s420
        %p422 = pneg %p230
        %p423 = pneg %p227
        %p424 = pneg %p251
        %p425 = pneg %p248
        %p426 = pneg %p277
        %p427 = pneg %p274
        %p428 = scmp.lt.s32.totalorder %s29, 1
        %s429 = scalar_select %p428, %s29, 1
        %s430 = smul.addr %s429, 4
        %s431 = scalar_lea.vmem %s9, %s430
        %p432 = pneg %p305
        %p433 = pneg %p302
        %s434 = sand.u32 %s292, 1
        %s435 = scalar_lea.sflag [#allocation4], %s434
        %s436 = sand.u32 %s292, 1
        %s437 = smul.addr %s436, 8
        %s438 = scalar_lea.vmem [#allocation3], %s437
        %p439 = scmp.lt.s32.totalorder %s29, 1
        %s440 = scalar_select %p439, %s29, 1
        %s441 = smul.addr %s440, 4
        %s442 = scalar_lea.vmem %s0, %s441
        %p443 = scmp.lt.s32.totalorder %s30, 3
        %s444 = scalar_select %p443, %s30, 3
        %s445 = smul.addr %s444, 8
        %s446 = smul.addr %s445, 4
        %s447 = scalar_lea.vmem %s3, %s446
        %p448 = scmp.lt.s32.totalorder %s30, 3
        %s449 = scalar_select %p448, %s30, 3
        %s450 = scalar_lea.vmem %s4, %s449
        %p451 = scmp.lt.s32.totalorder %s30, 3
        %s452 = scalar_select %p451, %s30, 3
        %s453 = scalar_lea.vmem %s5, %s452
        %p454 = scmp.lt.s32.totalorder %s30, 3
        %s455 = scalar_select %p454, %s30, 3
        %s456 = smul.addr %s455, 2
        %s457 = smul.addr %s456, 4
        %s458 = scalar_lea.vmem %s6, %s457
        %p459 = scmp.lt.s32.totalorder %s30, 3
        %s460 = scalar_select %p459, %s30, 3
        %s461 = smul.addr %s460, 2
        %s462 = smul.addr %s461, 4
        %s463 = scalar_lea.vmem %s7, %s462
        %p464 = scmp.lt.s32.totalorder %s29, 1
        %s465 = scalar_select %p464, %s29, 1
        %s466 = smul.addr %s465, 4
        %s467 = scalar_lea.vmem %s9, %s466
        %v469 = vld [vmem:[%s442] sm:$0xf]
        %v470 = vunpack.c.l.bf16 %v469
        %p471 = scmp.eq.s32.totalorder %s30, 0
        // Predicated region
        $region57: #{conformer_encoder_layer.7} parent=55 // pred_check
          %p472 = pneg %p471
        $region58: #{conformer_encoder_layer.7} parent=55 // pred_check_branch
          %474 = sbr.rel (%p472) target = $region60
        $region59: #{conformer_encoder_layer.7} parent=55 // pred_region
          %v475 = vld [vmem:[%s8] sm:$0x1]
          %v477 = vlaneseq
          %v478 = vshrl.u32 %v477, 7
          %v479 = vsub.s32 0, %v478
          %v480 = vrot.slane %v475, %v479
          %v482 = vadd.f32 %v470, %v480
          %vm483 = vcmask 523264
          %484 = vst.msk [vmem:[#allocation2] sm:$0xff] %vm483, %v482
        $region60: #{conformer_encoder_layer.7} parent=55 // pred_fallthru
          _
        %v485 = vld [vmem:[%s1] sm:$0x1]
        %v486 = vld [vmem:[%s2] sm:$0x1]
        %vm487 = vcmask 523264
        %v488 = vsel %vm487, %v470, 0.0
        %489 = vadd.xlane.f32.xlu0 %v488
        %v490 = vpop.xlane.xlu0 %489
        %v491 = vrcp.pop 64.0
        %v492 = vmul.f32 %v490, %v491
        %v493 = vsub.f32 %v470, %v492
        %v494 = vmul.f32 %v493, %v493
        %v495 = vsel %vm487, %v494, 0.0
        %496 = vadd.xlane.f32.xlu0 %v495
        %v497 = vpop.xlane.xlu0 %496
        %v498 = vmul.f32 %v497, %v491
        %v499 = vadd.f32 %v498, 1e-05
        %v500 = vrsqrt.pop %v499
        %v501 = vmul.f32 %v493, %v500
        %v503 = vlaneseq
        %v504 = vshrl.u32 %v503, 7
        %v505 = vsub.s32 0, %v504
        %v506 = vrot.slane %v485, %v505
        %v508 = vmul.f32 %v501, %v506
        %v510 = vlaneseq
        %v511 = vshrl.u32 %v510, 7
        %v512 = vsub.s32 0, %v511
        %v513 = vrot.slane %v486, %v512
        %v515 = vadd.f32 %v508, %v513
        %v516 = vpack.c.bf16 %v515, %v515
        %v517 = vld [vmem:[%s447] sm:$0xf]
        %v518 = vld [vmem:[%s447 + $0x4] sm:$0xf]
        %v519 = vld [vmem:[%s447 + $0x8] sm:$0xf]
        %v520 = vld [vmem:[%s447 + $0xc] sm:$0xf]
        %v521 = vld [vmem:[%s447 + $0x10] sm:$0xf]
        %v522 = vld [vmem:[%s447 + $0x14] sm:$0xf]
        %v523 = vld [vmem:[%s447 + $0x18] sm:$0xf]
        %v524 = vld [vmem:[%s447 + $0x1c] sm:$0xf]
        %v533 = vunpack.c.l.b16 %v517
        %v534 = vunpack.c.l.b16 %v518
        %v535 = vunpack.c.l.b16 %v519
        %v536 = vunpack.c.l.b16 %v520
        %v537 = vunpack.c.l.b16 %v521
        %v538 = vunpack.c.l.b16 %v522
        %v539 = vunpack.c.l.b16 %v523
        %v540 = vunpack.c.l.b16 %v524
        %v541 = vpack.c.b16 %v534, %v533
        %v542 = vpack.c.b16 %v536, %v535
        %v543 = vpack.c.b16 %v538, %v537
        %v544 = vpack.c.b16 %v540, %v539
        %v550 = vsel %vm487, %v516, 0
        %552 = vmatprep.subr.bf16.mxu0 0
        %553 = vmatpush1.bf16.msra.mxu0 0
        %554 = vmatprep.subr.bf16.mxu0 0
        %555 = vmatpush1.bf16.msra.mxu0 0
        %556 = vmatprep.subr.bf16.mxu0 0
        %557 = vmatpush1.bf16.msra.mxu0 0
        %558 = vmatprep.subr.bf16.mxu0 0
        %559 = vmatpush1.bf16.msra.mxu0 0
        %560 = vmatprep.subr.bf16.mxu0 0
        %561 = vmatpush1.bf16.msra.mxu0 %v544
        %562 = vmatprep.subr.bf16.mxu0 0
        %563 = vmatpush1.bf16.msra.mxu0 %v543
        %564 = vmatprep.subr.bf16.mxu0 0
        %565 = vmatpush1.bf16.msra.mxu0 %v542
        %566 = vmatprep.subr.bf16.mxu0 0
        %567 = vmatpush1.bf16.msra.mxu0 %v541
        %568 = vmatprep.subr.bf16.mxu0 0
        %569 = vmatpush2.bf16.msra.mxu0 0
        %570 = vmatprep.subr.bf16.mxu0 0
        %571 = vmatpush2.bf16.msra.mxu0 0
        %572 = vmatprep.subr.bf16.mxu0 0
        %573 = vmatpush2.bf16.msra.mxu0 0
        %574 = vmatprep.subr.bf16.mxu0 0
        %575 = vmatpush2.bf16.msra.mxu0 0
        %576 = vmatprep.subr.bf16.mxu0 0
        %577 = vmatpush2.bf16.msra.mxu0 0
        %578 = vmatprep.subr.bf16.mxu0 0
        %579 = vmatpush2.bf16.msra.mxu0 0
        %580 = vmatprep.subr.bf16.mxu0 0
        %581 = vmatpush2.bf16.msra.mxu0 0
        %582 = vmatprep.subr.bf16.mxu0 0
        %583 = vmatpush2.bf16.msra.mxu0 0
        %584 = vmatprep.mubr.bf16.mxu0 0
        %585 = vmatmul.mubr.bf16.gmra.mxu0 %v550
        %v586 = vpop.f32.mrf.mxu0
        %v587 = vadd.f32 0.0, %v586
        %v588 = vpop.f32.mrf.mxu0
        %v589 = vpop.f32.mrf.mxu0
        %v590 = vpop.f32.mrf.mxu0
        %591 = vdwg.mxu0
        %v592 = vld [vmem:[%s450] sm:$0x1]
        %v594 = vlaneseq
        %v595 = vshrl.u32 %v594, 7
        %v596 = vsub.s32 0, %v595
        %v597 = vrot.slane %v592, %v596
        %v599 = vadd.f32 %v587, %v597
        %v600 = vpack.c.bf16 %v599, %v599
        %v601 = vld [vmem:[%s453] sm:$0x1]
        %v603 = vlaneseq
        %v604 = vshrl.u32 %v603, 7
        %v605 = vsub.s32 0, %v604
        %v606 = vrot.slane %v601, %v605
        %v608 = vadd.f32 %v587, %v606
        %v609 = vpack.c.bf16 %v608, %v608
        %v610 = vpack.c.bf16 %v587, %v587
        %v611 = vld [vmem:[%s458] sm:$0xf]
        %v612 = vld [vmem:[%s458 + $0x4] sm:$0xf]
        %v615 = vunpack.c.l.b16 %v611
        %v616 = vunpack.c.l.b16 %v612
        %v617 = vpack.c.b16 %v616, %v615
        %vm619 = vcmask 130048
        %v621 = vsel %vm619, %v609, 0
        %623 = vmatprep.subr.bf16.mxu0 0
        %624 = vmatpush1.bf16.msra.mxu0 0
        %625 = vmatprep.subr.bf16.mxu0 0
        %626 = vmatpush1.bf16.msra.mxu0 0
        %627 = vmatprep.subr.bf16.mxu0 0
        %628 = vmatpush1.bf16.msra.mxu0 0
        %629 = vmatprep.subr.bf16.mxu0 0
        %630 = vmatpush1.bf16.msra.mxu0 0
        %631 = vmatprep.subr.bf16.mxu0 0
        %632 = vmatpush1.bf16.msra.mxu0 0
        %633 = vmatprep.subr.bf16.mxu0 0
        %634 = vmatpush1.bf16.msra.mxu0 0
        %635 = vmatprep.subr.bf16.mxu0 0
        %636 = vmatpush1.bf16.msra.mxu0 0
        %637 = vmatprep.subr.bf16.mxu0 0
        %638 = vmatpush1.bf16.msra.mxu0 %v617
        %639 = vmatprep.subr.bf16.mxu0 0
        %640 = vmatpush2.bf16.msra.mxu0 0
        %641 = vmatprep.subr.bf16.mxu0 0
        %642 = vmatpush2.bf16.msra.mxu0 0
        %643 = vmatprep.subr.bf16.mxu0 0
        %644 = vmatpush2.bf16.msra.mxu0 0
        %645 = vmatprep.subr.bf16.mxu0 0
        %646 = vmatpush2.bf16.msra.mxu0 0
        %647 = vmatprep.subr.bf16.mxu0 0
        %648 = vmatpush2.bf16.msra.mxu0 0
        %649 = vmatprep.subr.bf16.mxu0 0
        %650 = vmatpush2.bf16.msra.mxu0 0
        %651 = vmatprep.subr.bf16.mxu0 0
        %652 = vmatpush2.bf16.msra.mxu0 0
        %653 = vmatprep.subr.bf16.mxu0 0
        %654 = vmatpush2.bf16.msra.mxu0 0
        %655 = vmatprep.mubr.bf16.mxu0 0
        %656 = vmatmul.mubr.bf16.gmra.mxu0 %v621
        %v657 = vpop.f32.mrf.mxu0
        %v658 = vadd.f32 0.0, %v657
        %v659 = vpop.f32.mrf.mxu0
        %v660 = vpop.f32.mrf.mxu0
        %v661 = vpop.f32.mrf.mxu0
        %662 = vdwg.mxu0
        %s664 = sor.u32 256, 120
        %665 = vrot.lane.b32.xlu0 %v658, %s664
        %v666 = vpop.permute.xlu0 %665
        %668 = vrot.lane.b32.xlu0 %v610, 112
        %v669 = vpop.permute.xlu0 %668
        %v671 = vsel %vm619, %v600, 0
        %v674 = vsel %vm619, %v669, 0
        %676 = vmatprep.subr.bf16.mxu0 0
        %677 = vmatpush1.bf16.xpose.msra.mxu0 0
        %678 = vmatprep.subr.bf16.mxu0 0
        %679 = vmatpush1.bf16.xpose.msra.mxu0 0
        %680 = vmatprep.subr.bf16.mxu0 0
        %681 = vmatpush1.bf16.xpose.msra.mxu0 0
        %682 = vmatprep.subr.bf16.mxu0 0
        %683 = vmatpush1.bf16.xpose.msra.mxu0 0
        %684 = vmatprep.subr.bf16.mxu0 0
        %685 = vmatpush1.bf16.xpose.msra.mxu0 0
        %686 = vmatprep.subr.bf16.mxu0 0
        %687 = vmatpush1.bf16.xpose.msra.mxu0 0
        %688 = vmatprep.subr.bf16.mxu0 0
        %689 = vmatpush1.bf16.xpose.msra.mxu0 0
        %690 = vmatprep.subr.bf16.mxu0 0
        %691 = vmatpush1.bf16.xpose.msra.mxu0 %v674
        %692 = vmatprep.subr.bf16.mxu0 0
        %693 = vmatpush2.bf16.xpose.msra.mxu0 0
        %694 = vmatprep.subr.bf16.mxu0 0
        %695 = vmatpush2.bf16.xpose.msra.mxu0 0
        %696 = vmatprep.subr.bf16.mxu0 0
        %697 = vmatpush2.bf16.xpose.msra.mxu0 0
        %698 = vmatprep.subr.bf16.mxu0 0
        %699 = vmatpush2.bf16.xpose.msra.mxu0 0
        %700 = vmatprep.subr.bf16.mxu0 0
        %701 = vmatpush2.bf16.xpose.msra.mxu0 0
        %702 = vmatprep.subr.bf16.mxu0 0
        %703 = vmatpush2.bf16.xpose.msra.mxu0 0
        %704 = vmatprep.subr.bf16.mxu0 0
        %705 = vmatpush2.bf16.xpose.msra.mxu0 0
        %706 = vmatprep.subr.bf16.mxu0 0
        %707 = vmatpush2.bf16.xpose.msra.mxu0 0
        %708 = vmatprep.mubr.bf16.mxu0 0
        %709 = vmatmul.mubr.bf16.gmra.mxu0 %v671
        %v710 = vpop.f32.mrf.mxu0
        %v711 = vadd.f32 %v666, %v710
        %v712 = vpop.f32.mrf.mxu0
        %v713 = vpop.f32.mrf.mxu0
        %v714 = vpop.f32.mrf.mxu0
        %715 = vdwg.mxu0
        %vm716 = vcmask 64512
        %v717 = vsel %vm716, %v711, -inf
        %718 = vmax.xlane.f32.xlu0 %v717
        %v719 = vpop.xlane.xlu0 %718
        %v720 = vsub.f32 %v711, %v719
        %v721 = vmul.f32 %v720, 1.442695
        %v722 = vpow.pop %v721
        %v723 = vsel %vm716, %v722, 0.0
        %724 = vadd.xlane.f32.xlu0 %v723
        %v725 = vpop.xlane.xlu0 %724
        %v726 = vrcp.pop %v725
        %v727 = vmul.f32 %v722, %v726
        %728 = vst.msk [vmem:[%s438] sm:$0xff] %vm716, %v727
        %v729 = vpack.c.bf16 %v727, %v727
        %730 = vrot.lane.b32.xlu0 %v610, 96
        %v731 = vpop.permute.xlu0 %730
        %v733 = vsel %vm716, %v729, 0
        %vm735 = vcmask 1043456
        %v737 = vsel %vm735, %v731, 0
        %739 = vmatprep.subr.bf16.mxu0 0
        %740 = vmatpush1.bf16.msra.mxu0 0
        %741 = vmatprep.subr.bf16.mxu0 0
        %742 = vmatpush1.bf16.msra.mxu0 0
        %743 = vmatprep.subr.bf16.mxu0 0
        %744 = vmatpush1.bf16.msra.mxu0 0
        %745 = vmatprep.subr.bf16.mxu0 0
        %746 = vmatpush1.bf16.msra.mxu0 0
        %747 = vmatprep.subr.bf16.mxu0 0
        %748 = vmatpush1.bf16.msra.mxu0 0
        %749 = vmatprep.subr.bf16.mxu0 0
        %750 = vmatpush1.bf16.msra.mxu0 0
        %751 = vmatprep.subr.bf16.mxu0 0
        %752 = vmatpush1.bf16.msra.mxu0 0
        %753 = vmatprep.subr.bf16.mxu0 0
        %754 = vmatpush1.bf16.msra.mxu0 %v737
        %755 = vmatprep.subr.bf16.mxu0 0
        %756 = vmatpush2.bf16.msra.mxu0 0
        %757 = vmatprep.subr.bf16.mxu0 0
        %758 = vmatpush2.bf16.msra.mxu0 0
        %759 = vmatprep.subr.bf16.mxu0 0
        %760 = vmatpush2.bf16.msra.mxu0 0
        %761 = vmatprep.subr.bf16.mxu0 0
        %762 = vmatpush2.bf16.msra.mxu0 0
        %763 = vmatprep.subr.bf16.mxu0 0
        %764 = vmatpush2.bf16.msra.mxu0 0
        %765 = vmatprep.subr.bf16.mxu0 0
        %766 = vmatpush2.bf16.msra.mxu0 0
        %767 = vmatprep.subr.bf16.mxu0 0
        %768 = vmatpush2.bf16.msra.mxu0 0
        %769 = vmatprep.subr.bf16.mxu0 0
        %770 = vmatpush2.bf16.msra.mxu0 0
        %771 = vmatprep.mubr.bf16.mxu0 0
        %772 = vmatmul.mubr.bf16.gmra.mxu0 %v733
        %v773 = vpop.f32.mrf.mxu0
        %v774 = vadd.f32 0.0, %v773
        %v775 = vpop.f32.mrf.mxu0
        %v776 = vpop.f32.mrf.mxu0
        %v777 = vpop.f32.mrf.mxu0
        %778 = vdwg.mxu0
        %v779 = vld [vmem:[#allocation2] sm:$0xff]
        %v780 = vpack.c.bf16 %v774, %v774
        %v781 = vld [vmem:[%s463] sm:$0xf]
        %v782 = vld [vmem:[%s463 + $0x4] sm:$0xf]
        %v785 = vunpack.c.l.b16 %v781
        %v786 = vunpack.c.l.b16 %v782
        %v787 = vpack.c.b16 %v786, %v785
        %v790 = vsel %vm619, %v780, 0
        %792 = vmatprep.subr.bf16.mxu0 0
        %793 = vmatpush1.bf16.msra.mxu0 0
        %794 = vmatprep.subr.bf16.mxu0 0
        %795 = vmatpush1.bf16.msra.mxu0 0
        %796 = vmatprep.subr.bf16.mxu0 0
        %797 = vmatpush1.bf16.msra.mxu0 0
        %798 = vmatprep.subr.bf16.mxu0 0
        %799 = vmatpush1.bf16.msra.mxu0 0
        %800 = vmatprep.subr.bf16.mxu0 0
        %801 = vmatpush1.bf16.msra.mxu0 0
        %802 = vmatprep.subr.bf16.mxu0 0
        %803 = vmatpush1.bf16.msra.mxu0 0
        %804 = vmatprep.subr.bf16.mxu0 0
        %805 = vmatpush1.bf16.msra.mxu0 0
        %806 = vmatprep.subr.bf16.mxu0 0
        %807 = vmatpush1.bf16.msra.mxu0 %v787
        %808 = vmatprep.subr.bf16.mxu0 0
        %809 = vmatpush2.bf16.msra.mxu0 0
        %810 = vmatprep.subr.bf16.mxu0 0
        %811 = vmatpush2.bf16.msra.mxu0 0
        %812 = vmatprep.subr.bf16.mxu0 0
        %813 = vmatpush2.bf16.msra.mxu0 0
        %814 = vmatprep.subr.bf16.mxu0 0
        %815 = vmatpush2.bf16.msra.mxu0 0
        %816 = vmatprep.subr.bf16.mxu0 0
        %817 = vmatpush2.bf16.msra.mxu0 0
        %818 = vmatprep.subr.bf16.mxu0 0
        %819 = vmatpush2.bf16.msra.mxu0 0
        %820 = vmatprep.subr.bf16.mxu0 0
        %821 = vmatpush2.bf16.msra.mxu0 0
        %822 = vmatprep.subr.bf16.mxu0 0
        %823 = vmatpush2.bf16.msra.mxu0 0
        %824 = vmatprep.mubr.bf16.mxu0 0
        %825 = vmatmul.mubr.bf16.gmra.mxu0 %v790
        %v826 = vpop.f32.mrf.mxu0
        %v827 = vadd.f32 0.0, %v826
        %v828 = vpop.f32.mrf.mxu0
        %v829 = vpop.f32.mrf.mxu0
        %v830 = vpop.f32.mrf.mxu0
        %831 = vdwg.mxu0
        %v832 = vadd.f32 %v779, %v827
        %833 = vst.msk [vmem:[#allocation2] sm:$0xff] %vm487, %v832
        %p834 = scmp.eq.s32.totalorder %s30, 3
        // Predicated region
        $region61: #{conformer_encoder_layer.7} parent=55 // pred_check
          %p835 = pneg %p834
        $region62: #{conformer_encoder_layer.7} parent=55 // pred_check_branch
          %837 = sbr.rel (%p835) target = $region64
        $region63: #{conformer_encoder_layer.7} parent=55 // pred_region
          %v838 = vld [vmem:[#allocation2] sm:$0xff]
          %v839 = vpack.c.bf16 %v838, %v838
          %vm840 = vcmask 519168
          %841 = vst.msk [vmem:[%s467] sm:$0xf] %vm840, %v839
        $region64: #{conformer_encoder_layer.7} parent=55 // pred_fallthru
          _
        %p842 = scmp.lt.s32.totalorder %s29, 1
        %s843 = scalar_select %p842, %s29, 1
        %s844 = smul.addr %s843, 4
        %s845 = scalar_lea.vmem %s9, %s844
        %s846 = sand.u32 %s292, 1
        %s847 = scalar_lea.sflag [#allocation4], %s846
        %s848 = sand.u32 %s292, 1
        %s849 = smul.addr %s848, 8
        %s850 = scalar_lea.vmem [#allocation3], %s849
        // Predicated region
        $region65: #{conformer_encoder_layer.7} parent=55 // pred_check
          %p851 = pneg %p274
        $region66: #{conformer_encoder_layer.7} parent=55 // pred_check_branch
          %853 = sbr.rel (%p851) target = $region68
        $region67: #{conformer_encoder_layer.7} parent=55 // pred_region
          _
        $region68: #{conformer_encoder_layer.7} parent=55 // pred_fallthru
          _
        // Predicated region
        $region69: #{conformer_encoder_layer.7} parent=55 // pred_check
          %p854 = pneg %p302
        $region70: #{conformer_encoder_layer.7} parent=55 // pred_check_branch
          %856 = sbr.rel (%p854) target = $region72
        $region71: #{conformer_encoder_layer.7} parent=55 // pred_region
          %s858 = ssub.s32 128, 128
          %859 = vsyncadd %s847, %s858
          %s860 = smul.addr %s29, 4
          %s861 = sadd.s32 %s30, %s860
          %s862 = smul.addr %s861, 128
          %s863 = scalar_lea.hbm %s10, %s862
          %s865 = sshll.u32 %s850, 4
          %s866 = int_to_ptr.vmem [resolvable:$true] %s865
          %868 = dma.vmem_to_hbm [thread:$0]  %s866, 128, %s863, %s847
        $region72: #{conformer_encoder_layer.7} parent=55 // pred_fallthru
          _
      $region56: #{conformer_encoder_layer.7} parent=5 // pred_fallthru
        _
      %p869 = scmp.le.s32.totalorder 2, %s20
      // Predicated region
      $region73: #{conformer_encoder_layer.7} parent=5 // pred_check
        %p870 = pneg %p869
      $region74: #{conformer_encoder_layer.7} parent=5 // pred_check_branch
        %872 = sbr.rel (%p870) target = $region76
      $region75: #{conformer_encoder_layer.7} parent=5 // pred_region
        %s873 = ssub.s32 %s20, 2
        // Predicated region
        $region77: #{conformer_encoder_layer.7} parent=75 // pred_check
          %p874 = pneg %p280
        $region78: #{conformer_encoder_layer.7} parent=75 // pred_check_branch
          %876 = sbr.rel (%p874) target = $region80
        $region79: #{conformer_encoder_layer.7} parent=75 // pred_region
          %p877 = scmp.lt.s32.totalorder %s31, 1
          %s878 = scalar_select %p877, %s31, 1
          %s879 = smul.addr %s878, 4
          %s880 = scalar_lea.vmem %s9, %s879
        $region80: #{conformer_encoder_layer.7} parent=75 // pred_fallthru
          _
        // Predicated region
        $region81: #{conformer_encoder_layer.7} parent=75 // pred_check
          %p881 = pneg %p308
        $region82: #{conformer_encoder_layer.7} parent=75 // pred_check_branch
          %883 = sbr.rel (%p881) target = $region84
        $region83: #{conformer_encoder_layer.7} parent=75 // pred_region
          %s884 = sand.u32 %s293, 1
          %s885 = scalar_lea.sflag [#allocation4], %s884
          %s886 = sand.u32 %s293, 1
          %s887 = smul.addr %s886, 8
          %s888 = scalar_lea.vmem [#allocation3], %s887
          %889 = dma.done %s885, 128
        $region84: #{conformer_encoder_layer.7} parent=75 // pred_fallthru
          _
      $region76: #{conformer_encoder_layer.7} parent=5 // pred_fallthru
        _
    $region6: #{conformer_encoder_layer.7} parent=1 // loop_footer
      %s24 = sadd.s32 1, %s20
    $region7: #{conformer_encoder_layer.7} parent=1 // loop_footer_branch
      %19 = sbr.rel target = $region3
    $region8: #{conformer_encoder_layer.7} parent=1 // loop_exit
      _
    %890 = vsyncpa [#allocation4], 1
    %s891 = scalar_lea.sflag [#allocation4], 1
    %892 = vsyncpa %s891, 1

// kernel: conformer_encoder_layer.8
$region0: #{conformer_encoder_layer.8}
  #allocation0 [shape = 'u32[]', space=smem, size = 0x4, offset = 0x4, fixed_abs, tag = 'smem constant byte address 0x4 - core index']
  #allocation1 [shape = 'u32[144,128]{1,0:T(1,128)}', space=vmem, size = 0x12000, scoped, tag = 'internal scratch']
  #allocation2 [shape = 'f32[14,64]{1,0:T(8,128)}', space=vmem, size = 0x2000, scoped, tag = 'scratch operand']
  %s0 = inlined_call_operand.vmem [shape: bf16[2,8,64], index: 0, kind: input, shape index: {}]
  %s1 = inlined_call_operand.vmem [shape: f32[1,64], index: 1, kind: input, shape index: {}]
  %s2 = inlined_call_operand.vmem [shape: f32[1,64], index: 2, kind: input, shape index: {}]
  %s3 = inlined_call_operand.vmem [shape: bf16[64,128], index: 3, kind: input, shape index: {}]
  %s4 = inlined_call_operand.vmem [shape: f32[1,128], index: 4, kind: input, shape index: {}]
  %s5 = inlined_call_operand.vmem [shape: f32[7,64], index: 5, kind: input, shape index: {}]
  %s6 = inlined_call_operand.vmem [shape: f32[1,64], index: 6, kind: input, shape index: {}]
  %s7 = inlined_call_operand.vmem [shape: f32[1,64], index: 7, kind: input, shape index: {}]
  %s8 = inlined_call_operand.vmem [shape: f32[1,64], index: 8, kind: input, shape index: {}]
  %s9 = inlined_call_operand.vmem [shape: bf16[64,64], index: 9, kind: input, shape index: {}]
  %s10 = inlined_call_operand.vmem [shape: f32[1,64], index: 10, kind: input, shape index: {}]
  %s11 = inlined_call_operand.vmem [shape: bf16[2,8,64], index: 11, kind: output, shape index: {}]
  %s12 = sld [smem:[#allocation0]]
  $region77: #{conformer_encoder_layer.8} parent=0
    _
  %s14 = ssub.s32 1, %s12
  %s15 = scalar_select 0, %s14, %s12
  loop: start=0, step=1, limit=4
  $region2: #{conformer_encoder_layer.8} parent=0 // loop_pre_header
    _
  $region3: #{conformer_encoder_layer.8} parent=0 // loop_header
    %s17 = sphi 0, %s21
    %p18 = scmp.ge.s32.totalorder %s17, 4
    %s27 = sphi 0, %s29
    %s30 = sphi 0, %s27
    %s31 = sphi 0, %s30
    %s47 = sphi 0, %s31
    %s51 = sphi 0, %s51
    %s53 = sphi 0, %s51
    %s54 = sphi 0, %s53
    %s68 = sphi 0, %s54
    %s72 = sphi 0, %s72
    %s74 = sphi 0, %s72
    %s75 = sphi 0, %s74
    %s89 = sphi 0, %s75
    %s93 = sphi 0, %s93
    %s95 = sphi 0, %s93
    %s96 = sphi 0, %s95
    %s110 = sphi 0, %s96
    %s114 = sphi 0, %s114
    %s116 = sphi 0, %s114
    %s117 = sphi 0, %s116
    %s131 = sphi 0, %s117
    %s135 = sphi 0, %s135
    %s137 = sphi 0, %s135
    %s138 = sphi 0, %s137
    %s152 = sphi 0, %s138
    %s156 = sphi 0, %s156
    %s158 = sphi 0, %s156
    %s159 = sphi 0, %s158
    %s173 = sphi 0, %s159
    %s177 = sphi 0, %s177
    %s179 = sphi 0, %s177
    %s180 = sphi 0, %s179
    %s194 = sphi 0, %s180
    %s198 = sphi 0, %s198
    %s200 = sphi 0, %s198
    %s201 = sphi 0, %s200
    %s215 = sphi 0, %s201
    %s219 = sphi 0, %s219
    %s221 = sphi 0, %s219
    %s222 = sphi 0, %s221
    %s236 = sphi 0, %s222
    %s240 = sphi 0, %s240
    %s242 = sphi 0, %s240
    %s243 = sphi 0, %s242
    %s257 = sphi 0, %s243
    %s263 = sphi 0, %s265
    %s266 = sphi 0, %s263
    %s267 = sphi 0, %s266
    %s283 = sphi 0, %s267
  $region4: #{conformer_encoder_layer.8} parent=0 // loop_header_branch
    %20 = sbr.rel (%p18) target = $region8
  $region5: #{conformer_encoder_layer.8} parent=0 // loop_body
    %s22 = ssub.s32 %s17, 1
    %s23 = ssub.s32 %s17, 2
    %s24 = sadd.s32 %s17, 1
    %s25 = ssub.s32 %s17, %s24
    %p26 = scmp.eq.s32.totalorder %s25, 0
    %s28 = sadd.s32 %s27, 1
    %s29 = scalar_select %p26, %s27, %s28
    %p32 = pneg %p26
    %p33 = scmp.eq.s32.totalorder %s17, 1
    %p34 = por %p32, %p33
    %p35 = scmp.ne.s32.totalorder %s27, %s30
    %p36 = scmp.eq.s32.totalorder %s17, 0
    %p37 = por %p35, %p36
    %p38 = scmp.ne.s32.totalorder %s27, %s30
    %p39 = scmp.eq.s32.totalorder %s22, 1
    %p40 = por %p38, %p39
    %p41 = scmp.ne.s32.totalorder %s30, %s31
    %p42 = scmp.eq.s32.totalorder %s22, 0
    %p43 = por %p41, %p42
    %p44 = scmp.ne.s32.totalorder %s30, %s31
    %p45 = scmp.eq.s32.totalorder %s23, 1
    %p46 = por %p44, %p45
    %p48 = scmp.ne.s32.totalorder %s31, %s47
    %p49 = scmp.eq.s32.totalorder %s23, 0
    %p50 = por %p48, %p49
    %s52 = sadd.s32 %s51, 1
    %p55 = scmp.eq.s32.totalorder %s17, 1
    %p56 = scmp.ne.s32.totalorder %s51, %s53
    %p57 = scmp.eq.s32.totalorder %s17, 0
    %p58 = por %p56, %p57
    %p59 = scmp.ne.s32.totalorder %s51, %s53
    %p60 = scmp.eq.s32.totalorder %s22, 1
    %p61 = por %p59, %p60
    %p62 = scmp.ne.s32.totalorder %s53, %s54
    %p63 = scmp.eq.s32.totalorder %s22, 0
    %p64 = por %p62, %p63
    %p65 = scmp.ne.s32.totalorder %s53, %s54
    %p66 = scmp.eq.s32.totalorder %s23, 1
    %p67 = por %p65, %p66
    %p69 = scmp.ne.s32.totalorder %s54, %s68
    %p70 = scmp.eq.s32.totalorder %s23, 0
    %p71 = por %p69, %p70
    %s73 = sadd.s32 %s72, 1
    %p76 = scmp.eq.s32.totalorder %s17, 1
    %p77 = scmp.ne.s32.totalorder %s72, %s74
    %p78 = scmp.eq.s32.totalorder %s17, 0
    %p79 = por %p77, %p78
    %p80 = scmp.ne.s32.totalorder %s72, %s74
    %p81 = scmp.eq.s32.totalorder %s22, 1
    %p82 = por %p80, %p81
    %p83 = scmp.ne.s32.totalorder %s74, %s75
    %p84 = scmp.eq.s32.totalorder %s22, 0
    %p85 = por %p83, %p84
    %p86 = scmp.ne.s32.totalorder %s74, %s75
    %p87 = scmp.eq.s32.totalorder %s23, 1
    %p88 = por %p86, %p87
    %p90 = scmp.ne.s32.totalorder %s75, %s89
    %p91 = scmp.eq.s32.totalorder %s23, 0
    %p92 = por %p90, %p91
    %s94 = sadd.s32 %s93, 1
    %p97 = scmp.eq.s32.totalorder %s17, 1
    %p98 = scmp.ne.s32.totalorder %s93, %s95
    %p99 = scmp.eq.s32.totalorder %s17, 0
    %p100 = por %p98, %p99
    %p101 = scmp.ne.s32.totalorder %s93, %s95
    %p102 = scmp.eq.s32.totalorder %s22, 1
    %p103 = por %p101, %p102
    %p104 = scmp.ne.s32.totalorder %s95, %s96
    %p105 = scmp.eq.s32.totalorder %s22, 0
    %p106 = por %p104, %p105
    %p107 = scmp.ne.s32.totalorder %s95, %s96
    %p108 = scmp.eq.s32.totalorder %s23, 1
    %p109 = por %p107, %p108
    %p111 = scmp.ne.s32.totalorder %s96, %s110
    %p112 = scmp.eq.s32.totalorder %s23, 0
    %p113 = por %p111, %p112
    %s115 = sadd.s32 %s114, 1
    %p118 = scmp.eq.s32.totalorder %s17, 1
    %p119 = scmp.ne.s32.totalorder %s114, %s116
    %p120 = scmp.eq.s32.totalorder %s17, 0
    %p121 = por %p119, %p120
    %p122 = scmp.ne.s32.totalorder %s114, %s116
    %p123 = scmp.eq.s32.totalorder %s22, 1
    %p124 = por %p122, %p123
    %p125 = scmp.ne.s32.totalorder %s116, %s117
    %p126 = scmp.eq.s32.totalorder %s22, 0
    %p127 = por %p125, %p126
    %p128 = scmp.ne.s32.totalorder %s116, %s117
    %p129 = scmp.eq.s32.totalorder %s23, 1
    %p130 = por %p128, %p129
    %p132 = scmp.ne.s32.totalorder %s117, %s131
    %p133 = scmp.eq.s32.totalorder %s23, 0
    %p134 = por %p132, %p133
    %s136 = sadd.s32 %s135, 1
    %p139 = scmp.eq.s32.totalorder %s17, 1
    %p140 = scmp.ne.s32.totalorder %s135, %s137
    %p141 = scmp.eq.s32.totalorder %s17, 0
    %p142 = por %p140, %p141
    %p143 = scmp.ne.s32.totalorder %s135, %s137
    %p144 = scmp.eq.s32.totalorder %s22, 1
    %p145 = por %p143, %p144
    %p146 = scmp.ne.s32.totalorder %s137, %s138
    %p147 = scmp.eq.s32.totalorder %s22, 0
    %p148 = por %p146, %p147
    %p149 = scmp.ne.s32.totalorder %s137, %s138
    %p150 = scmp.eq.s32.totalorder %s23, 1
    %p151 = por %p149, %p150
    %p153 = scmp.ne.s32.totalorder %s138, %s152
    %p154 = scmp.eq.s32.totalorder %s23, 0
    %p155 = por %p153, %p154
    %s157 = sadd.s32 %s156, 1
    %p160 = scmp.eq.s32.totalorder %s17, 1
    %p161 = scmp.ne.s32.totalorder %s156, %s158
    %p162 = scmp.eq.s32.totalorder %s17, 0
    %p163 = por %p161, %p162
    %p164 = scmp.ne.s32.totalorder %s156, %s158
    %p165 = scmp.eq.s32.totalorder %s22, 1
    %p166 = por %p164, %p165
    %p167 = scmp.ne.s32.totalorder %s158, %s159
    %p168 = scmp.eq.s32.totalorder %s22, 0
    %p169 = por %p167, %p168
    %p170 = scmp.ne.s32.totalorder %s158, %s159
    %p171 = scmp.eq.s32.totalorder %s23, 1
    %p172 = por %p170, %p171
    %p174 = scmp.ne.s32.totalorder %s159, %s173
    %p175 = scmp.eq.s32.totalorder %s23, 0
    %p176 = por %p174, %p175
    %s178 = sadd.s32 %s177, 1
    %p181 = scmp.eq.s32.totalorder %s17, 1
    %p182 = scmp.ne.s32.totalorder %s177, %s179
    %p183 = scmp.eq.s32.totalorder %s17, 0
    %p184 = por %p182, %p183
    %p185 = scmp.ne.s32.totalorder %s177, %s179
    %p186 = scmp.eq.s32.totalorder %s22, 1
    %p187 = por %p185, %p186
    %p188 = scmp.ne.s32.totalorder %s179, %s180
    %p189 = scmp.eq.s32.totalorder %s22, 0
    %p190 = por %p188, %p189
    %p191 = scmp.ne.s32.totalorder %s179, %s180
    %p192 = scmp.eq.s32.totalorder %s23, 1
    %p193 = por %p191, %p192
    %p195 = scmp.ne.s32.totalorder %s180, %s194
    %p196 = scmp.eq.s32.totalorder %s23, 0
    %p197 = por %p195, %p196
    %s199 = sadd.s32 %s198, 1
    %p202 = scmp.eq.s32.totalorder %s17, 1
    %p203 = scmp.ne.s32.totalorder %s198, %s200
    %p204 = scmp.eq.s32.totalorder %s17, 0
    %p205 = por %p203, %p204
    %p206 = scmp.ne.s32.totalorder %s198, %s200
    %p207 = scmp.eq.s32.totalorder %s22, 1
    %p208 = por %p206, %p207
    %p209 = scmp.ne.s32.totalorder %s200, %s201
    %p210 = scmp.eq.s32.totalorder %s22, 0
    %p211 = por %p209, %p210
    %p212 = scmp.ne.s32.totalorder %s200, %s201
    %p213 = scmp.eq.s32.totalorder %s23, 1
    %p214 = por %p212, %p213
    %p216 = scmp.ne.s32.totalorder %s201, %s215
    %p217 = scmp.eq.s32.totalorder %s23, 0
    %p218 = por %p216, %p217
    %s220 = sadd.s32 %s219, 1
    %p223 = scmp.eq.s32.totalorder %s17, 1
    %p224 = scmp.ne.s32.totalorder %s219, %s221
    %p225 = scmp.eq.s32.totalorder %s17, 0
    %p226 = por %p224, %p225
    %p227 = scmp.ne.s32.totalorder %s219, %s221
    %p228 = scmp.eq.s32.totalorder %s22, 1
    %p229 = por %p227, %p228
    %p230 = scmp.ne.s32.totalorder %s221, %s222
    %p231 = scmp.eq.s32.totalorder %s22, 0
    %p232 = por %p230, %p231
    %p233 = scmp.ne.s32.totalorder %s221, %s222
    %p234 = scmp.eq.s32.totalorder %s23, 1
    %p235 = por %p233, %p234
    %p237 = scmp.ne.s32.totalorder %s222, %s236
    %p238 = scmp.eq.s32.totalorder %s23, 0
    %p239 = por %p237, %p238
    %s241 = sadd.s32 %s240, 1
    %p244 = scmp.eq.s32.totalorder %s17, 1
    %p245 = scmp.ne.s32.totalorder %s240, %s242
    %p246 = scmp.eq.s32.totalorder %s17, 0
    %p247 = por %p245, %p246
    %p248 = scmp.ne.s32.totalorder %s240, %s242
    %p249 = scmp.eq.s32.totalorder %s22, 1
    %p250 = por %p248, %p249
    %p251 = scmp.ne.s32.totalorder %s242, %s243
    %p252 = scmp.eq.s32.totalorder %s22, 0
    %p253 = por %p251, %p252
    %p254 = scmp.ne.s32.totalorder %s242, %s243
    %p255 = scmp.eq.s32.totalorder %s23, 1
    %p256 = por %p254, %p255
    %p258 = scmp.ne.s32.totalorder %s243, %s257
    %p259 = scmp.eq.s32.totalorder %s23, 0
    %p260 = por %p258, %p259
    %s261 = ssub.s32 %s17, %s24
    %p262 = scmp.eq.s32.totalorder %s261, 0
    %s264 = sadd.s32 %s263, 1
    %s265 = scalar_select %p262, %s263, %s264
    %p268 = pneg %p262
    %p269 = scmp.eq.s32.totalorder %s17, 1
    %p270 = por %p268, %p269
    %p271 = scmp.ne.s32.totalorder %s263, %s266
    %p272 = scmp.eq.s32.totalorder %s17, 0
    %p273 = por %p271, %p272
    %p274 = scmp.ne.s32.totalorder %s263, %s266
    %p275 = scmp.eq.s32.totalorder %s22, 1
    %p276 = por %p274, %p275
    %p277 = scmp.ne.s32.totalorder %s266, %s267
    %p278 = scmp.eq.s32.totalorder %s22, 0
    %p279 = por %p277, %p278
    %p280 = scmp.ne.s32.totalorder %s266, %s267
    %p281 = scmp.eq.s32.totalorder %s23, 1
    %p282 = por %p280, %p281
    %p284 = scmp.ne.s32.totalorder %s267, %s283
    %p285 = scmp.eq.s32.totalorder %s23, 0
    %p286 = por %p284, %p285
    %p287 = scmp.le.s32.totalorder 1, %s17
    %p288 = scmp.lt.s32.totalorder %s17, 3
    %p289 = pnand %p287, %p288
    %p290 = pneg %p289
    // Predicated region
    $region9: #{conformer_encoder_layer.8} parent=5 // pred_check
      _
    $region10: #{conformer_encoder_layer.8} parent=5 // pred_check_branch
      %292 = sbr.rel (%p289) target = $region12
    $region11: #{conformer_encoder_layer.8} parent=5 // pred_region
      %s293 = ssub.s32 %s17, 1
      // Predicated region
      $region13: #{conformer_encoder_layer.8} parent=11 // pred_check
        %p294 = pneg %p64
      $region14: #{conformer_encoder_layer.8} parent=11 // pred_check_branch
        %296 = sbr.rel (%p294) target = $region16
      $region15: #{conformer_encoder_layer.8} parent=11 // pred_region
        _
      $region16: #{conformer_encoder_layer.8} parent=11 // pred_fallthru
        _
      // Predicated region
      $region17: #{conformer_encoder_layer.8} parent=11 // pred_check
        %p297 = pneg %p85
      $region18: #{conformer_encoder_layer.8} parent=11 // pred_check_branch
        %299 = sbr.rel (%p297) target = $region20
      $region19: #{conformer_encoder_layer.8} parent=11 // pred_region
        _
      $region20: #{conformer_encoder_layer.8} parent=11 // pred_fallthru
        _
      // Predicated region
      $region21: #{conformer_encoder_layer.8} parent=11 // pred_check
        %p300 = pneg %p106
      $region22: #{conformer_encoder_layer.8} parent=11 // pred_check_branch
        %302 = sbr.rel (%p300) target = $region24
      $region23: #{conformer_encoder_layer.8} parent=11 // pred_region
        _
      $region24: #{conformer_encoder_layer.8} parent=11 // pred_fallthru
        _
      // Predicated region
      $region25: #{conformer_encoder_layer.8} parent=11 // pred_check
        %p303 = pneg %p127
      $region26: #{conformer_encoder_layer.8} parent=11 // pred_check_branch
        %305 = sbr.rel (%p303) target = $region28
      $region27: #{conformer_encoder_layer.8} parent=11 // pred_region
        _
      $region28: #{conformer_encoder_layer.8} parent=11 // pred_fallthru
        _
      // Predicated region
      $region29: #{conformer_encoder_layer.8} parent=11 // pred_check
        %p306 = pneg %p148
      $region30: #{conformer_encoder_layer.8} parent=11 // pred_check_branch
        %308 = sbr.rel (%p306) target = $region32
      $region31: #{conformer_encoder_layer.8} parent=11 // pred_region
        _
      $region32: #{conformer_encoder_layer.8} parent=11 // pred_fallthru
        _
      // Predicated region
      $region33: #{conformer_encoder_layer.8} parent=11 // pred_check
        %p309 = pneg %p169
      $region34: #{conformer_encoder_layer.8} parent=11 // pred_check_branch
        %311 = sbr.rel (%p309) target = $region36
      $region35: #{conformer_encoder_layer.8} parent=11 // pred_region
        _
      $region36: #{conformer_encoder_layer.8} parent=11 // pred_fallthru
        _
      // Predicated region
      $region37: #{conformer_encoder_layer.8} parent=11 // pred_check
        %p312 = pneg %p190
      $region38: #{conformer_encoder_layer.8} parent=11 // pred_check_branch
        %314 = sbr.rel (%p312) target = $region40
      $region39: #{conformer_encoder_layer.8} parent=11 // pred_region
        _
      $region40: #{conformer_encoder_layer.8} parent=11 // pred_fallthru
        _
      // Predicated region
      $region41: #{conformer_encoder_layer.8} parent=11 // pred_check
        %p315 = pneg %p211
      $region42: #{conformer_encoder_layer.8} parent=11 // pred_check_branch
        %317 = sbr.rel (%p315) target = $region44
      $region43: #{conformer_encoder_layer.8} parent=11 // pred_region
        _
      $region44: #{conformer_encoder_layer.8} parent=11 // pred_fallthru
        _
      // Predicated region
      $region45: #{conformer_encoder_layer.8} parent=11 // pred_check
        %p318 = pneg %p232
      $region46: #{conformer_encoder_layer.8} parent=11 // pred_check_branch
        %320 = sbr.rel (%p318) target = $region48
      $region47: #{conformer_encoder_layer.8} parent=11 // pred_region
        _
      $region48: #{conformer_encoder_layer.8} parent=11 // pred_fallthru
        _
      // Predicated region
      $region49: #{conformer_encoder_layer.8} parent=11 // pred_check
        %p321 = pneg %p253
      $region50: #{conformer_encoder_layer.8} parent=11 // pred_check_branch
        %323 = sbr.rel (%p321) target = $region52
      $region51: #{conformer_encoder_layer.8} parent=11 // pred_region
        _
      $region52: #{conformer_encoder_layer.8} parent=11 // pred_fallthru
        _
    $region12: #{conformer_encoder_layer.8} parent=5 // pred_fallthru
      _
    %p324 = scmp.lt.s32.totalorder %s17, 2
    // Predicated region
    $region53: #{conformer_encoder_layer.8} parent=5 // pred_check
      %p325 = pneg %p324
    $region54: #{conformer_encoder_layer.8} parent=5 // pred_check_branch
      %327 = sbr.rel (%p325) target = $region56
    $region55: #{conformer_encoder_layer.8} parent=5 // pred_region
      // Predicated region
      $region57: #{conformer_encoder_layer.8} parent=55 // pred_check
        %p328 = pneg %p37
      $region58: #{conformer_encoder_layer.8} parent=55 // pred_check_branch
        %330 = sbr.rel (%p328) target = $region60
      $region59: #{conformer_encoder_layer.8} parent=55 // pred_region
        %p331 = scmp.lt.s32.totalorder %s17, 1
        %s332 = scalar_select %p331, %s17, 1
        %s333 = smul.addr %s332, 4
        %s334 = scalar_lea.vmem %s0, %s333
      $region60: #{conformer_encoder_layer.8} parent=55 // pred_fallthru
        _
    $region56: #{conformer_encoder_layer.8} parent=5 // pred_fallthru
      _
    %p335 = scmp.le.s32.totalorder 1, %s17
    %p336 = scmp.lt.s32.totalorder %s17, 3
    %p337 = pnand %p335, %p336
    %p338 = pneg %p337
    // Predicated region
    $region61: #{conformer_encoder_layer.8} parent=5 // pred_check
      _
    $region62: #{conformer_encoder_layer.8} parent=5 // pred_check_branch
      %340 = sbr.rel (%p337) target = $region64
    $region63: #{conformer_encoder_layer.8} parent=5 // pred_region
      %s341 = ssub.s32 %s17, 1
      %p342 = scmp.lt.s32.totalorder %s22, 1
      %s343 = scalar_select %p342, %s22, 1
      %s344 = smul.addr %s343, 4
      %s345 = scalar_lea.vmem %s0, %s344
      %p346 = pneg %p43
      %p347 = pneg %p40
      %p348 = pneg %p64
      %p349 = pneg %p61
      %p350 = pneg %p85
      %p351 = pneg %p82
      %p352 = pneg %p106
      %p353 = pneg %p103
      %p354 = pneg %p127
      %p355 = pneg %p124
      %p356 = pneg %p148
      %p357 = pneg %p145
      %p358 = pneg %p169
      %p359 = pneg %p166
      %p360 = pneg %p190
      %p361 = pneg %p187
      %p362 = pneg %p211
      %p363 = pneg %p208
      %p364 = pneg %p232
      %p365 = pneg %p229
      %p366 = pneg %p253
      %p367 = pneg %p250
      %p368 = pneg %p279
      %p369 = pneg %p276
      %p370 = scmp.lt.s32.totalorder %s22, 1
      %s371 = scalar_select %p370, %s22, 1
      %s372 = smul.addr %s371, 4
      %s373 = scalar_lea.vmem %s11, %s372
      %p374 = scmp.lt.s32.totalorder %s22, 1
      %s375 = scalar_select %p374, %s22, 1
      %s376 = smul.addr %s375, 4
      %s377 = scalar_lea.vmem %s0, %s376
      %p378 = scmp.lt.s32.totalorder %s22, 1
      %s379 = scalar_select %p378, %s22, 1
      %s380 = smul.addr %s379, 4
      %s381 = scalar_lea.vmem %s11, %s380
      %v383 = vld [vmem:[%s377] sm:$0xf]
      %v384 = vunpack.c.l.bf16 %v383
      %v385 = vld [vmem:[%s1] sm:$0x1]
      %v386 = vld [vmem:[%s2] sm:$0x1]
      %vm387 = vcmask 523264
      %v388 = vsel %vm387, %v384, 0.0
      %389 = vadd.xlane.f32.xlu0 %v388
      %v390 = vpop.xlane.xlu0 %389
      %v391 = vrcp.pop 64.0
      %v392 = vmul.f32 %v390, %v391
      %v393 = vsub.f32 %v384, %v392
      %v394 = vmul.f32 %v393, %v393
      %v395 = vsel %vm387, %v394, 0.0
      %396 = vadd.xlane.f32.xlu0 %v395
      %v397 = vpop.xlane.xlu0 %396
      %v398 = vmul.f32 %v397, %v391
      %v399 = vadd.f32 %v398, 1e-05
      %v400 = vrsqrt.pop %v399
      %v401 = vmul.f32 %v393, %v400
      %v403 = vlaneseq
      %v404 = vshrl.u32 %v403, 7
      %v405 = vsub.s32 0, %v404
      %v406 = vrot.slane %v385, %v405
      %v408 = vmul.f32 %v401, %v406
      %v410 = vlaneseq
      %v411 = vshrl.u32 %v410, 7
      %v412 = vsub.s32 0, %v411
      %v413 = vrot.slane %v386, %v412
      %v415 = vadd.f32 %v408, %v413
      %v416 = vpack.c.bf16 %v415, %v415
      %v417 = vld [vmem:[%s3] sm:$0xf]
      %v418 = vld [vmem:[%s3 + $0x4] sm:$0xf]
      %v419 = vld [vmem:[%s3 + $0x8] sm:$0xf]
      %v420 = vld [vmem:[%s3 + $0xc] sm:$0xf]
      %v421 = vld [vmem:[%s3 + $0x10] sm:$0xf]
      %v422 = vld [vmem:[%s3 + $0x14] sm:$0xf]
      %v423 = vld [vmem:[%s3 + $0x18] sm:$0xf]
      %v424 = vld [vmem:[%s3 + $0x1c] sm:$0xf]
      %v425 = vld [vmem:[%s4] sm:$0x1]
      %v427 = vlaneseq
      %v428 = vshrl.u32 %v427, 7
      %v429 = vsub.s32 0, %v428
      %v430 = vrot.slane %v425, %v429
      %v440 = vunpack.c.l.b16 %v417
      %v441 = vunpack.c.l.b16 %v418
      %v442 = vunpack.c.l.b16 %v419
      %v443 = vunpack.c.l.b16 %v420
      %v444 = vunpack.c.l.b16 %v421
      %v445 = vunpack.c.l.b16 %v422
      %v446 = vunpack.c.l.b16 %v423
      %v447 = vunpack.c.l.b16 %v424
      %v448 = vpack.c.b16 %v441, %v440
      %v449 = vpack.c.b16 %v443, %v442
      %v450 = vpack.c.b16 %v445, %v444
      %v451 = vpack.c.b16 %v447, %v446
      %v457 = vsel %vm387, %v416, 0
      %459 = vmatprep.subr.bf16.mxu0 0
      %460 = vmatpush1.bf16.msra.mxu0 0
      %461 = vmatprep.subr.bf16.mxu0 0
      %462 = vmatpush1.bf16.msra.mxu0 0
      %463 = vmatprep.subr.bf16.mxu0 0
      %464 = vmatpush1.bf16.msra.mxu0 0
      %465 = vmatprep.subr.bf16.mxu0 0
      %466 = vmatpush1.bf16.msra.mxu0 0
      %467 = vmatprep.subr.bf16.mxu0 0
      %468 = vmatpush1.bf16.msra.mxu0 %v451
      %469 = vmatprep.subr.bf16.mxu0 0
      %470 = vmatpush1.bf16.msra.mxu0 %v450
      %471 = vmatprep.subr.bf16.mxu0 0
      %472 = vmatpush1.bf16.msra.mxu0 %v449
      %473 = vmatprep.subr.bf16.mxu0 0
      %474 = vmatpush1.bf16.msra.mxu0 %v448
      %475 = vmatprep.subr.bf16.mxu0 0
      %476 = vmatpush2.bf16.msra.mxu0 0
      %477 = vmatprep.subr.bf16.mxu0 0
      %478 = vmatpush2.bf16.msra.mxu0 0
      %479 = vmatprep.subr.bf16.mxu0 0
      %480 = vmatpush2.bf16.msra.mxu0 0
      %481 = vmatprep.subr.bf16.mxu0 0
      %482 = vmatpush2.bf16.msra.mxu0 0
      %483 = vmatprep.subr.bf16.mxu0 0
      %484 = vmatpush2.bf16.msra.mxu0 0
      %485 = vmatprep.subr.bf16.mxu0 0
      %486 = vmatpush2.bf16.msra.mxu0 0
      %487 = vmatprep.subr.bf16.mxu0 0
      %488 = vmatpush2.bf16.msra.mxu0 0
      %489 = vmatprep.subr.bf16.mxu0 0
      %490 = vmatpush2.bf16.msra.mxu0 0
      %491 = vmatprep.mubr.bf16.mxu0 0
      %492 = vmatmul.mubr.bf16.gmra.mxu0 %v457
      %v493 = vpop.f32.mrf.mxu0
      %v494 = vadd.f32 %v430, %v493
      %v495 = vpop.f32.mrf.mxu0
      %v496 = vpop.f32.mrf.mxu0
      %v497 = vpop.f32.mrf.mxu0
      %498 = vdwg.mxu0
      %v499 = vsub.f32 0.0, %v494
      %v500 = vmul.f32 %v499, 1.442695
      %v501 = vpow.pop %v500
      %v502 = vadd.f32 %v501, 1.0
      %v503 = vrcp.pop %v502
      %v504 = vmul.f32 1.0, %v503
      %506 = vrot.lane.b32.xlu0 %v504, 64
      %v507 = vpop.permute.xlu0 %506
      %v509 = vmul.f32 %v494, %v507
      %vm510 = vcmask 518144
      %511 = vst.msk [vmem:[#allocation2] sm:$0x7] %vm510, 0.0
      %512 = vst.msk [vmem:[#allocation2 + $0xb] sm:$0x7] %vm510, 0.0
      %513 = vst.msk [vmem:[#allocation2 + $0x3] sm:$0xff] %vm387, %v509
      %v514 = vld [vmem:[%s5] sm:$0x7f]
      %v515 = vld [vmem:[#allocation2] sm:$0xff]
      %v516 = vlaneseq
      %v517 = vshrl.u32 %v516, 7
      %v518 = vsub.s32 0, %v517
      %v519 = vrot.slane %v514, %v518
      %v520 = vmul.f32 %v515, %v519
      %v521 = vadd.f32 %v520, 0.0
      %v522 = vld [vmem:[#allocation2 + $0x1] sm:$0xff]
      %v523 = vlaneseq
      %v524 = vshrl.u32 %v523, 7
      %v525 = vsub.s32 1, %v524
      %v526 = vrot.slane %v514, %v525
      %v527 = vmul.f32 %v522, %v526
      %v528 = vadd.f32 %v521, %v527
      %v529 = vld [vmem:[#allocation2 + $0x2] sm:$0xff]
      %v530 = vlaneseq
      %v531 = vshrl.u32 %v530, 7
      %v532 = vsub.s32 2, %v531
      %v533 = vrot.slane %v514, %v532
      %v534 = vmul.f32 %v529, %v533
      %v535 = vadd.f32 %v528, %v534
      %v536 = vld [vmem:[#allocation2 + $0x3] sm:$0xff]
      %v537 = vlaneseq
      %v538 = vshrl.u32 %v537, 7
      %v539 = vsub.s32 3, %v538
      %v540 = vrot.slane %v514, %v539
      %v541 = vmul.f32 %v536, %v540
      %v542 = vadd.f32 %v535, %v541
      %v543 = vld [vmem:[#allocation2 + $0x4] sm:$0xff]
      %v544 = vlaneseq
      %v545 = vshrl.u32 %v544, 7
      %v546 = vsub.s32 4, %v545
      %v547 = vrot.slane %v514, %v546
      %v548 = vmul.f32 %v543, %v547
      %v549 = vadd.f32 %v542, %v548
      %v550 = vld [vmem:[#allocation2 + $0x5] sm:$0xff]
      %v551 = vlaneseq
      %v552 = vshrl.u32 %v551, 7
      %v553 = vsub.s32 5, %v552
      %v554 = vrot.slane %v514, %v553
      %v555 = vmul.f32 %v550, %v554
      %v556 = vadd.f32 %v549, %v555
      %v557 = vld [vmem:[#allocation2 + $0x6] sm:$0xff]
      %v558 = vlaneseq
      %v559 = vshrl.u32 %v558, 7
      %v560 = vsub.s32 6, %v559
      %v561 = vrot.slane %v514, %v560
      %v562 = vmul.f32 %v557, %v561
      %v563 = vadd.f32 %v556, %v562
      %v564 = vld [vmem:[%s6] sm:$0x1]
      %v566 = vlaneseq
      %v567 = vshrl.u32 %v566, 7
      %v568 = vsub.s32 0, %v567
      %v569 = vrot.slane %v564, %v568
      %v571 = vadd.f32 %v563, %v569
      %v572 = vld [vmem:[%s7] sm:$0x1]
      %v573 = vld [vmem:[%s8] sm:$0x1]
      %v574 = vsel %vm387, %v571, 0.0
      %575 = vadd.xlane.f32.xlu0 %v574
      %v576 = vpop.xlane.xlu0 %575
      %v577 = vmul.f32 %v576, %v391
      %v578 = vsub.f32 %v571, %v577
      %v579 = vmul.f32 %v578, %v578
      %v580 = vsel %vm387, %v579, 0.0
      %581 = vadd.xlane.f32.xlu0 %v580
      %v582 = vpop.xlane.xlu0 %581
      %v583 = vmul.f32 %v582, %v391
      %v584 = vadd.f32 %v583, 1e-05
      %v585 = vrsqrt.pop %v584
      %v586 = vmul.f32 %v578, %v585
      %v588 = vlaneseq
      %v589 = vshrl.u32 %v588, 7
      %v590 = vsub.s32 0, %v589
      %v591 = vrot.slane %v572, %v590
      %v593 = vmul.f32 %v586, %v591
      %v595 = vlaneseq
      %v596 = vshrl.u32 %v595, 7
      %v597 = vsub.s32 0, %v596
      %v598 = vrot.slane %v573, %v597
      %v600 = vadd.f32 %v593, %v598
      %v601 = vsub.f32 0.0, %v600
      %v602 = vmul.f32 %v601, 1.442695
      %v603 = vpow.pop %v602
      %v604 = vadd.f32 %v603, 1.0
      %v605 = vrcp.pop %v604
      %v606 = vmul.f32 1.0, %v605
      %v607 = vmul.f32 %v600, %v606
      %v608 = vpack.c.bf16 %v607, %v607
      %v609 = vld [vmem:[%s9] sm:$0xf]
      %v610 = vld [vmem:[%s9 + $0x4] sm:$0xf]
      %v611 = vld [vmem:[%s9 + $0x8] sm:$0xf]
      %v612 = vld [vmem:[%s9 + $0xc] sm:$0xf]
      %v613 = vld [vmem:[%s9 + $0x10] sm:$0xf]
      %v614 = vld [vmem:[%s9 + $0x14] sm:$0xf]
      %v615 = vld [vmem:[%s9 + $0x18] sm:$0xf]
      %v616 = vld [vmem:[%s9 + $0x1c] sm:$0xf]
      %v617 = vld [vmem:[%s10] sm:$0x1]
      %v619 = vlaneseq
      %v620 = vshrl.u32 %v619, 7
      %v621 = vsub.s32 0, %v620
      %v622 = vrot.slane %v617, %v621
      %v632 = vunpack.c.l.b16 %v609
      %v633 = vunpack.c.l.b16 %v610
      %v634 = vunpack.c.l.b16 %v611
      %v635 = vunpack.c.l.b16 %v612
      %v636 = vunpack.c.l.b16 %v613
      %v637 = vunpack.c.l.b16 %v614
      %v638 = vunpack.c.l.b16 %v615
      %v639 = vunpack.c.l.b16 %v616
      %v640 = vpack.c.b16 %v633, %v632
      %v641 = vpack.c.b16 %v635, %v634
      %v642 = vpack.c.b16 %v637, %v636
      %v643 = vpack.c.b16 %v639, %v638
      %v649 = vsel %vm387, %v608, 0
      %651 = vmatprep.subr.bf16.mxu0 0
      %652 = vmatpush1.bf16.msra.mxu0 0
      %653 = vmatprep.subr.bf16.mxu0 0
      %654 = vmatpush1.bf16.msra.mxu0 0
      %655 = vmatprep.subr.bf16.mxu0 0
      %656 = vmatpush1.bf16.msra.mxu0 0
      %657 = vmatprep.subr.bf16.mxu0 0
      %658 = vmatpush1.bf16.msra.mxu0 0
      %659 = vmatprep.subr.bf16.mxu0 0
      %660 = vmatpush1.bf16.msra.mxu0 %v643
      %661 = vmatprep.subr.bf16.mxu0 0
      %662 = vmatpush1.bf16.msra.mxu0 %v642
      %663 = vmatprep.subr.bf16.mxu0 0
      %664 = vmatpush1.bf16.msra.mxu0 %v641
      %665 = vmatprep.subr.bf16.mxu0 0
      %666 = vmatpush1.bf16.msra.mxu0 %v640
      %667 = vmatprep.subr.bf16.mxu0 0
      %668 = vmatpush2.bf16.msra.mxu0 0
      %669 = vmatprep.subr.bf16.mxu0 0
      %670 = vmatpush2.bf16.msra.mxu0 0
      %671 = vmatprep.subr.bf16.mxu0 0
      %672 = vmatpush2.bf16.msra.mxu0 0
      %673 = vmatprep.subr.bf16.mxu0 0
      %674 = vmatpush2.bf16.msra.mxu0 0
      %675 = vmatprep.subr.bf16.mxu0 0
      %676 = vmatpush2.bf16.msra.mxu0 0
      %677 = vmatprep.subr.bf16.mxu0 0
      %678 = vmatpush2.bf16.msra.mxu0 0
      %679 = vmatprep.subr.bf16.mxu0 0
      %680 = vmatpush2.bf16.msra.mxu0 0
      %681 = vmatprep.subr.bf16.mxu0 0
      %682 = vmatpush2.bf16.msra.mxu0 0
      %683 = vmatprep.mubr.bf16.mxu0 0
      %684 = vmatmul.mubr.bf16.gmra.mxu0 %v649
      %v685 = vpop.f32.mrf.mxu0
      %v686 = vadd.f32 %v622, %v685
      %v687 = vpop.f32.mrf.mxu0
      %v688 = vpop.f32.mrf.mxu0
      %v689 = vpop.f32.mrf.mxu0
      %690 = vdwg.mxu0
      %v691 = vadd.f32 %v384, %v686
      %v692 = vpack.c.bf16 %v691, %v691
      %vm693 = vcmask 519168
      %694 = vst.msk [vmem:[%s381] sm:$0xf] %vm693, %v692
      %p695 = scmp.lt.s32.totalorder %s22, 1
      %s696 = scalar_select %p695, %s22, 1
      %s697 = smul.addr %s696, 4
      %s698 = scalar_lea.vmem %s11, %s697
      // Predicated region
      $region65: #{conformer_encoder_layer.8} parent=63 // pred_check
        %p699 = pneg %p276
      $region66: #{conformer_encoder_layer.8} parent=63 // pred_check_branch
        %701 = sbr.rel (%p699) target = $region68
      $region67: #{conformer_encoder_layer.8} parent=63 // pred_region
        _
      $region68: #{conformer_encoder_layer.8} parent=63 // pred_fallthru
        _
    $region64: #{conformer_encoder_layer.8} parent=5 // pred_fallthru
      _
    %p702 = scmp.le.s32.totalorder 2, %s17
    // Predicated region
    $region69: #{conformer_encoder_layer.8} parent=5 // pred_check
      %p703 = pneg %p702
    $region70: #{conformer_encoder_layer.8} parent=5 // pred_check_branch
      %705 = sbr.rel (%p703) target = $region72
    $region71: #{conformer_encoder_layer.8} parent=5 // pred_region
      %s706 = ssub.s32 %s17, 2
      // Predicated region
      $region73: #{conformer_encoder_layer.8} parent=71 // pred_check
        %p707 = pneg %p282
      $region74: #{conformer_encoder_layer.8} parent=71 // pred_check_branch
        %709 = sbr.rel (%p707) target = $region76
      $region75: #{conformer_encoder_layer.8} parent=71 // pred_region
        %p710 = scmp.lt.s32.totalorder %s23, 1
        %s711 = scalar_select %p710, %s23, 1
        %s712 = smul.addr %s711, 4
        %s713 = scalar_lea.vmem %s11, %s712
      $region76: #{conformer_encoder_layer.8} parent=71 // pred_fallthru
        _
    $region72: #{conformer_encoder_layer.8} parent=5 // pred_fallthru
      _
  $region6: #{conformer_encoder_layer.8} parent=0 // loop_footer
    %s21 = sadd.s32 1, %s17
  $region7: #{conformer_encoder_layer.8} parent=0 // loop_footer_branch
    %16 = sbr.rel target = $region3
  $region8: #{conformer_encoder_layer.8} parent=0 // loop_exit
    _

// kernel: conformer_encoder_layer.9
$region0: #{conformer_encoder_layer.9}
  #allocation0 [shape = 'u32[]', space=smem, size = 0x4, offset = 0x4, fixed_abs, tag = 'smem constant byte address 0x4 - core index']
  #allocation1 [shape = 'u32[144,128]{1,0:T(1,128)}', space=vmem, size = 0x12000, scoped, tag = 'internal scratch']
  %s0 = inlined_call_operand.vmem [shape: bf16[16,64], index: 0, kind: input, shape index: {}]
  %s1 = inlined_call_operand.vmem [shape: f32[1,64], index: 1, kind: input, shape index: {}]
  %s2 = inlined_call_operand.vmem [shape: f32[1,64], index: 2, kind: input, shape index: {}]
  %s3 = inlined_call_operand.vmem [shape: bf16[64,128], index: 3, kind: input, shape index: {}]
  %s4 = inlined_call_operand.vmem [shape: f32[1,128], index: 4, kind: input, shape index: {}]
  %s5 = inlined_call_operand.vmem [shape: bf16[128,64], index: 5, kind: input, shape index: {}]
  %s6 = inlined_call_operand.vmem [shape: f32[1,64], index: 6, kind: input, shape index: {}]
  %s7 = inlined_call_operand.vmem [shape: f32[1,64], index: 7, kind: input, shape index: {}]
  %s8 = inlined_call_operand.vmem [shape: f32[1,64], index: 8, kind: input, shape index: {}]
  %s9 = inlined_call_operand.hbm [shape: f32[16,64], index: 9, kind: output, shape index: {}]
  %s10 = sld [smem:[#allocation0]]
  $region46: #{conformer_encoder_layer.9} parent=0
    _
  %s12 = ssub.s32 1, %s10
  %s13 = scalar_select 0, %s12, %s10
  $region1: #{conformer_encoder_layer.9} parent=0
    #allocation2 [shape = 'u8[8192]{0}', space=vmem, size = 0x2000, scoped, tag = 'output window, operand 0, single buffered']
    #allocation3 [shape = 's32[1]{0}', space=sflag, size = 0x4, scoped, tag = 'scoped memory for conformer_encoder_layer.9']
    %14 = vsyncpa [#allocation3], 0
    // Predicated region
    $region2: #{conformer_encoder_layer.9} parent=1 // pred_check
      _
    $region3: #{conformer_encoder_layer.9} parent=1 // pred_check_branch
      %16 = sbr.rel (0) target = $region5
    $region4: #{conformer_encoder_layer.9} parent=1 // pred_region
      _
    $region5: #{conformer_encoder_layer.9} parent=1 // pred_fallthru
      _
    // Predicated region
    $region6: #{conformer_encoder_layer.9} parent=1 // pred_check
      _
    $region7: #{conformer_encoder_layer.9} parent=1 // pred_check_branch
      %18 = sbr.rel (0) target = $region9
    $region8: #{conformer_encoder_layer.9} parent=1 // pred_region
      _
    $region9: #{conformer_encoder_layer.9} parent=1 // pred_fallthru
      _
    // Predicated region
    $region10: #{conformer_encoder_layer.9} parent=1 // pred_check
      _
    $region11: #{conformer_encoder_layer.9} parent=1 // pred_check_branch
      %20 = sbr.rel (0) target = $region13
    $region12: #{conformer_encoder_layer.9} parent=1 // pred_region
      _
    $region13: #{conformer_encoder_layer.9} parent=1 // pred_fallthru
      _
    // Predicated region
    $region14: #{conformer_encoder_layer.9} parent=1 // pred_check
      _
    $region15: #{conformer_encoder_layer.9} parent=1 // pred_check_branch
      %22 = sbr.rel (0) target = $region17
    $region16: #{conformer_encoder_layer.9} parent=1 // pred_region
      _
    $region17: #{conformer_encoder_layer.9} parent=1 // pred_fallthru
      _
    // Predicated region
    $region18: #{conformer_encoder_layer.9} parent=1 // pred_check
      _
    $region19: #{conformer_encoder_layer.9} parent=1 // pred_check_branch
      %24 = sbr.rel (0) target = $region21
    $region20: #{conformer_encoder_layer.9} parent=1 // pred_region
      _
    $region21: #{conformer_encoder_layer.9} parent=1 // pred_fallthru
      _
    // Predicated region
    $region22: #{conformer_encoder_layer.9} parent=1 // pred_check
      _
    $region23: #{conformer_encoder_layer.9} parent=1 // pred_check_branch
      %26 = sbr.rel (0) target = $region25
    $region24: #{conformer_encoder_layer.9} parent=1 // pred_region
      _
    $region25: #{conformer_encoder_layer.9} parent=1 // pred_fallthru
      _
    // Predicated region
    $region26: #{conformer_encoder_layer.9} parent=1 // pred_check
      _
    $region27: #{conformer_encoder_layer.9} parent=1 // pred_check_branch
      %28 = sbr.rel (0) target = $region29
    $region28: #{conformer_encoder_layer.9} parent=1 // pred_region
      _
    $region29: #{conformer_encoder_layer.9} parent=1 // pred_fallthru
      _
    // Predicated region
    $region30: #{conformer_encoder_layer.9} parent=1 // pred_check
      _
    $region31: #{conformer_encoder_layer.9} parent=1 // pred_check_branch
      %30 = sbr.rel (0) target = $region33
    $region32: #{conformer_encoder_layer.9} parent=1 // pred_region
      _
    $region33: #{conformer_encoder_layer.9} parent=1 // pred_fallthru
      _
    // Predicated region
    $region34: #{conformer_encoder_layer.9} parent=1 // pred_check
      _
    $region35: #{conformer_encoder_layer.9} parent=1 // pred_check_branch
      %32 = sbr.rel (0) target = $region37
    $region36: #{conformer_encoder_layer.9} parent=1 // pred_region
      _
    $region37: #{conformer_encoder_layer.9} parent=1 // pred_fallthru
      _
    %v34 = vld [vmem:[%s0] sm:$0xf]
    %v35 = vld [vmem:[%s0 + $0x4] sm:$0xf]
    %v36 = vunpack.c.l.bf16 %v34
    %v37 = vunpack.c.l.bf16 %v35
    %v38 = vld [vmem:[%s1] sm:$0x1]
    %v39 = vld [vmem:[%s2] sm:$0x1]
    %vm40 = vcmask 523264
    %v41 = vsel %vm40, %v36, 0.0
    %42 = vadd.xlane.f32.xlu0 %v41
    %v43 = vpop.xlane.xlu0 %42
    %v44 = vsel %vm40, %v37, 0.0
    %45 = vadd.xlane.f32.xlu0 %v44
    %v46 = vpop.xlane.xlu0 %45
    %v47 = vrcp.pop 64.0
    %v48 = vmul.f32 %v43, %v47
    %v49 = vmul.f32 %v46, %v47
    %v50 = vsub.f32 %v36, %v48
    %v51 = vsub.f32 %v37, %v49
    %v52 = vmul.f32 %v50, %v50
    %v53 = vmul.f32 %v51, %v51
    %v54 = vsel %vm40, %v52, 0.0
    %55 = vadd.xlane.f32.xlu0 %v54
    %v56 = vpop.xlane.xlu0 %55
    %v57 = vsel %vm40, %v53, 0.0
    %58 = vadd.xlane.f32.xlu0 %v57
    %v59 = vpop.xlane.xlu0 %58
    %v60 = vmul.f32 %v56, %v47
    %v61 = vmul.f32 %v59, %v47
    %v62 = vadd.f32 %v60, 1e-05
    %v63 = vadd.f32 %v61, 1e-05
    %v64 = vrsqrt.pop %v62
    %v65 = vrsqrt.pop %v63
    %v66 = vmul.f32 %v50, %v64
    %v67 = vmul.f32 %v51, %v65
    %v69 = vlaneseq
    %v70 = vshrl.u32 %v69, 7
    %v71 = vsub.s32 0, %v70
    %v72 = vrot.slane %v38, %v71
    %v74 = vmul.f32 %v66, %v72
    %v75 = vmul.f32 %v67, %v72
    %v77 = vlaneseq
    %v78 = vshrl.u32 %v77, 7
    %v79 = vsub.s32 0, %v78
    %v80 = vrot.slane %v39, %v79
    %v82 = vadd.f32 %v74, %v80
    %v83 = vadd.f32 %v75, %v80
    %v84 = vpack.c.bf16 %v83, %v82
    %v85 = vld [vmem:[%s3] sm:$0xf]
    %v86 = vld [vmem:[%s3 + $0x4] sm:$0xf]
    %v87 = vld [vmem:[%s3 + $0x8] sm:$0xf]
    %v88 = vld [vmem:[%s3 + $0xc] sm:$0xf]
    %v89 = vld [vmem:[%s3 + $0x10] sm:$0xf]
    %v90 = vld [vmem:[%s3 + $0x14] sm:$0xf]
    %v91 = vld [vmem:[%s3 + $0x18] sm:$0xf]
    %v92 = vld [vmem:[%s3 + $0x1c] sm:$0xf]
    %v93 = vld [vmem:[%s4] sm:$0x1]
    %v95 = vlaneseq
    %v96 = vshrl.u32 %v95, 7
    %v97 = vsub.s32 0, %v96
    %v98 = vrot.slane %v93, %v97
    %v108 = vunpack.c.l.b16 %v85
    %v109 = vunpack.c.l.b16 %v86
    %v110 = vunpack.c.l.b16 %v87
    %v111 = vunpack.c.l.b16 %v88
    %v112 = vunpack.c.l.b16 %v89
    %v113 = vunpack.c.l.b16 %v90
    %v114 = vunpack.c.l.b16 %v91
    %v115 = vunpack.c.l.b16 %v92
    %v116 = vpack.c.b16 %v109, %v108
    %v117 = vpack.c.b16 %v111, %v110
    %v118 = vpack.c.b16 %v113, %v112
    %v119 = vpack.c.b16 %v115, %v114
    %v125 = vsel %vm40, %v84, 0
    %127 = vmatprep.subr.bf16.mxu0 0
    %128 = vmatpush1.bf16.msra.mxu0 0
    %129 = vmatprep.subr.bf16.mxu0 0
    %130 = vmatpush1.bf16.msra.mxu0 0
    %131 = vmatprep.subr.bf16.mxu0 0
    %132 = vmatpush1.bf16.msra.mxu0 0
    %133 = vmatprep.subr.bf16.mxu0 0
    %134 = vmatpush1.bf16.msra.mxu0 0
    %135 = vmatprep.subr.bf16.mxu0 0
    %136 = vmatpush1.bf16.msra.mxu0 %v119
    %137 = vmatprep.subr.bf16.mxu0 0
    %138 = vmatpush1.bf16.msra.mxu0 %v118
    %139 = vmatprep.subr.bf16.mxu0 0
    %140 = vmatpush1.bf16.msra.mxu0 %v117
    %141 = vmatprep.subr.bf16.mxu0 0
    %142 = vmatpush1.bf16.msra.mxu0 %v116
    %143 = vmatprep.subr.bf16.mxu0 0
    %144 = vmatpush2.bf16.msra.mxu0 0
    %145 = vmatprep.subr.bf16.mxu0 0
    %146 = vmatpush2.bf16.msra.mxu0 0
    %147 = vmatprep.subr.bf16.mxu0 0
    %148 = vmatpush2.bf16.msra.mxu0 0
    %149 = vmatprep.subr.bf16.mxu0 0
    %150 = vmatpush2.bf16.msra.mxu0 0
    %151 = vmatprep.subr.bf16.mxu0 0
    %152 = vmatpush2.bf16.msra.mxu0 0
    %153 = vmatprep.subr.bf16.mxu0 0
    %154 = vmatpush2.bf16.msra.mxu0 0
    %155 = vmatprep.subr.bf16.mxu0 0
    %156 = vmatpush2.bf16.msra.mxu0 0
    %157 = vmatprep.subr.bf16.mxu0 0
    %158 = vmatpush2.bf16.msra.mxu0 0
    %159 = vmatprep.mubr.bf16.mxu0 0
    %160 = vmatmul.mubr.bf16.gmra.mxu0 %v125
    %v161 = vpop.f32.mrf.mxu0
    %v162 = vadd.f32 %v98, %v161
    %v163 = vpop.f32.mrf.mxu0
    %v164 = vpop.f32.mrf.mxu0
    %v165 = vadd.f32 %v98, %v164
    %v166 = vpop.f32.mrf.mxu0
    %167 = vdwg.mxu0
    %v168 = vsub.f32 0.0, %v162
    %v169 = vsub.f32 0.0, %v165
    %v170 = vmul.f32 %v168, 1.442695
    %v171 = vpow.pop %v170
    %v172 = vmul.f32 %v169, 1.442695
    %v173 = vpow.pop %v172
    %v174 = vadd.f32 %v171, 1.0
    %v175 = vadd.f32 %v173, 1.0
    %v176 = vrcp.pop %v174
    %v177 = vmul.f32 1.0, %v176
    %v178 = vrcp.pop %v175
    %v179 = vmul.f32 1.0, %v178
    %v180 = vmul.f32 %v162, %v177
    %v181 = vmul.f32 %v165, %v179
    %v182 = vpack.c.bf16 %v181, %v180
    %v183 = vld [vmem:[%s5] sm:$0xf]
    %v184 = vld [vmem:[%s5 + $0x4] sm:$0xf]
    %v185 = vld [vmem:[%s5 + $0x8] sm:$0xf]
    %v186 = vld [vmem:[%s5 + $0xc] sm:$0xf]
    %v187 = vld [vmem:[%s5 + $0x10] sm:$0xf]
    %v188 = vld [vmem:[%s5 + $0x14] sm:$0xf]
    %v189 = vld [vmem:[%s5 + $0x18] sm:$0xf]
    %v190 = vld [vmem:[%s5 + $0x1c] sm:$0xf]
    %v191 = vld [vmem:[%s5 + $0x20] sm:$0xf]
    %v192 = vld [vmem:[%s5 + $0x24] sm:$0xf]
    %v193 = vld [vmem:[%s5 + $0x28] sm:$0xf]
    %v194 = vld [vmem:[%s5 + $0x2c] sm:$0xf]
    %v195 = vld [vmem:[%s5 + $0x30] sm:$0xf]
    %v196 = vld [vmem:[%s5 + $0x34] sm:$0xf]
    %v197 = vld [vmem:[%s5 + $0x38] sm:$0xf]
    %v198 = vld [vmem:[%s5 + $0x3c] sm:$0xf]
    %v199 = vld [vmem:[%s6] sm:$0x1]
    %v201 = vlaneseq
    %v202 = vshrl.u32 %v201, 7
    %v203 = vsub.s32 0, %v202
    %v204 = vrot.slane %v199, %v203
    %v222 = vunpack.c.l.b16 %v183
    %v223 = vunpack.c.l.b16 %v184
    %v224 = vunpack.c.l.b16 %v185
    %v225 = vunpack.c.l.b16 %v186
    %v226 = vunpack.c.l.b16 %v187
    %v227 = vunpack.c.l.b16 %v188
    %v228 = vunpack.c.l.b16 %v189
    %v229 = vunpack.c.l.b16 %v190
    %v230 = vunpack.c.l.b16 %v191
    %v231 = vunpack.c.l.b16 %v192
    %v232 = vunpack.c.l.b16 %v193
    %v233 = vunpack.c.l.b16 %v194
    %v234 = vunpack.c.l.b16 %v195
    %v235 = vunpack.c.l.b16 %v196
    %v236 = vunpack.c.l.b16 %v197
    %v237 = vunpack.c.l.b16 %v198
    %v238 = vpack.c.b16 %v223, %v222
    %v239 = vpack.c.b16 %v225, %v224
    %v240 = vpack.c.b16 %v227, %v226
    %v241 = vpack.c.b16 %v229, %v228
    %v242 = vpack.c.b16 %v231, %v230
    %v243 = vpack.c.b16 %v233, %v232
    %v244 = vpack.c.b16 %v235, %v234
    %v245 = vpack.c.b16 %v237, %v236
    %254 = vmatprep.subr.bf16.mxu0 0
    %255 = vmatpush1.bf16.msra.mxu0 %v245
    %256 = vmatprep.subr.bf16.mxu0 0
    %257 = vmatpush1.bf16.msra.mxu0 %v244
    %258 = vmatprep.subr.bf16.mxu0 0
    %259 = vmatpush1.bf16.msra.mxu0 %v243
    %260 = vmatprep.subr.bf16.mxu0 0
    %261 = vmatpush1.bf16.msra.mxu0 %v242
    %262 = vmatprep.subr.bf16.mxu0 0
    %263 = vmatpush1.bf16.msra.mxu0 %v241
    %264 = vmatprep.subr.bf16.mxu0 0
    %265 = vmatpush1.bf16.msra.mxu0 %v240
    %266 = vmatprep.subr.bf16.mxu0 0
    %267 = vmatpush1.bf16.msra.mxu0 %v239
    %268 = vmatprep.subr.bf16.mxu0 0
    %269 = vmatpush1.bf16.msra.mxu0 %v238
    %270 = vmatprep.subr.bf16.mxu0 0
    %271 = vmatpush2.bf16.msra.mxu0 0
    %272 = vmatprep.subr.bf16.mxu0 0
    %273 = vmatpush2.bf16.msra.mxu0 0
    %274 = vmatprep.subr.bf16.mxu0 0
    %275 = vmatpush2.bf16.msra.mxu0 0
    %276 = vmatprep.subr.bf16.mxu0 0
    %277 = vmatpush2.bf16.msra.mxu0 0
    %278 = vmatprep.subr.bf16.mxu0 0
    %279 = vmatpush2.bf16.msra.mxu0 0
    %280 = vmatprep.subr.bf16.mxu0 0
    %281 = vmatpush2.bf16.msra.mxu0 0
    %282 = vmatprep.subr.bf16.mxu0 0
    %283 = vmatpush2.bf16.msra.mxu0 0
    %284 = vmatprep.subr.bf16.mxu0 0
    %285 = vmatpush2.bf16.msra.mxu0 0
    %286 = vmatprep.mubr.bf16.mxu0 0
    %287 = vmatmul.mubr.bf16.gmra.mxu0 %v182
    %v288 = vpop.f32.mrf.mxu0
    %v289 = vadd.f32 %v204, %v288
    %v290 = vpop.f32.mrf.mxu0
    %v291 = vpop.f32.mrf.mxu0
    %v292 = vadd.f32 %v204, %v291
    %v293 = vpop.f32.mrf.mxu0
    %294 = vdwg.mxu0
    %v295 = vmul.f32 %v289, 0.5
    %v296 = vmul.f32 %v292, 0.5
    %v297 = vadd.f32 %v36, %v295
    %v298 = vadd.f32 %v37, %v296
    %v299 = vld [vmem:[%s7] sm:$0x1]
    %v300 = vld [vmem:[%s8] sm:$0x1]
    %v301 = vsel %vm40, %v297, 0.0
    %302 = vadd.xlane.f32.xlu0 %v301
    %v303 = vpop.xlane.xlu0 %302
    %v304 = vsel %vm40, %v298, 0.0
    %305 = vadd.xlane.f32.xlu0 %v304
    %v306 = vpop.xlane.xlu0 %305
    %v307 = vmul.f32 %v303, %v47
    %v308 = vmul.f32 %v306, %v47
    %v309 = vsub.f32 %v297, %v307
    %v310 = vsub.f32 %v298, %v308
    %v311 = vmul.f32 %v309, %v309
    %v312 = vmul.f32 %v310, %v310
    %v313 = vsel %vm40, %v311, 0.0
    %314 = vadd.xlane.f32.xlu0 %v313
    %v315 = vpop.xlane.xlu0 %314
    %v316 = vsel %vm40, %v312, 0.0
    %317 = vadd.xlane.f32.xlu0 %v316
    %v318 = vpop.xlane.xlu0 %317
    %v319 = vmul.f32 %v315, %v47
    %v320 = vmul.f32 %v318, %v47
    %v321 = vadd.f32 %v319, 1e-05
    %v322 = vadd.f32 %v320, 1e-05
    %v323 = vrsqrt.pop %v321
    %v324 = vrsqrt.pop %v322
    %v325 = vmul.f32 %v309, %v323
    %v326 = vmul.f32 %v310, %v324
    %v328 = vlaneseq
    %v329 = vshrl.u32 %v328, 7
    %v330 = vsub.s32 0, %v329
    %v331 = vrot.slane %v299, %v330
    %v333 = vmul.f32 %v325, %v331
    %v334 = vmul.f32 %v326, %v331
    %v336 = vlaneseq
    %v337 = vshrl.u32 %v336, 7
    %v338 = vsub.s32 0, %v337
    %v339 = vrot.slane %v300, %v338
    %v341 = vadd.f32 %v333, %v339
    %v342 = vadd.f32 %v334, %v339
    %343 = vst.msk [vmem:[#allocation2] sm:$0xff] %vm40, %v341
    %344 = vst.msk [vmem:[#allocation2 + $0x8] sm:$0xff] %vm40, %v342
    // Predicated region
    $region38: #{conformer_encoder_layer.9} parent=1 // pred_check
      _
    $region39: #{conformer_encoder_layer.9} parent=1 // pred_check_branch
      %346 = sbr.rel (0) target = $region41
    $region40: #{conformer_encoder_layer.9} parent=1 // pred_region
      %s348 = ssub.s32 256, 256
      %349 = vsyncadd [#allocation3], %s348
      %s350 = sshll.u32 [#allocation2], 4
      %s351 = int_to_ptr.vmem [resolvable:$true] %s350
      %356 = dma.vmem_to_hbm [thread:$0]  %s351, 256, %s9, [#allocation3], 128, 128, 8
    $region41: #{conformer_encoder_layer.9} parent=1 // pred_fallthru
      _
    // Predicated region
    $region42: #{conformer_encoder_layer.9} parent=1 // pred_check
      _
    $region43: #{conformer_encoder_layer.9} parent=1 // pred_check_branch
      %358 = sbr.rel (0) target = $region45
    $region44: #{conformer_encoder_layer.9} parent=1 // pred_region
      %359 = dma.done [#allocation3], 256
    $region45: #{conformer_encoder_layer.9} parent=1 // pred_fallthru
      _
    %360 = vsyncpa [#allocation3], 1

</llo_original>
